<compile_context>
chip_gen: v6e
topology: v6e:2x2x1
jax: 0.10.0
libtpu: 0.0.40
codegen_flags: <defaults>
</compile_context>

<pallas_src>
import functools

import jax
import jax.numpy as jnp
import numpy as np
from jax.experimental import pallas as pl
from jax.experimental.pallas import tpu as pltpu

LATENT = 512
NBLK = 3            # UNet.style = nn.Sequential(AdaINBlock x 3)


def style_stack_kernel(x_ref, aff_ref, w_ref, out_ref):
    # x_ref:   (BTILE*H, W*C)        lane-dense activation slab (BTILE images stacked on rows)
    # aff_ref: (NBLK, BTILE, 4, W*C) per-block/per-image [scale1, shift1, scale2, shift2]
    #                                (style linear, "+1" and conv-bias folding done in wrapper)
    # w_ref:   (NBLK, 2, 3*W*C, W*C) fused banded conv weights (one K=3*W*C matrix per conv)
    # out_ref: (BTILE*H, W*C)
    M, WC = x_ref.shape
    nblk, BT = aff_ref.shape[0], aff_ref.shape[1]
    H = M // BT
    cdt = w_ref.dtype                               # bf16 (default) or f32 compute dtype

    # Per-image vertical zero padding of the stacked slab: rows whose rolled
    # neighbour wrapped into the previous / next image are masked to zero.
    row = jax.lax.broadcasted_iota(jnp.int32, (M, WC), 0) % H
    not_top = row != 0
    not_bot = row != H - 1

    def conv3x3(inp, w2d):
        # 3x3 zero-padded conv as ONE matmul with K = 3*WC.  Vertical taps via
        # sublane roll (XLU slot) + edge mask; horizontal taps, Cin->Cout
        # mixing and horizontal zero pad live inside the banded weight w2d.
        up = jnp.where(not_top, pltpu.roll(inp, shift=1, axis=0), 0.0)       # x[r-1]
        dn = jnp.where(not_bot, pltpu.roll(inp, shift=M - 1, axis=0), 0.0)   # x[r+1]
        lhs = jnp.concatenate(
            [up.astype(cdt), inp.astype(cdt), dn.astype(cdt)], axis=1)       # (M, 3*WC)
        return jnp.dot(lhs, w2d, preferred_element_type=jnp.float32)         # (M, WC) f32

    def adain(z, sc, sh):
        # Per-image (BTILE, WC) scale/shift broadcast over that image's H rows.
        z3 = z.reshape(BT, H, WC)
        return (z3 * sc[:, None, :] + sh[:, None, :]).reshape(M, WC)

    y = x_ref[...]                                   # (M, WC) f32
    for n in range(nblk):                            # static unroll over the 3 AdaIN blocks
        a = aff_ref[n]                               # (BTILE, 4, WC)
        h = conv3x3(y, w_ref[n, 0])                  # conv1 (bias folded into shift1)
        h = adain(h, a[:, 0], a[:, 1])               # AdaIN 1
        h = jnp.maximum(h, 0.0)                      # ReLU
        h = conv3x3(h, w_ref[n, 1])                  # conv2 (bias folded into shift2)
        h = adain(h, a[:, 2], a[:, 3])               # AdaIN 2
        y = y + h                                    # residual
    out_ref[...] = y.astype(out_ref.dtype)


def _banded_conv_weights(w, W):
    """(Cout, Cin, 3, 3) conv weight -> (3*W*Cin, W*Cout) fused banded matrix.

    M[kh*W*Cin + wi*Cin + ci, wo*Cout + co] = w[co, ci, kh, wi - wo + 1],
    zero where the horizontal tap falls outside [0, W) (horizontal zero pad).

    NOTE: this (W*C)^2 formulation is only for small C (here W*C = 128 lanes).
    At production C = 512 restructure as (H*W, C) @ (C, C) per-tap matmuls
    streamed over a K/N grid axis — the banded matrices would be ~768 MiB f32
    per conv and ~5.3x FLOP-inflated, untenable under v7x's 64 MiB VMEM.
    """
    cout, cin = w.shape[0], w.shape[1]
    wt = jnp.transpose(w, (2, 3, 1, 0))                       # (kh, kw, ci, co)
    sel = np.zeros((3, W, W), np.float32)
    for kw in range(3):
        for wo in range(W):
            wi = wo + kw - 1
            if 0 <= wi < W:
                sel[kw, wi, wo] = 1.0
    m = jnp.einsum("kab,hkio->haibo", jnp.asarray(sel), wt)   # (kh, wi, ci, wo, co)
    return m.reshape(3 * W * cin, W * cout)


def _style_affine(id_emb, sw, sb, conv_b, C, W):
    # Hoisted Linear(512, 2C) + "+1" + conv-bias folding:
    #   (conv(x) + b) * scale + shift == conv(x) * scale + (b * scale + shift)
    s = id_emb @ sw + sb                                       # (B, 2C)
    scale = s[:, :C] + 1.0
    shift = s[:, C:] + conv_b[None, :] * scale
    # Lane layout is w*C + c (c fastest): tile the per-channel vectors over W.
    return jnp.tile(scale, (1, W)), jnp.tile(shift, (1, W))    # each (B, W*C)


def unet_style(x_nchw, id_emb, params, *, compute_dtype=jnp.bfloat16):
    """UNet.style forward: x (B, C, H, W) f32, id_emb (B, 512) f32 -> (B, C, H, W)."""
    B, C, H, W = x_nchw.shape
    WC = W * C
    nblk = len(params)

    # Images per grid step: make the matmul M dim (btile*H) >= 128 while keeping
    # grid length >= 2 so dimension_semantics=("parallel",) feeds both v7x
    # TensorCores (on single-TC v5e/v6e the extra step is only ~0.35 us).
    btile = B // 2 if (B % 2 == 0 and B >= 2) else B
    grid = (B // btile,)
    M = btile * H

    # Lane-dense layout: (B*H, W*C) rows of 128 lanes.
    # TODO(synk): in the full UNet keep activations NHWC end-to-end (or fuse
    # these transposes into the producing/consuming convs) — at ~MFLOP scale a
    # wrapper transpose costs a full extra HBM round trip of the activation.
    x2d = jnp.transpose(x_nchw, (0, 2, 3, 1)).reshape(B * H, WC)

    affs, ws = [], []
    for p in params:
        sc1, sh1 = _style_affine(id_emb, p["s1w"], p["s1b"], p["b1"], C, W)
        sc2, sh2 = _style_affine(id_emb, p["s2w"], p["s2b"], p["b2"], C, W)
        affs.append(jnp.stack([sc1, sh1, sc2, sh2], axis=1))        # (B, 4, WC)
        ws.append(jnp.stack([_banded_conv_weights(p["w1"], W),
                             _banded_conv_weights(p["w2"], W)]))    # (2, 3WC, WC)
    affine = jnp.stack(affs, axis=0)                                # (NBLK, B, 4, WC) f32
    weights = jnp.stack(ws, axis=0).astype(compute_dtype)           # (NBLK, 2, 3WC, WC)

    wbytes = int(np.dtype(compute_dtype).itemsize)
    flops = 2 * nblk * 2 * (B * H) * (3 * WC) * WC
    bytes_accessed = (2 * B * H * WC * 4                            # activation in + out
                      + affine.size * 4 + weights.size * wbytes)

    out2d = pl.pallas_call(
        style_stack_kernel,
        out_shape=jax.ShapeDtypeStruct((B * H, WC), x_nchw.dtype),
        grid_spec=pltpu.PrefetchScalarGridSpec(
            num_scalar_prefetch=0,
            grid=grid,
            in_specs=[
                pl.BlockSpec((M, WC), lambda b: (b, 0)),                     # activation slab
                pl.BlockSpec((nblk, btile, 4, WC), lambda b: (0, b, 0, 0)),  # affine table
                # Constant across grid steps (index_map -> 0): Pallas skips the
                # re-DMA.  At production sizes single-buffer these weights
                # (pl.Buffered(1) / persistent VMEM scratch) to drop the dead
                # second buffer; negligible at this toy size.
                pl.BlockSpec((nblk, 2, 3 * WC, WC), lambda b: (0, 0, 0, 0)),
            ],
            out_specs=pl.BlockSpec((M, WC), lambda b: (b, 0)),
        ),
        compiler_params=pltpu.CompilerParams(
            dimension_semantics=("parallel",)),
        cost_estimate=pl.CostEstimate(flops=flops, transcendentals=0,
                                      bytes_accessed=bytes_accessed),
    )(x2d, affine, weights)

    return jnp.transpose(out2d.reshape(B, H, W, C), (0, 3, 1, 2))   # back to NCHW


def reference(x, id_emb, params):
    """Pure-JAX reference mirroring the PyTorch UNet.style forward (NCHW)."""
    C = x.shape[1]

    def conv(z, w, b):
        y = jax.lax.conv_general_dilated(
            z, w, window_strides=(1, 1), padding=((1, 1), (1, 1)),
            dimension_numbers=("NCHW", "OIHW", "NCHW"))
        return y + b[None, :, None, None]

    def style(z, sw, sb):
        s = id_emb @ sw + sb
        scale = s[:, :C][:, :, None, None]
        shift = s[:, C:][:, :, None, None]
        return z * (scale + 1.0) + shift

    y = x
    for p in params:
        h = conv(y, p["w1"], p["b1"])
        h = style(h, p["s1w"], p["s1b"])
        h = jnp.maximum(h, 0.0)
        h = conv(h, p["w2"], p["b2"])
        h = style(h, p["s2w"], p["s2b"])
        y = y + h
    return y


if __name__ == "__main__":
    # in_channel == out_channel == C; W*C = 128 lanes; (B/2)*H = 128 matmul rows per step.
    B, C, H, W = 16, 8, 16, 16

    key = jax.random.PRNGKey(0)
    params = []
    for _ in range(NBLK):
        key, *ks = jax.random.split(key, 9)
        params.append({
            "w1": 0.1 * jax.random.normal(ks[0], (C, C, 3, 3), jnp.float32),
            "b1": 0.1 * jax.random.normal(ks[1], (C,), jnp.float32),
            "w2": 0.1 * jax.random.normal(ks[2], (C, C, 3, 3), jnp.float32),
            "b2": 0.1 * jax.random.normal(ks[3], (C,), jnp.float32),
            "s1w": 0.02 * jax.random.normal(ks[4], (LATENT, 2 * C), jnp.float32),
            "s1b": 0.1 * jax.random.normal(ks[5], (2 * C,), jnp.float32),
            "s2w": 0.02 * jax.random.normal(ks[6], (LATENT, 2 * C), jnp.float32),
            "s2b": 0.1 * jax.random.normal(ks[7], (2 * C,), jnp.float32),
        })
    key, kx, kid = jax.random.split(key, 3)
    x = jax.random.normal(kx, (B, C, H, W), jnp.float32)
    id_emb = jax.random.normal(kid, (B, LATENT), jnp.float32)

    ref = jax.block_until_ready(reference(x, id_emb, params))

    # Strict check: f32 compute path.
    run_f32 = jax.jit(functools.partial(unet_style, compute_dtype=jnp.float32))
    out_f32 = jax.block_until_ready(run_f32(x, id_emb, params))
    np.testing.assert_allclose(np.asarray(out_f32), np.asarray(ref),
                               rtol=1e-4, atol=2e-4)

    # Production path: bf16 matmul operands, f32 accumulation (looser tolerance).
    run_bf16 = jax.jit(unet_style)
    out_bf16 = jax.block_until_ready(run_bf16(x, id_emb, params))
    np.testing.assert_allclose(np.asarray(out_bf16), np.asarray(ref),
                               rtol=2e-2, atol=4e-2)

    print("KERNEL_OK")
</pallas_src>

<mosaic_0001>
module attributes {stable_mosaic.version = 11 : i64} {
  func.func @style_stack_kernel(%arg0: i32, %arg1: memref<128x128xf32, #tpu.memory_space<vmem>>, %arg2: memref<3x8x4x128xf32, #tpu.memory_space<vmem>>, %arg3: memref<3x2x384x128xf32, #tpu.memory_space<vmem>>, %arg4: memref<128x128xf32, #tpu.memory_space<vmem>>) attributes {dimension_semantics = [#tpu.dimension_semantics<parallel>], iteration_bounds = array<i64: 2>, scalar_prefetch = 0 : i64, scratch_operands = 0 : i64, tpu.core_type = #tpu.core_type<tc>, window_params = [{transform_indices = @transform_0, window_bounds = array<i64: 128, 128>}, {transform_indices = @transform_1, window_bounds = array<i64: 3, 8, 4, 128>}, {pipeline_mode = #tpu.pipeline_mode<synchronous>, transform_indices = @transform_2, window_bounds = array<i64: 3, 2, 384, 128>}, {transform_indices = @transform_3, window_bounds = array<i64: 128, 128>}]} {
    %0 = tpu.iota {dimensions = array<i32: 0>} : vector<128x128xi32>
    %c16_i32 = arith.constant 16 : i32
    %c0_i32 = arith.constant 0 : i32
    %1 = arith.cmpi eq, %c16_i32, %c0_i32 : i32
    %c1_i32 = arith.constant 1 : i32
    %2 = arith.select %1, %c1_i32, %c16_i32 : i32
    %3 = vector.broadcast %2 : i32 to vector<128x128xi32>
    %4 = arith.remsi %0, %3 : vector<128x128xi32>
    %c0_i32_0 = arith.constant 0 : i32
    %5 = vector.broadcast %c0_i32_0 : i32 to vector<128x128xi32>
    %6 = arith.cmpi ne, %4, %5 : vector<128x128xi32>
    %c0_i32_1 = arith.constant 0 : i32
    %7 = vector.broadcast %c0_i32_1 : i32 to vector<128x128xi32>
    %8 = arith.cmpi slt, %4, %7 : vector<128x128xi32>
    %c0_i32_2 = arith.constant 0 : i32
    %9 = arith.cmpi slt, %2, %c0_i32_2 : i32
    %10 = vector.broadcast %9 : i1 to vector<128x128xi1>
    %11 = vector.broadcast %10 : vector<128x128xi1> to vector<128x128xi1>
    %12 = arith.xori %8, %11 : vector<128x128xi1>
    %13 = arith.andi %12, %6 : vector<128x128xi1>
    %14 = vector.broadcast %2 : i32 to vector<128x128xi32>
    %15 = arith.addi %4, %14 : vector<128x128xi32>
    %16 = arith.select %13, %15, %4 : vector<128x128xi1>, vector<128x128xi32>
    %c0_i32_3 = arith.constant 0 : i32
    %17 = vector.broadcast %c0_i32_3 : i32 to vector<128x128xi32>
    %18 = arith.cmpi ne, %16, %17 : vector<128x128xi32>
    %c15_i32 = arith.constant 15 : i32
    %19 = vector.broadcast %c15_i32 : i32 to vector<128x128xi32>
    %20 = arith.cmpi ne, %16, %19 : vector<128x128xi32>
    %c0 = arith.constant 0 : index
    %c0_4 = arith.constant 0 : index
    %21 = vector.load %arg1[%c0, %c0_4] : memref<128x128xf32, #tpu.memory_space<vmem>>, vector<128x128xf32>
    %c0_5 = arith.constant 0 : index
    %c0_6 = arith.constant 0 : index
    %c0_7 = arith.constant 0 : index
    %c0_8 = arith.constant 0 : index
    %22 = vector.load %arg2[%c0_5, %c0_6, %c0_7, %c0_8] : memref<3x8x4x128xf32, #tpu.memory_space<vmem>>, vector<1x8x4x128xf32>
    %23 = vector.shape_cast %22 : vector<1x8x4x128xf32> to vector<8x4x128xf32>
    %c0_9 = arith.constant 0 : index
    %c0_10 = arith.constant 0 : index
    %c0_11 = arith.constant 0 : index
    %c0_12 = arith.constant 0 : index
    %24 = vector.load %arg3[%c0_9, %c0_10, %c0_11, %c0_12] : memref<3x2x384x128xf32, #tpu.memory_space<vmem>>, vector<1x1x384x128xf32>
    %25 = vector.shape_cast %24 : vector<1x1x384x128xf32> to vector<384x128xf32>
    %c1_i32_13 = arith.constant 1 : i32
    %26 = tpu.dynamic_rotate %21 by %c1_i32_13 dim 0 : vector<128x128xf32>, i32 -> vector<128x128xf32>
    %cst = arith.constant 0.000000e+00 : f32
    %27 = vector.broadcast %cst : f32 to vector<128x128xf32>
    %28 = arith.select %18, %26, %27 : vector<128x128xi1>, vector<128x128xf32>
    %c127_i32 = arith.constant 127 : i32
    %29 = tpu.dynamic_rotate %21 by %c127_i32 dim 0 : vector<128x128xf32>, i32 -> vector<128x128xf32>
    %cst_14 = arith.constant 0.000000e+00 : f32
    %30 = vector.broadcast %cst_14 : f32 to vector<128x128xf32>
    %31 = arith.select %20, %29, %30 : vector<128x128xi1>, vector<128x128xf32>
    %32 = tpu.concatenate %28, %21, %31 in 1 : vector<128x128xf32>, vector<128x128xf32>, vector<128x128xf32> -> vector<128x384xf32>
    %cst_15 = arith.constant dense<0.000000e+00> : vector<128x128xf32>
    %33 = tpu.matmul %32, %25, %cst_15 {dimension_numbers = #tpu.dot_dimension_numbers<[1], [0], [0], [1], [0, 0, 1, 1], [], []>} : vector<128x384xf32>, vector<384x128xf32>, vector<128x128xf32> -> vector<128x128xf32>
    %34 = vector.extract_strided_slice %23 {offsets = [0, 0, 0], sizes = [8, 1, 128], strides = [1, 1, 1]} : vector<8x4x128xf32> to vector<8x1x128xf32>
    %35 = vector.shape_cast %34 : vector<8x1x128xf32> to vector<8x128xf32>
    %36 = vector.extract_strided_slice %23 {offsets = [0, 1, 0], sizes = [8, 1, 128], strides = [1, 1, 1]} : vector<8x4x128xf32> to vector<8x1x128xf32>
    %37 = vector.shape_cast %36 : vector<8x1x128xf32> to vector<8x128xf32>
    %38 = vector.shape_cast %33 : vector<128x128xf32> to vector<8x16x128xf32>
    %39 = vector.shape_cast %35 : vector<8x128xf32> to vector<8x1x128xf32>
    %40 = vector.broadcast %39 : vector<8x1x128xf32> to vector<8x16x128xf32>
    %41 = arith.mulf %38, %40 : vector<8x16x128xf32>
    %42 = vector.shape_cast %37 : vector<8x128xf32> to vector<8x1x128xf32>
    %43 = vector.broadcast %42 : vector<8x1x128xf32> to vector<8x16x128xf32>
    %44 = arith.addf %41, %43 : vector<8x16x128xf32>
    %45 = vector.shape_cast %44 : vector<8x16x128xf32> to vector<128x128xf32>
    %cst_16 = arith.constant 0.000000e+00 : f32
    %46 = vector.broadcast %cst_16 : f32 to vector<128x128xf32>
    %47 = arith.maximumf %45, %46 : vector<128x128xf32>
    %c0_17 = arith.constant 0 : index
    %c1 = arith.constant 1 : index
    %c0_18 = arith.constant 0 : index
    %c0_19 = arith.constant 0 : index
    %48 = vector.load %arg3[%c0_17, %c1, %c0_18, %c0_19] : memref<3x2x384x128xf32, #tpu.memory_space<vmem>>, vector<1x1x384x128xf32>
    %49 = vector.shape_cast %48 : vector<1x1x384x128xf32> to vector<384x128xf32>
    %c1_i32_20 = arith.constant 1 : i32
    %50 = tpu.dynamic_rotate %47 by %c1_i32_20 dim 0 : vector<128x128xf32>, i32 -> vector<128x128xf32>
    %cst_21 = arith.constant 0.000000e+00 : f32
    %51 = vector.broadcast %cst_21 : f32 to vector<128x128xf32>
    %52 = arith.select %18, %50, %51 : vector<128x128xi1>, vector<128x128xf32>
    %c127_i32_22 = arith.constant 127 : i32
    %53 = tpu.dynamic_rotate %47 by %c127_i32_22 dim 0 : vector<128x128xf32>, i32 -> vector<128x128xf32>
    %cst_23 = arith.constant 0.000000e+00 : f32
    %54 = vector.broadcast %cst_23 : f32 to vector<128x128xf32>
    %55 = arith.select %20, %53, %54 : vector<128x128xi1>, vector<128x128xf32>
    %56 = tpu.concatenate %52, %47, %55 in 1 : vector<128x128xf32>, vector<128x128xf32>, vector<128x128xf32> -> vector<128x384xf32>
    %cst_24 = arith.constant dense<0.000000e+00> : vector<128x128xf32>
    %57 = tpu.matmul %56, %49, %cst_24 {dimension_numbers = #tpu.dot_dimension_numbers<[1], [0], [0], [1], [0, 0, 1, 1], [], []>} : vector<128x384xf32>, vector<384x128xf32>, vector<128x128xf32> -> vector<128x128xf32>
    %58 = vector.extract_strided_slice %23 {offsets = [0, 2, 0], sizes = [8, 1, 128], strides = [1, 1, 1]} : vector<8x4x128xf32> to vector<8x1x128xf32>
    %59 = vector.shape_cast %58 : vector<8x1x128xf32> to vector<8x128xf32>
    %60 = vector.extract_strided_slice %23 {offsets = [0, 3, 0], sizes = [8, 1, 128], strides = [1, 1, 1]} : vector<8x4x128xf32> to vector<8x1x128xf32>
    %61 = vector.shape_cast %60 : vector<8x1x128xf32> to vector<8x128xf32>
    %62 = vector.shape_cast %57 : vector<128x128xf32> to vector<8x16x128xf32>
    %63 = vector.shape_cast %59 : vector<8x128xf32> to vector<8x1x128xf32>
    %64 = vector.broadcast %63 : vector<8x1x128xf32> to vector<8x16x128xf32>
    %65 = arith.mulf %62, %64 : vector<8x16x128xf32>
    %66 = vector.shape_cast %61 : vector<8x128xf32> to vector<8x1x128xf32>
    %67 = vector.broadcast %66 : vector<8x1x128xf32> to vector<8x16x128xf32>
    %68 = arith.addf %65, %67 : vector<8x16x128xf32>
    %69 = vector.shape_cast %68 : vector<8x16x128xf32> to vector<128x128xf32>
    %70 = arith.addf %21, %69 : vector<128x128xf32>
    %c1_25 = arith.constant 1 : index
    %c0_26 = arith.constant 0 : index
    %c0_27 = arith.constant 0 : index
    %c0_28 = arith.constant 0 : index
    %71 = vector.load %arg2[%c1_25, %c0_26, %c0_27, %c0_28] : memref<3x8x4x128xf32, #tpu.memory_space<vmem>>, vector<1x8x4x128xf32>
    %72 = vector.shape_cast %71 : vector<1x8x4x128xf32> to vector<8x4x128xf32>
    %c1_29 = arith.constant 1 : index
    %c0_30 = arith.constant 0 : index
    %c0_31 = arith.constant 0 : index
    %c0_32 = arith.constant 0 : index
    %73 = vector.load %arg3[%c1_29, %c0_30, %c0_31, %c0_32] : memref<3x2x384x128xf32, #tpu.memory_space<vmem>>, vector<1x1x384x128xf32>
    %74 = vector.shape_cast %73 : vector<1x1x384x128xf32> to vector<384x128xf32>
    %c1_i32_33 = arith.constant 1 : i32
    %75 = tpu.dynamic_rotate %70 by %c1_i32_33 dim 0 : vector<128x128xf32>, i32 -> vector<128x128xf32>
    %cst_34 = arith.constant 0.000000e+00 : f32
    %76 = vector.broadcast %cst_34 : f32 to vector<128x128xf32>
    %77 = arith.select %18, %75, %76 : vector<128x128xi1>, vector<128x128xf32>
    %c127_i32_35 = arith.constant 127 : i32
    %78 = tpu.dynamic_rotate %70 by %c127_i32_35 dim 0 : vector<128x128xf32>, i32 -> vector<128x128xf32>
    %cst_36 = arith.constant 0.000000e+00 : f32
    %79 = vector.broadcast %cst_36 : f32 to vector<128x128xf32>
    %80 = arith.select %20, %78, %79 : vector<128x128xi1>, vector<128x128xf32>
    %81 = tpu.concatenate %77, %70, %80 in 1 : vector<128x128xf32>, vector<128x128xf32>, vector<128x128xf32> -> vector<128x384xf32>
    %cst_37 = arith.constant dense<0.000000e+00> : vector<128x128xf32>
    %82 = tpu.matmul %81, %74, %cst_37 {dimension_numbers = #tpu.dot_dimension_numbers<[1], [0], [0], [1], [0, 0, 1, 1], [], []>} : vector<128x384xf32>, vector<384x128xf32>, vector<128x128xf32> -> vector<128x128xf32>
    %83 = vector.extract_strided_slice %72 {offsets = [0, 0, 0], sizes = [8, 1, 128], strides = [1, 1, 1]} : vector<8x4x128xf32> to vector<8x1x128xf32>
    %84 = vector.shape_cast %83 : vector<8x1x128xf32> to vector<8x128xf32>
    %85 = vector.extract_strided_slice %72 {offsets = [0, 1, 0], sizes = [8, 1, 128], strides = [1, 1, 1]} : vector<8x4x128xf32> to vector<8x1x128xf32>
    %86 = vector.shape_cast %85 : vector<8x1x128xf32> to vector<8x128xf32>
    %87 = vector.shape_cast %82 : vector<128x128xf32> to vector<8x16x128xf32>
    %88 = vector.shape_cast %84 : vector<8x128xf32> to vector<8x1x128xf32>
    %89 = vector.broadcast %88 : vector<8x1x128xf32> to vector<8x16x128xf32>
    %90 = arith.mulf %87, %89 : vector<8x16x128xf32>
    %91 = vector.shape_cast %86 : vector<8x128xf32> to vector<8x1x128xf32>
    %92 = vector.broadcast %91 : vector<8x1x128xf32> to vector<8x16x128xf32>
    %93 = arith.addf %90, %92 : vector<8x16x128xf32>
    %94 = vector.shape_cast %93 : vector<8x16x128xf32> to vector<128x128xf32>
    %cst_38 = arith.constant 0.000000e+00 : f32
    %95 = vector.broadcast %cst_38 : f32 to vector<128x128xf32>
    %96 = arith.maximumf %94, %95 : vector<128x128xf32>
    %c1_39 = arith.constant 1 : index
    %c1_40 = arith.constant 1 : index
    %c0_41 = arith.constant 0 : index
    %c0_42 = arith.constant 0 : index
    %97 = vector.load %arg3[%c1_39, %c1_40, %c0_41, %c0_42] : memref<3x2x384x128xf32, #tpu.memory_space<vmem>>, vector<1x1x384x128xf32>
    %98 = vector.shape_cast %97 : vector<1x1x384x128xf32> to vector<384x128xf32>
    %c1_i32_43 = arith.constant 1 : i32
    %99 = tpu.dynamic_rotate %96 by %c1_i32_43 dim 0 : vector<128x128xf32>, i32 -> vector<128x128xf32>
    %cst_44 = arith.constant 0.000000e+00 : f32
    %100 = vector.broadcast %cst_44 : f32 to vector<128x128xf32>
    %101 = arith.select %18, %99, %100 : vector<128x128xi1>, vector<128x128xf32>
    %c127_i32_45 = arith.constant 127 : i32
    %102 = tpu.dynamic_rotate %96 by %c127_i32_45 dim 0 : vector<128x128xf32>, i32 -> vector<128x128xf32>
    %cst_46 = arith.constant 0.000000e+00 : f32
    %103 = vector.broadcast %cst_46 : f32 to vector<128x128xf32>
    %104 = arith.select %20, %102, %103 : vector<128x128xi1>, vector<128x128xf32>
    %105 = tpu.concatenate %101, %96, %104 in 1 : vector<128x128xf32>, vector<128x128xf32>, vector<128x128xf32> -> vector<128x384xf32>
    %cst_47 = arith.constant dense<0.000000e+00> : vector<128x128xf32>
    %106 = tpu.matmul %105, %98, %cst_47 {dimension_numbers = #tpu.dot_dimension_numbers<[1], [0], [0], [1], [0, 0, 1, 1], [], []>} : vector<128x384xf32>, vector<384x128xf32>, vector<128x128xf32> -> vector<128x128xf32>
    %107 = vector.extract_strided_slice %72 {offsets = [0, 2, 0], sizes = [8, 1, 128], strides = [1, 1, 1]} : vector<8x4x128xf32> to vector<8x1x128xf32>
    %108 = vector.shape_cast %107 : vector<8x1x128xf32> to vector<8x128xf32>
    %109 = vector.extract_strided_slice %72 {offsets = [0, 3, 0], sizes = [8, 1, 128], strides = [1, 1, 1]} : vector<8x4x128xf32> to vector<8x1x128xf32>
    %110 = vector.shape_cast %109 : vector<8x1x128xf32> to vector<8x128xf32>
    %111 = vector.shape_cast %106 : vector<128x128xf32> to vector<8x16x128xf32>
    %112 = vector.shape_cast %108 : vector<8x128xf32> to vector<8x1x128xf32>
    %113 = vector.broadcast %112 : vector<8x1x128xf32> to vector<8x16x128xf32>
    %114 = arith.mulf %111, %113 : vector<8x16x128xf32>
    %115 = vector.shape_cast %110 : vector<8x128xf32> to vector<8x1x128xf32>
    %116 = vector.broadcast %115 : vector<8x1x128xf32> to vector<8x16x128xf32>
    %117 = arith.addf %114, %116 : vector<8x16x128xf32>
    %118 = vector.shape_cast %117 : vector<8x16x128xf32> to vector<128x128xf32>
    %119 = arith.addf %70, %118 : vector<128x128xf32>
    %c2 = arith.constant 2 : index
    %c0_48 = arith.constant 0 : index
    %c0_49 = arith.constant 0 : index
    %c0_50 = arith.constant 0 : index
    %120 = vector.load %arg2[%c2, %c0_48, %c0_49, %c0_50] : memref<3x8x4x128xf32, #tpu.memory_space<vmem>>, vector<1x8x4x128xf32>
    %121 = vector.shape_cast %120 : vector<1x8x4x128xf32> to vector<8x4x128xf32>
    %c2_51 = arith.constant 2 : index
    %c0_52 = arith.constant 0 : index
    %c0_53 = arith.constant 0 : index
    %c0_54 = arith.constant 0 : index
    %122 = vector.load %arg3[%c2_51, %c0_52, %c0_53, %c0_54] : memref<3x2x384x128xf32, #tpu.memory_space<vmem>>, vector<1x1x384x128xf32>
    %123 = vector.shape_cast %122 : vector<1x1x384x128xf32> to vector<384x128xf32>
    %c1_i32_55 = arith.constant 1 : i32
    %124 = tpu.dynamic_rotate %119 by %c1_i32_55 dim 0 : vector<128x128xf32>, i32 -> vector<128x128xf32>
    %cst_56 = arith.constant 0.000000e+00 : f32
    %125 = vector.broadcast %cst_56 : f32 to vector<128x128xf32>
    %126 = arith.select %18, %124, %125 : vector<128x128xi1>, vector<128x128xf32>
    %c127_i32_57 = arith.constant 127 : i32
    %127 = tpu.dynamic_rotate %119 by %c127_i32_57 dim 0 : vector<128x128xf32>, i32 -> vector<128x128xf32>
    %cst_58 = arith.constant 0.000000e+00 : f32
    %128 = vector.broadcast %cst_58 : f32 to vector<128x128xf32>
    %129 = arith.select %20, %127, %128 : vector<128x128xi1>, vector<128x128xf32>
    %130 = tpu.concatenate %126, %119, %129 in 1 : vector<128x128xf32>, vector<128x128xf32>, vector<128x128xf32> -> vector<128x384xf32>
    %cst_59 = arith.constant dense<0.000000e+00> : vector<128x128xf32>
    %131 = tpu.matmul %130, %123, %cst_59 {dimension_numbers = #tpu.dot_dimension_numbers<[1], [0], [0], [1], [0, 0, 1, 1], [], []>} : vector<128x384xf32>, vector<384x128xf32>, vector<128x128xf32> -> vector<128x128xf32>
    %132 = vector.extract_strided_slice %121 {offsets = [0, 0, 0], sizes = [8, 1, 128], strides = [1, 1, 1]} : vector<8x4x128xf32> to vector<8x1x128xf32>
    %133 = vector.shape_cast %132 : vector<8x1x128xf32> to vector<8x128xf32>
    %134 = vector.extract_strided_slice %121 {offsets = [0, 1, 0], sizes = [8, 1, 128], strides = [1, 1, 1]} : vector<8x4x128xf32> to vector<8x1x128xf32>
    %135 = vector.shape_cast %134 : vector<8x1x128xf32> to vector<8x128xf32>
    %136 = vector.shape_cast %131 : vector<128x128xf32> to vector<8x16x128xf32>
    %137 = vector.shape_cast %133 : vector<8x128xf32> to vector<8x1x128xf32>
    %138 = vector.broadcast %137 : vector<8x1x128xf32> to vector<8x16x128xf32>
    %139 = arith.mulf %136, %138 : vector<8x16x128xf32>
    %140 = vector.shape_cast %135 : vector<8x128xf32> to vector<8x1x128xf32>
    %141 = vector.broadcast %140 : vector<8x1x128xf32> to vector<8x16x128xf32>
    %142 = arith.addf %139, %141 : vector<8x16x128xf32>
    %143 = vector.shape_cast %142 : vector<8x16x128xf32> to vector<128x128xf32>
    %cst_60 = arith.constant 0.000000e+00 : f32
    %144 = vector.broadcast %cst_60 : f32 to vector<128x128xf32>
    %145 = arith.maximumf %143, %144 : vector<128x128xf32>
    %c2_61 = arith.constant 2 : index
    %c1_62 = arith.constant 1 : index
    %c0_63 = arith.constant 0 : index
    %c0_64 = arith.constant 0 : index
    %146 = vector.load %arg3[%c2_61, %c1_62, %c0_63, %c0_64] : memref<3x2x384x128xf32, #tpu.memory_space<vmem>>, vector<1x1x384x128xf32>
    %147 = vector.shape_cast %146 : vector<1x1x384x128xf32> to vector<384x128xf32>
    %c1_i32_65 = arith.constant 1 : i32
    %148 = tpu.dynamic_rotate %145 by %c1_i32_65 dim 0 : vector<128x128xf32>, i32 -> vector<128x128xf32>
    %cst_66 = arith.constant 0.000000e+00 : f32
    %149 = vector.broadcast %cst_66 : f32 to vector<128x128xf32>
    %150 = arith.select %18, %148, %149 : vector<128x128xi1>, vector<128x128xf32>
    %c127_i32_67 = arith.constant 127 : i32
    %151 = tpu.dynamic_rotate %145 by %c127_i32_67 dim 0 : vector<128x128xf32>, i32 -> vector<128x128xf32>
    %cst_68 = arith.constant 0.000000e+00 : f32
    %152 = vector.broadcast %cst_68 : f32 to vector<128x128xf32>
    %153 = arith.select %20, %151, %152 : vector<128x128xi1>, vector<128x128xf32>
    %154 = tpu.concatenate %150, %145, %153 in 1 : vector<128x128xf32>, vector<128x128xf32>, vector<128x128xf32> -> vector<128x384xf32>
    %cst_69 = arith.constant dense<0.000000e+00> : vector<128x128xf32>
    %155 = tpu.matmul %154, %147, %cst_69 {dimension_numbers = #tpu.dot_dimension_numbers<[1], [0], [0], [1], [0, 0, 1, 1], [], []>} : vector<128x384xf32>, vector<384x128xf32>, vector<128x128xf32> -> vector<128x128xf32>
    %156 = vector.extract_strided_slice %121 {offsets = [0, 2, 0], sizes = [8, 1, 128], strides = [1, 1, 1]} : vector<8x4x128xf32> to vector<8x1x128xf32>
    %157 = vector.shape_cast %156 : vector<8x1x128xf32> to vector<8x128xf32>
    %158 = vector.extract_strided_slice %121 {offsets = [0, 3, 0], sizes = [8, 1, 128], strides = [1, 1, 1]} : vector<8x4x128xf32> to vector<8x1x128xf32>
    %159 = vector.shape_cast %158 : vector<8x1x128xf32> to vector<8x128xf32>
    %160 = vector.shape_cast %155 : vector<128x128xf32> to vector<8x16x128xf32>
    %161 = vector.shape_cast %157 : vector<8x128xf32> to vector<8x1x128xf32>
    %162 = vector.broadcast %161 : vector<8x1x128xf32> to vector<8x16x128xf32>
    %163 = arith.mulf %160, %162 : vector<8x16x128xf32>
    %164 = vector.shape_cast %159 : vector<8x128xf32> to vector<8x1x128xf32>
    %165 = vector.broadcast %164 : vector<8x1x128xf32> to vector<8x16x128xf32>
    %166 = arith.addf %163, %165 : vector<8x16x128xf32>
    %167 = vector.shape_cast %166 : vector<8x16x128xf32> to vector<128x128xf32>
    %168 = arith.addf %119, %167 : vector<128x128xf32>
    %c0_70 = arith.constant 0 : index
    %c0_71 = arith.constant 0 : index
    %169 = vector.load %arg4[%c0_70, %c0_71] : memref<128x128xf32, #tpu.memory_space<vmem>>, vector<128x128xf32>
    tpu.vector_store %arg4[%c0_70, %c0_71], %168 {strides = array<i32>} : memref<128x128xf32, #tpu.memory_space<vmem>>, vector<128x128xf32>,
    return
  }
  func.func @transform_0(%arg0: i32) -> (i32, i32) {
    %c0_i32 = arith.constant 0 : i32
    %c0_i32_0 = arith.constant 0 : i32
    return %arg0, %c0_i32 : i32, i32
  }
  func.func @transform_1(%arg0: i32) -> (i32, i32, i32, i32) {
    %c0_i32 = arith.constant 0 : i32
    %c0_i32_0 = arith.constant 0 : i32
    %c0_i32_1 = arith.constant 0 : i32
    %c0_i32_2 = arith.constant 0 : i32
    return %c0_i32, %arg0, %c0_i32_0, %c0_i32_1 : i32, i32, i32, i32
  }
  func.func @transform_2(%arg0: i32) -> (i32, i32, i32, i32) {
    %c0_i32 = arith.constant 0 : i32
    %c0_i32_0 = arith.constant 0 : i32
    %c0_i32_1 = arith.constant 0 : i32
    %c0_i32_2 = arith.constant 0 : i32
    %c0_i32_3 = arith.constant 0 : i32
    return %c0_i32, %c0_i32_0, %c0_i32_1, %c0_i32_2 : i32, i32, i32, i32
  }
  func.func @transform_3(%arg0: i32) -> (i32, i32) {
    %c0_i32 = arith.constant 0 : i32
    %c0_i32_0 = arith.constant 0 : i32
    return %arg0, %c0_i32 : i32, i32
  }
}

</mosaic_0001>

<llo_original>
// kernel: unet_style.1
$region0: #{unet_style.1}
  #allocation0 [shape = 'u32[]', space=smem, size = 0x4, offset = 0x4, fixed_abs, tag = 'smem constant byte address 0x4 - core index']
  #allocation1 [shape = 'u32[144,128]{1,0:T(1,128)}', space=vmem, size = 0x12000, scoped, tag = 'internal scratch']
  %s0 = inlined_call_operand.vmem [shape: f32[256,128], index: 0, kind: input, shape index: {}]
  %s1 = inlined_call_operand.vmem [shape: f32[3,16,4,128], index: 1, kind: input, shape index: {}]
  %s2 = inlined_call_operand.vmem [shape: f32[3,2,384,128], index: 2, kind: input, shape index: {}]
  %s3 = inlined_call_operand.vmem [shape: f32[256,128], index: 3, kind: output, shape index: {}]
  %s4 = sld [smem:[#allocation0]]
  $region86: #{unet_style.1} parent=0
    _
  %s6 = ssub.s32 1, %s4
  %s7 = scalar_select 0, %s6, %s4
  $region1: #{unet_style.1} parent=0
    #allocation2 [shape = 'u8[98304]{0}', space=vmem, size = 0x18000, scoped, tag = 'input window, operand 1']
    loop: start=0, step=1, limit=4
    $region2: #{unet_style.1} parent=1 // loop_pre_header
      _
    $region3: #{unet_style.1} parent=1 // loop_header
      %s9 = sphi 0, %s13
      %p10 = scmp.ge.s32.totalorder %s9, 4
      %s19 = sphi 0, %s21
      %s22 = sphi 0, %s19
      %s23 = sphi 0, %s22
      %s39 = sphi 0, %s23
      %s45 = sphi 0, %s47
      %s48 = sphi 0, %s45
      %s49 = sphi 0, %s48
      %s65 = sphi 0, %s49
      %s69 = sphi 0, %s69
      %s71 = sphi 0, %s69
      %s72 = sphi 0, %s71
      %s86 = sphi 0, %s72
      %s92 = sphi 0, %s94
      %s95 = sphi 0, %s92
      %s96 = sphi 0, %s95
      %s112 = sphi 0, %s96
    $region4: #{unet_style.1} parent=1 // loop_header_branch
      %12 = sbr.rel (%p10) target = $region8
    $region5: #{unet_style.1} parent=1 // loop_body
      %s14 = ssub.s32 %s9, 1
      %s15 = ssub.s32 %s9, 2
      %s16 = sadd.s32 %s9, 1
      %s17 = ssub.s32 %s9, %s16
      %p18 = scmp.eq.s32.totalorder %s17, 0
      %s20 = sadd.s32 %s19, 1
      %s21 = scalar_select %p18, %s19, %s20
      %p24 = pneg %p18
      %p25 = scmp.eq.s32.totalorder %s9, 1
      %p26 = por %p24, %p25
      %p27 = scmp.ne.s32.totalorder %s19, %s22
      %p28 = scmp.eq.s32.totalorder %s9, 0
      %p29 = por %p27, %p28
      %p30 = scmp.ne.s32.totalorder %s19, %s22
      %p31 = scmp.eq.s32.totalorder %s14, 1
      %p32 = por %p30, %p31
      %p33 = scmp.ne.s32.totalorder %s22, %s23
      %p34 = scmp.eq.s32.totalorder %s14, 0
      %p35 = por %p33, %p34
      %p36 = scmp.ne.s32.totalorder %s22, %s23
      %p37 = scmp.eq.s32.totalorder %s15, 1
      %p38 = por %p36, %p37
      %p40 = scmp.ne.s32.totalorder %s23, %s39
      %p41 = scmp.eq.s32.totalorder %s15, 0
      %p42 = por %p40, %p41
      %s43 = ssub.s32 %s9, %s16
      %p44 = scmp.eq.s32.totalorder %s43, 0
      %s46 = sadd.s32 %s45, 1
      %s47 = scalar_select %p44, %s45, %s46
      %p50 = pneg %p44
      %p51 = scmp.eq.s32.totalorder %s9, 1
      %p52 = por %p50, %p51
      %p53 = scmp.ne.s32.totalorder %s45, %s48
      %p54 = scmp.eq.s32.totalorder %s9, 0
      %p55 = por %p53, %p54
      %p56 = scmp.ne.s32.totalorder %s45, %s48
      %p57 = scmp.eq.s32.totalorder %s14, 1
      %p58 = por %p56, %p57
      %p59 = scmp.ne.s32.totalorder %s48, %s49
      %p60 = scmp.eq.s32.totalorder %s14, 0
      %p61 = por %p59, %p60
      %p62 = scmp.ne.s32.totalorder %s48, %s49
      %p63 = scmp.eq.s32.totalorder %s15, 1
      %p64 = por %p62, %p63
      %p66 = scmp.ne.s32.totalorder %s49, %s65
      %p67 = scmp.eq.s32.totalorder %s15, 0
      %p68 = por %p66, %p67
      %s70 = sadd.s32 %s69, 1
      %p73 = scmp.eq.s32.totalorder %s9, 1
      %p74 = scmp.ne.s32.totalorder %s69, %s71
      %p75 = scmp.eq.s32.totalorder %s9, 0
      %p76 = por %p74, %p75
      %p77 = scmp.ne.s32.totalorder %s69, %s71
      %p78 = scmp.eq.s32.totalorder %s14, 1
      %p79 = por %p77, %p78
      %p80 = scmp.ne.s32.totalorder %s71, %s72
      %p81 = scmp.eq.s32.totalorder %s14, 0
      %p82 = por %p80, %p81
      %p83 = scmp.ne.s32.totalorder %s71, %s72
      %p84 = scmp.eq.s32.totalorder %s15, 1
      %p85 = por %p83, %p84
      %p87 = scmp.ne.s32.totalorder %s72, %s86
      %p88 = scmp.eq.s32.totalorder %s15, 0
      %p89 = por %p87, %p88
      %s90 = ssub.s32 %s9, %s16
      %p91 = scmp.eq.s32.totalorder %s90, 0
      %s93 = sadd.s32 %s92, 1
      %s94 = scalar_select %p91, %s92, %s93
      %p97 = pneg %p91
      %p98 = scmp.eq.s32.totalorder %s9, 1
      %p99 = por %p97, %p98
      %p100 = scmp.ne.s32.totalorder %s92, %s95
      %p101 = scmp.eq.s32.totalorder %s9, 0
      %p102 = por %p100, %p101
      %p103 = scmp.ne.s32.totalorder %s92, %s95
      %p104 = scmp.eq.s32.totalorder %s14, 1
      %p105 = por %p103, %p104
      %p106 = scmp.ne.s32.totalorder %s95, %s96
      %p107 = scmp.eq.s32.totalorder %s14, 0
      %p108 = por %p106, %p107
      %p109 = scmp.ne.s32.totalorder %s95, %s96
      %p110 = scmp.eq.s32.totalorder %s15, 1
      %p111 = por %p109, %p110
      %p113 = scmp.ne.s32.totalorder %s96, %s112
      %p114 = scmp.eq.s32.totalorder %s15, 0
      %p115 = por %p113, %p114
      %p116 = scmp.le.s32.totalorder 1, %s9
      %p117 = scmp.lt.s32.totalorder %s9, 3
      %p118 = pnand %p116, %p117
      %p119 = pneg %p118
      // Predicated region
      $region9: #{unet_style.1} parent=5 // pred_check
        _
      $region10: #{unet_style.1} parent=5 // pred_check_branch
        %121 = sbr.rel (%p118) target = $region12
      $region11: #{unet_style.1} parent=5 // pred_region
        %s122 = ssub.s32 %s9, 1
        // Predicated region
        $region13: #{unet_style.1} parent=11 // pred_check
          %p123 = pneg %p82
        $region14: #{unet_style.1} parent=11 // pred_check_branch
          %125 = sbr.rel (%p123) target = $region16
        $region15: #{unet_style.1} parent=11 // pred_region
          _
        $region16: #{unet_style.1} parent=11 // pred_fallthru
          _
      $region12: #{unet_style.1} parent=5 // pred_fallthru
        _
      %p126 = scmp.lt.s32.totalorder %s9, 2
      // Predicated region
      $region17: #{unet_style.1} parent=5 // pred_check
        %p127 = pneg %p126
      $region18: #{unet_style.1} parent=5 // pred_check_branch
        %129 = sbr.rel (%p127) target = $region20
      $region19: #{unet_style.1} parent=5 // pred_region
        // Predicated region
        $region21: #{unet_style.1} parent=19 // pred_check
          %p130 = pneg %p29
        $region22: #{unet_style.1} parent=19 // pred_check_branch
          %132 = sbr.rel (%p130) target = $region24
        $region23: #{unet_style.1} parent=19 // pred_region
          %s133 = smul.u32 16, %s9
          %p134 = scmp.lt.s32.totalorder %s133, 31
          %s135 = scalar_select %p134, %s133, 31
          %s136 = smul.addr %s135, 8
          %s137 = scalar_lea.vmem %s0, %s136
          %s138 = smul.u32 16, %s9
        $region24: #{unet_style.1} parent=19 // pred_fallthru
          _
        // Predicated region
        $region25: #{unet_style.1} parent=19 // pred_check
          %p139 = pneg %p55
        $region26: #{unet_style.1} parent=19 // pred_check_branch
          %141 = sbr.rel (%p139) target = $region28
        $region27: #{unet_style.1} parent=19 // pred_region
          %s142 = sand.u32 %s45, 1
          %s143 = sand.u32 %s45, 1
          %s144 = smul.addr %s143, 96
          %s145 = scalar_lea.vmem [#allocation2], %s144
          %s146 = smul.u32 8, %s9
          %s147 = smul.addr %s146, 4
          %s148 = scalar_lea.vmem %s1, %s147
          // Predicated region
          $region29: #{unet_style.1} parent=27 // pred_check
            _
          $region30: #{unet_style.1} parent=27 // pred_check_branch
            %150 = sbr.rel (0) target = $region32
          $region31: #{unet_style.1} parent=27 // pred_region
            // Predicated region
            $region33: #{unet_style.1} parent=31 // pred_check
              _
            $region34: #{unet_style.1} parent=31 // pred_check_branch
              %152 = sbr.rel target = $region36
            $region35: #{unet_style.1} parent=31 // pred_region
              // Predicated region
              $region48: #{unet_style.1} parent=35 // pred_check
                _
              $region49: #{unet_style.1} parent=35 // pred_check_branch
                %214 = sbr.rel (0) target = $region51
              $region50: #{unet_style.1} parent=35 // pred_region
                loop: start=0, step=1, limit=1
                $region52: #{unet_style.1} parent=50 // loop_pre_header
                  _
                $region53: #{unet_style.1} parent=50 // loop_header
                  %s216 = sphi 0, %s220
                  %p217 = scmp.ge.s32.totalorder %s216, 1
                  %s221 = sphi %s148, %s148
                  %s222 = sphi %s145, %s145
                $region54: #{unet_style.1} parent=50 // loop_header_branch
                  %219 = sbr.rel (%p217) target = $region58
                $region55: #{unet_style.1} parent=50 // loop_body
                  _
                $region56: #{unet_style.1} parent=50 // loop_footer
                  %s220 = sadd.s32 1, %s216
                $region57: #{unet_style.1} parent=50 // loop_footer_branch
                  %215 = sbr.rel target = $region53
                $region58: #{unet_style.1} parent=50 // loop_exit
                  _
                %s224 = ssub.s32 16, 1
                loop: start=0, step=1, limit=1
                $region59: #{unet_style.1} parent=50 // loop_pre_header
                  _
                $region60: #{unet_style.1} parent=50 // loop_header
                  %s226 = sphi 0, %s230
                  %p227 = scmp.ge.s32.totalorder %s226, 1
                  %s231 = sphi %s148, %s148
                  %s232 = sphi %s145, %s145
                $region61: #{unet_style.1} parent=50 // loop_header_branch
                  %229 = sbr.rel (%p227) target = $region65
                $region62: #{unet_style.1} parent=50 // loop_body
                  %v233 = vld [vmem:[%s231] sm:%s224]
                  %234 = vst [vmem:[%s232] sm:%s224] %v233
                  %v235 = vld [vmem:[%s231 + $0x4] sm:%s224]
                  %236 = vst [vmem:[%s232 + $0x4] sm:%s224] %v235
                  %v237 = vld [vmem:[%s231 + $0x8] sm:%s224]
                  %238 = vst [vmem:[%s232 + $0x8] sm:%s224] %v237
                  %v239 = vld [vmem:[%s231 + $0xc] sm:%s224]
                  %240 = vst [vmem:[%s232 + $0xc] sm:%s224] %v239
                  %v241 = vld [vmem:[%s231 + $0x10] sm:%s224]
                  %242 = vst [vmem:[%s232 + $0x10] sm:%s224] %v241
                  %v243 = vld [vmem:[%s231 + $0x14] sm:%s224]
                  %244 = vst [vmem:[%s232 + $0x14] sm:%s224] %v243
                  %v245 = vld [vmem:[%s231 + $0x18] sm:%s224]
                  %246 = vst [vmem:[%s232 + $0x18] sm:%s224] %v245
                  %v247 = vld [vmem:[%s231 + $0x1c] sm:%s224]
                  %248 = vst [vmem:[%s232 + $0x1c] sm:%s224] %v247
                  %v249 = vld [vmem:[%s231 + $0x40] sm:%s224]
                  %250 = vst [vmem:[%s232 + $0x20] sm:%s224] %v249
                  %v251 = vld [vmem:[%s231 + $0x44] sm:%s224]
                  %252 = vst [vmem:[%s232 + $0x24] sm:%s224] %v251
                  %v253 = vld [vmem:[%s231 + $0x48] sm:%s224]
                  %254 = vst [vmem:[%s232 + $0x28] sm:%s224] %v253
                  %v255 = vld [vmem:[%s231 + $0x4c] sm:%s224]
                  %256 = vst [vmem:[%s232 + $0x2c] sm:%s224] %v255
                  %v257 = vld [vmem:[%s231 + $0x50] sm:%s224]
                  %258 = vst [vmem:[%s232 + $0x30] sm:%s224] %v257
                  %v259 = vld [vmem:[%s231 + $0x54] sm:%s224]
                  %260 = vst [vmem:[%s232 + $0x34] sm:%s224] %v259
                  %v261 = vld [vmem:[%s231 + $0x58] sm:%s224]
                  %262 = vst [vmem:[%s232 + $0x38] sm:%s224] %v261
                  %v263 = vld [vmem:[%s231 + $0x5c] sm:%s224]
                  %264 = vst [vmem:[%s232 + $0x3c] sm:%s224] %v263
                  %v265 = vld [vmem:[%s231 + $0x80] sm:%s224]
                  %266 = vst [vmem:[%s232 + $0x40] sm:%s224] %v265
                  %v267 = vld [vmem:[%s231 + $0x84] sm:%s224]
                  %268 = vst [vmem:[%s232 + $0x44] sm:%s224] %v267
                  %v269 = vld [vmem:[%s231 + $0x88] sm:%s224]
                  %270 = vst [vmem:[%s232 + $0x48] sm:%s224] %v269
                  %v271 = vld [vmem:[%s231 + $0x8c] sm:%s224]
                  %272 = vst [vmem:[%s232 + $0x4c] sm:%s224] %v271
                  %v273 = vld [vmem:[%s231 + $0x90] sm:%s224]
                  %274 = vst [vmem:[%s232 + $0x50] sm:%s224] %v273
                  %v275 = vld [vmem:[%s231 + $0x94] sm:%s224]
                  %276 = vst [vmem:[%s232 + $0x54] sm:%s224] %v275
                  %v277 = vld [vmem:[%s231 + $0x98] sm:%s224]
                  %278 = vst [vmem:[%s232 + $0x58] sm:%s224] %v277
                  %v279 = vld [vmem:[%s231 + $0x9c] sm:%s224]
                  %280 = vst [vmem:[%s232 + $0x5c] sm:%s224] %v279
                $region63: #{unet_style.1} parent=50 // loop_footer
                  %s230 = sadd.s32 1, %s226
                $region64: #{unet_style.1} parent=50 // loop_footer_branch
                  %225 = sbr.rel target = $region60
                $region65: #{unet_style.1} parent=50 // loop_exit
                  _
              $region51: #{unet_style.1} parent=35 // pred_fallthru
                _
            $region36: #{unet_style.1} parent=31 // pred_fallthru
              _
            // Predicated region
            $region37: #{unet_style.1} parent=31 // pred_check
              _
            $region38: #{unet_style.1} parent=31 // pred_check_branch
              %154 = sbr.rel (0) target = $region40
            $region39: #{unet_style.1} parent=31 // pred_region
              %s156 = ssub.s32 16, 1
              loop: start=0, step=1, limit=1
              $region41: #{unet_style.1} parent=39 // loop_pre_header
                _
              $region42: #{unet_style.1} parent=39 // loop_header
                %s158 = sphi 0, %s162
                %p159 = scmp.ge.s32.totalorder %s158, 1
                %s163 = sphi %s148, %s148
                %s164 = sphi %s145, %s145
              $region43: #{unet_style.1} parent=39 // loop_header_branch
                %161 = sbr.rel (%p159) target = $region47
              $region44: #{unet_style.1} parent=39 // loop_body
                %v165 = vld [vmem:[%s163] sm:%s156]
                %166 = vst [vmem:[%s164] sm:%s156] %v165
                %v167 = vld [vmem:[%s163 + $0x4] sm:%s156]
                %168 = vst [vmem:[%s164 + $0x4] sm:%s156] %v167
                %v169 = vld [vmem:[%s163 + $0x8] sm:%s156]
                %170 = vst [vmem:[%s164 + $0x8] sm:%s156] %v169
                %v171 = vld [vmem:[%s163 + $0xc] sm:%s156]
                %172 = vst [vmem:[%s164 + $0xc] sm:%s156] %v171
                %v173 = vld [vmem:[%s163 + $0x10] sm:%s156]
                %174 = vst [vmem:[%s164 + $0x10] sm:%s156] %v173
                %v175 = vld [vmem:[%s163 + $0x14] sm:%s156]
                %176 = vst [vmem:[%s164 + $0x14] sm:%s156] %v175
                %v177 = vld [vmem:[%s163 + $0x18] sm:%s156]
                %178 = vst [vmem:[%s164 + $0x18] sm:%s156] %v177
                %v179 = vld [vmem:[%s163 + $0x1c] sm:%s156]
                %180 = vst [vmem:[%s164 + $0x1c] sm:%s156] %v179
                %v181 = vld [vmem:[%s163 + $0x40] sm:%s156]
                %182 = vst [vmem:[%s164 + $0x20] sm:%s156] %v181
                %v183 = vld [vmem:[%s163 + $0x44] sm:%s156]
                %184 = vst [vmem:[%s164 + $0x24] sm:%s156] %v183
                %v185 = vld [vmem:[%s163 + $0x48] sm:%s156]
                %186 = vst [vmem:[%s164 + $0x28] sm:%s156] %v185
                %v187 = vld [vmem:[%s163 + $0x4c] sm:%s156]
                %188 = vst [vmem:[%s164 + $0x2c] sm:%s156] %v187
                %v189 = vld [vmem:[%s163 + $0x50] sm:%s156]
                %190 = vst [vmem:[%s164 + $0x30] sm:%s156] %v189
                %v191 = vld [vmem:[%s163 + $0x54] sm:%s156]
                %192 = vst [vmem:[%s164 + $0x34] sm:%s156] %v191
                %v193 = vld [vmem:[%s163 + $0x58] sm:%s156]
                %194 = vst [vmem:[%s164 + $0x38] sm:%s156] %v193
                %v195 = vld [vmem:[%s163 + $0x5c] sm:%s156]
                %196 = vst [vmem:[%s164 + $0x3c] sm:%s156] %v195
                %v197 = vld [vmem:[%s163 + $0x80] sm:%s156]
                %198 = vst [vmem:[%s164 + $0x40] sm:%s156] %v197
                %v199 = vld [vmem:[%s163 + $0x84] sm:%s156]
                %200 = vst [vmem:[%s164 + $0x44] sm:%s156] %v199
                %v201 = vld [vmem:[%s163 + $0x88] sm:%s156]
                %202 = vst [vmem:[%s164 + $0x48] sm:%s156] %v201
                %v203 = vld [vmem:[%s163 + $0x8c] sm:%s156]
                %204 = vst [vmem:[%s164 + $0x4c] sm:%s156] %v203
                %v205 = vld [vmem:[%s163 + $0x90] sm:%s156]
                %206 = vst [vmem:[%s164 + $0x50] sm:%s156] %v205
                %v207 = vld [vmem:[%s163 + $0x94] sm:%s156]
                %208 = vst [vmem:[%s164 + $0x54] sm:%s156] %v207
                %v209 = vld [vmem:[%s163 + $0x98] sm:%s156]
                %210 = vst [vmem:[%s164 + $0x58] sm:%s156] %v209
                %v211 = vld [vmem:[%s163 + $0x9c] sm:%s156]
                %212 = vst [vmem:[%s164 + $0x5c] sm:%s156] %v211
              $region45: #{unet_style.1} parent=39 // loop_footer
                %s162 = sadd.s32 1, %s158
              $region46: #{unet_style.1} parent=39 // loop_footer_branch
                %157 = sbr.rel target = $region42
              $region47: #{unet_style.1} parent=39 // loop_exit
                _
            $region40: #{unet_style.1} parent=31 // pred_fallthru
              _
          $region32: #{unet_style.1} parent=27 // pred_fallthru
            _
          %281 = vnop
        $region28: #{unet_style.1} parent=19 // pred_fallthru
          _
      $region20: #{unet_style.1} parent=5 // pred_fallthru
        _
      %p282 = scmp.le.s32.totalorder 1, %s9
      %p283 = scmp.lt.s32.totalorder %s9, 3
      %p284 = pnand %p282, %p283
      %p285 = pneg %p284
      // Predicated region
      $region66: #{unet_style.1} parent=5 // pred_check
        _
      $region67: #{unet_style.1} parent=5 // pred_check_branch
        %287 = sbr.rel (%p284) target = $region69
      $region68: #{unet_style.1} parent=5 // pred_region
        %s288 = ssub.s32 %s9, 1
        %s289 = sand.u32 %s48, 1
        %s290 = sand.u32 %s48, 1
        %s291 = smul.addr %s290, 96
        %s292 = scalar_lea.vmem [#allocation2], %s291
        // Predicated region
        $region70: #{unet_style.1} parent=68 // pred_check
          %p293 = pneg %p61
        $region71: #{unet_style.1} parent=68 // pred_check_branch
          %295 = sbr.rel (%p293) target = $region73
        $region72: #{unet_style.1} parent=68 // pred_region
          _
        $region73: #{unet_style.1} parent=68 // pred_fallthru
          _
        %s296 = smul.u32 16, %s14
        %p297 = scmp.lt.s32.totalorder %s296, 31
        %s298 = scalar_select %p297, %s296, 31
        %s299 = smul.addr %s298, 8
        %s300 = scalar_lea.vmem %s0, %s299
        %p301 = pneg %p35
        %p302 = pneg %p32
        %s303 = sand.u32 %s48, 1
        %s304 = sand.u32 %s48, 1
        %s305 = smul.addr %s304, 96
        %s306 = scalar_lea.vmem [#allocation2], %s305
        %p307 = pneg %p61
        %p308 = pneg %p58
        %p309 = pneg %p82
        %p310 = pneg %p79
        %p311 = pneg %p108
        %p312 = pneg %p105
        %s313 = smul.u32 16, %s14
        %p314 = scmp.lt.s32.totalorder %s313, 31
        %s315 = scalar_select %p314, %s313, 31
        %s316 = smul.addr %s315, 8
        %s317 = scalar_lea.vmem %s3, %s316
        %s318 = smul.u32 16, %s14
        %p319 = scmp.lt.s32.totalorder %s318, 31
        %s320 = scalar_select %p319, %s318, 31
        %s321 = smul.addr %s320, 8
        %s322 = scalar_lea.vmem %s0, %s321
        %s323 = smul.u32 16, %s14
        %s324 = smul.u32 8, %s14
        %s325 = smul.u32 16, %s14
        %p326 = scmp.lt.s32.totalorder %s325, 31
        %s327 = scalar_select %p326, %s325, 31
        %s328 = smul.addr %s327, 8
        %s329 = scalar_lea.vmem %s3, %s328
        %s330 = smul.u32 16, %s14
        %v331 = vlaneseq
        %v332 = vshrl.u32 %v331, 7
        %v333 = vadd.s32 %v332, 8
        %v334 = vadd.s32 %v332, 16
        %v335 = vadd.s32 %v332, 24
        %v336 = vadd.s32 %v332, 32
        %v337 = vadd.s32 %v332, 40
        %v338 = vadd.s32 %v332, 48
        %v339 = vadd.s32 %v332, 56
        %v340 = vadd.s32 %v332, 64
        %v341 = vadd.s32 %v332, 72
        %v342 = vadd.s32 %v332, 80
        %v343 = vadd.s32 %v332, 88
        %v344 = vadd.s32 %v332, 96
        %v345 = vadd.s32 %v332, 104
        %v346 = vadd.s32 %v332, 112
        %v347 = vadd.s32 %v332, 120
        %vm348 = vcmp.lt.s32.totalorder %v332, 0
        %v349 = vsub.s32 0, %v332
        %v350 = vsel %vm348, %v349, %v332
        %v351 = vshrl.u32 %v350, 4
        %v352 = vand.u32 %v350, 15
        %v353 = vsub.s32 0, %v352
        %v354 = vsel %vm348, %v353, %v352
        %vm355 = vcmp.lt.s32.totalorder %v333, 0
        %v356 = vsub.s32 0, %v333
        %v357 = vsel %vm355, %v356, %v333
        %v358 = vshrl.u32 %v357, 4
        %v359 = vand.u32 %v357, 15
        %v360 = vsub.s32 0, %v359
        %v361 = vsel %vm355, %v360, %v359
        %vm362 = vcmp.lt.s32.totalorder %v334, 0
        %v363 = vsub.s32 0, %v334
        %v364 = vsel %vm362, %v363, %v334
        %v365 = vshrl.u32 %v364, 4
        %v366 = vand.u32 %v364, 15
        %v367 = vsub.s32 0, %v366
        %v368 = vsel %vm362, %v367, %v366
        %vm369 = vcmp.lt.s32.totalorder %v335, 0
        %v370 = vsub.s32 0, %v335
        %v371 = vsel %vm369, %v370, %v335
        %v372 = vshrl.u32 %v371, 4
        %v373 = vand.u32 %v371, 15
        %v374 = vsub.s32 0, %v373
        %v375 = vsel %vm369, %v374, %v373
        %vm376 = vcmp.lt.s32.totalorder %v336, 0
        %v377 = vsub.s32 0, %v336
        %v378 = vsel %vm376, %v377, %v336
        %v379 = vshrl.u32 %v378, 4
        %v380 = vand.u32 %v378, 15
        %v381 = vsub.s32 0, %v380
        %v382 = vsel %vm376, %v381, %v380
        %vm383 = vcmp.lt.s32.totalorder %v337, 0
        %v384 = vsub.s32 0, %v337
        %v385 = vsel %vm383, %v384, %v337
        %v386 = vshrl.u32 %v385, 4
        %v387 = vand.u32 %v385, 15
        %v388 = vsub.s32 0, %v387
        %v389 = vsel %vm383, %v388, %v387
        %vm390 = vcmp.lt.s32.totalorder %v338, 0
        %v391 = vsub.s32 0, %v338
        %v392 = vsel %vm390, %v391, %v338
        %v393 = vshrl.u32 %v392, 4
        %v394 = vand.u32 %v392, 15
        %v395 = vsub.s32 0, %v394
        %v396 = vsel %vm390, %v395, %v394
        %vm397 = vcmp.lt.s32.totalorder %v339, 0
        %v398 = vsub.s32 0, %v339
        %v399 = vsel %vm397, %v398, %v339
        %v400 = vshrl.u32 %v399, 4
        %v401 = vand.u32 %v399, 15
        %v402 = vsub.s32 0, %v401
        %v403 = vsel %vm397, %v402, %v401
        %vm404 = vcmp.lt.s32.totalorder %v340, 0
        %v405 = vsub.s32 0, %v340
        %v406 = vsel %vm404, %v405, %v340
        %v407 = vshrl.u32 %v406, 4
        %v408 = vand.u32 %v406, 15
        %v409 = vsub.s32 0, %v408
        %v410 = vsel %vm404, %v409, %v408
        %vm411 = vcmp.lt.s32.totalorder %v341, 0
        %v412 = vsub.s32 0, %v341
        %v413 = vsel %vm411, %v412, %v341
        %v414 = vshrl.u32 %v413, 4
        %v415 = vand.u32 %v413, 15
        %v416 = vsub.s32 0, %v415
        %v417 = vsel %vm411, %v416, %v415
        %vm418 = vcmp.lt.s32.totalorder %v342, 0
        %v419 = vsub.s32 0, %v342
        %v420 = vsel %vm418, %v419, %v342
        %v421 = vshrl.u32 %v420, 4
        %v422 = vand.u32 %v420, 15
        %v423 = vsub.s32 0, %v422
        %v424 = vsel %vm418, %v423, %v422
        %vm425 = vcmp.lt.s32.totalorder %v343, 0
        %v426 = vsub.s32 0, %v343
        %v427 = vsel %vm425, %v426, %v343
        %v428 = vshrl.u32 %v427, 4
        %v429 = vand.u32 %v427, 15
        %v430 = vsub.s32 0, %v429
        %v431 = vsel %vm425, %v430, %v429
        %vm432 = vcmp.lt.s32.totalorder %v344, 0
        %v433 = vsub.s32 0, %v344
        %v434 = vsel %vm432, %v433, %v344
        %v435 = vshrl.u32 %v434, 4
        %v436 = vand.u32 %v434, 15
        %v437 = vsub.s32 0, %v436
        %v438 = vsel %vm432, %v437, %v436
        %vm439 = vcmp.lt.s32.totalorder %v345, 0
        %v440 = vsub.s32 0, %v345
        %v441 = vsel %vm439, %v440, %v345
        %v442 = vshrl.u32 %v441, 4
        %v443 = vand.u32 %v441, 15
        %v444 = vsub.s32 0, %v443
        %v445 = vsel %vm439, %v444, %v443
        %vm446 = vcmp.lt.s32.totalorder %v346, 0
        %v447 = vsub.s32 0, %v346
        %v448 = vsel %vm446, %v447, %v346
        %v449 = vshrl.u32 %v448, 4
        %v450 = vand.u32 %v448, 15
        %v451 = vsub.s32 0, %v450
        %v452 = vsel %vm446, %v451, %v450
        %vm453 = vcmp.lt.s32.totalorder %v347, 0
        %v454 = vsub.s32 0, %v347
        %v455 = vsel %vm453, %v454, %v347
        %v456 = vshrl.u32 %v455, 4
        %v457 = vand.u32 %v455, 15
        %v458 = vsub.s32 0, %v457
        %v459 = vsel %vm453, %v458, %v457
        %vm460 = vcmp.ne.s32.totalorder %v354, 0
        %vm461 = vcmp.ne.s32.totalorder %v361, 0
        %vm462 = vcmp.ne.s32.totalorder %v368, 0
        %vm463 = vcmp.ne.s32.totalorder %v375, 0
        %vm464 = vcmp.ne.s32.totalorder %v382, 0
        %vm465 = vcmp.ne.s32.totalorder %v389, 0
        %vm466 = vcmp.ne.s32.totalorder %v396, 0
        %vm467 = vcmp.ne.s32.totalorder %v403, 0
        %vm468 = vcmp.ne.s32.totalorder %v410, 0
        %vm469 = vcmp.ne.s32.totalorder %v417, 0
        %vm470 = vcmp.ne.s32.totalorder %v424, 0
        %vm471 = vcmp.ne.s32.totalorder %v431, 0
        %vm472 = vcmp.ne.s32.totalorder %v438, 0
        %vm473 = vcmp.ne.s32.totalorder %v445, 0
        %vm474 = vcmp.ne.s32.totalorder %v452, 0
        %vm475 = vcmp.ne.s32.totalorder %v459, 0
        %vm476 = vcmp.lt.s32.totalorder %v354, 0
        %vm477 = vcmp.lt.s32.totalorder %v361, 0
        %vm478 = vcmp.lt.s32.totalorder %v368, 0
        %vm479 = vcmp.lt.s32.totalorder %v375, 0
        %vm480 = vcmp.lt.s32.totalorder %v382, 0
        %vm481 = vcmp.lt.s32.totalorder %v389, 0
        %vm482 = vcmp.lt.s32.totalorder %v396, 0
        %vm483 = vcmp.lt.s32.totalorder %v403, 0
        %vm484 = vcmp.lt.s32.totalorder %v410, 0
        %vm485 = vcmp.lt.s32.totalorder %v417, 0
        %vm486 = vcmp.lt.s32.totalorder %v424, 0
        %vm487 = vcmp.lt.s32.totalorder %v431, 0
        %vm488 = vcmp.lt.s32.totalorder %v438, 0
        %vm489 = vcmp.lt.s32.totalorder %v445, 0
        %vm490 = vcmp.lt.s32.totalorder %v452, 0
        %vm491 = vcmp.lt.s32.totalorder %v459, 0
        %vm492 = vmand %vm476, %vm460
        %vm493 = vmand %vm477, %vm461
        %vm494 = vmand %vm478, %vm462
        %vm495 = vmand %vm479, %vm463
        %vm496 = vmand %vm480, %vm464
        %vm497 = vmand %vm481, %vm465
        %vm498 = vmand %vm482, %vm466
        %vm499 = vmand %vm483, %vm467
        %vm500 = vmand %vm484, %vm468
        %vm501 = vmand %vm485, %vm469
        %vm502 = vmand %vm486, %vm470
        %vm503 = vmand %vm487, %vm471
        %vm504 = vmand %vm488, %vm472
        %vm505 = vmand %vm489, %vm473
        %vm506 = vmand %vm490, %vm474
        %vm507 = vmand %vm491, %vm475
        %v508 = vadd.s32 %v354, 16
        %v509 = vadd.s32 %v361, 16
        %v510 = vadd.s32 %v368, 16
        %v511 = vadd.s32 %v375, 16
        %v512 = vadd.s32 %v382, 16
        %v513 = vadd.s32 %v389, 16
        %v514 = vadd.s32 %v396, 16
        %v515 = vadd.s32 %v403, 16
        %v516 = vadd.s32 %v410, 16
        %v517 = vadd.s32 %v417, 16
        %v518 = vadd.s32 %v424, 16
        %v519 = vadd.s32 %v431, 16
        %v520 = vadd.s32 %v438, 16
        %v521 = vadd.s32 %v445, 16
        %v522 = vadd.s32 %v452, 16
        %v523 = vadd.s32 %v459, 16
        %v524 = vsel %vm492, %v508, %v354
        %v525 = vsel %vm493, %v509, %v361
        %v526 = vsel %vm494, %v510, %v368
        %v527 = vsel %vm495, %v511, %v375
        %v528 = vsel %vm496, %v512, %v382
        %v529 = vsel %vm497, %v513, %v389
        %v530 = vsel %vm498, %v514, %v396
        %v531 = vsel %vm499, %v515, %v403
        %v532 = vsel %vm500, %v516, %v410
        %v533 = vsel %vm501, %v517, %v417
        %v534 = vsel %vm502, %v518, %v424
        %v535 = vsel %vm503, %v519, %v431
        %v536 = vsel %vm504, %v520, %v438
        %v537 = vsel %vm505, %v521, %v445
        %v538 = vsel %vm506, %v522, %v452
        %v539 = vsel %vm507, %v523, %v459
        %vm540 = vcmp.ne.s32.totalorder %v524, 0
        %vm541 = vcmp.ne.s32.totalorder %v525, 0
        %vm542 = vcmp.ne.s32.totalorder %v526, 0
        %vm543 = vcmp.ne.s32.totalorder %v527, 0
        %vm544 = vcmp.ne.s32.totalorder %v528, 0
        %vm545 = vcmp.ne.s32.totalorder %v529, 0
        %vm546 = vcmp.ne.s32.totalorder %v530, 0
        %vm547 = vcmp.ne.s32.totalorder %v531, 0
        %vm548 = vcmp.ne.s32.totalorder %v532, 0
        %vm549 = vcmp.ne.s32.totalorder %v533, 0
        %vm550 = vcmp.ne.s32.totalorder %v534, 0
        %vm551 = vcmp.ne.s32.totalorder %v535, 0
        %vm552 = vcmp.ne.s32.totalorder %v536, 0
        %vm553 = vcmp.ne.s32.totalorder %v537, 0
        %vm554 = vcmp.ne.s32.totalorder %v538, 0
        %vm555 = vcmp.ne.s32.totalorder %v539, 0
        %vm556 = vcmp.ne.s32.totalorder %v524, 15
        %vm557 = vcmp.ne.s32.totalorder %v525, 15
        %vm558 = vcmp.ne.s32.totalorder %v526, 15
        %vm559 = vcmp.ne.s32.totalorder %v527, 15
        %vm560 = vcmp.ne.s32.totalorder %v528, 15
        %vm561 = vcmp.ne.s32.totalorder %v529, 15
        %vm562 = vcmp.ne.s32.totalorder %v530, 15
        %vm563 = vcmp.ne.s32.totalorder %v531, 15
        %vm564 = vcmp.ne.s32.totalorder %v532, 15
        %vm565 = vcmp.ne.s32.totalorder %v533, 15
        %vm566 = vcmp.ne.s32.totalorder %v534, 15
        %vm567 = vcmp.ne.s32.totalorder %v535, 15
        %vm568 = vcmp.ne.s32.totalorder %v536, 15
        %vm569 = vcmp.ne.s32.totalorder %v537, 15
        %vm570 = vcmp.ne.s32.totalorder %v538, 15
        %vm571 = vcmp.ne.s32.totalorder %v539, 15
        %v572 = vld [vmem:[%s322] sm:$0xff]
        %v573 = vld [vmem:[%s322 + $0x8] sm:$0xff]
        %v574 = vld [vmem:[%s322 + $0x10] sm:$0xff]
        %v575 = vld [vmem:[%s322 + $0x18] sm:$0xff]
        %v576 = vld [vmem:[%s322 + $0x20] sm:$0xff]
        %v577 = vld [vmem:[%s322 + $0x28] sm:$0xff]
        %v578 = vld [vmem:[%s322 + $0x30] sm:$0xff]
        %v579 = vld [vmem:[%s322 + $0x38] sm:$0xff]
        %v580 = vld [vmem:[%s322 + $0x40] sm:$0xff]
        %v581 = vld [vmem:[%s322 + $0x48] sm:$0xff]
        %v582 = vld [vmem:[%s322 + $0x50] sm:$0xff]
        %v583 = vld [vmem:[%s322 + $0x58] sm:$0xff]
        %v584 = vld [vmem:[%s322 + $0x60] sm:$0xff]
        %v585 = vld [vmem:[%s322 + $0x68] sm:$0xff]
        %v586 = vld [vmem:[%s322 + $0x70] sm:$0xff]
        %v587 = vld [vmem:[%s322 + $0x78] sm:$0xff]
        %v588 = vld [vmem:[%s292] sm:$0xf]
        %v589 = vld [vmem:[%s292 + $0x4] sm:$0xf]
        %v590 = vld [vmem:[%s292 + $0x8] sm:$0xf]
        %v591 = vld [vmem:[%s292 + $0xc] sm:$0xf]
        %v592 = vld [vmem:[%s292 + $0x10] sm:$0xf]
        %v593 = vld [vmem:[%s292 + $0x14] sm:$0xf]
        %v594 = vld [vmem:[%s292 + $0x18] sm:$0xf]
        %v595 = vld [vmem:[%s292 + $0x1c] sm:$0xf]
        %v596 = vld [vmem:[%s2] sm:$0xff]
        %v597 = vld [vmem:[%s2 + $0x8] sm:$0xff]
        %v598 = vld [vmem:[%s2 + $0x10] sm:$0xff]
        %v599 = vld [vmem:[%s2 + $0x18] sm:$0xff]
        %v600 = vld [vmem:[%s2 + $0x20] sm:$0xff]
        %v601 = vld [vmem:[%s2 + $0x28] sm:$0xff]
        %v602 = vld [vmem:[%s2 + $0x30] sm:$0xff]
        %v603 = vld [vmem:[%s2 + $0x38] sm:$0xff]
        %v604 = vld [vmem:[%s2 + $0x40] sm:$0xff]
        %v605 = vld [vmem:[%s2 + $0x48] sm:$0xff]
        %v606 = vld [vmem:[%s2 + $0x50] sm:$0xff]
        %v607 = vld [vmem:[%s2 + $0x58] sm:$0xff]
        %v608 = vld [vmem:[%s2 + $0x60] sm:$0xff]
        %v609 = vld [vmem:[%s2 + $0x68] sm:$0xff]
        %v610 = vld [vmem:[%s2 + $0x70] sm:$0xff]
        %v611 = vld [vmem:[%s2 + $0x78] sm:$0xff]
        %v612 = vld [vmem:[%s2 + $0x80] sm:$0xff]
        %v613 = vld [vmem:[%s2 + $0x88] sm:$0xff]
        %v614 = vld [vmem:[%s2 + $0x90] sm:$0xff]
        %v615 = vld [vmem:[%s2 + $0x98] sm:$0xff]
        %v616 = vld [vmem:[%s2 + $0xa0] sm:$0xff]
        %v617 = vld [vmem:[%s2 + $0xa8] sm:$0xff]
        %v618 = vld [vmem:[%s2 + $0xb0] sm:$0xff]
        %v619 = vld [vmem:[%s2 + $0xb8] sm:$0xff]
        %v620 = vld [vmem:[%s2 + $0xc0] sm:$0xff]
        %v621 = vld [vmem:[%s2 + $0xc8] sm:$0xff]
        %v622 = vld [vmem:[%s2 + $0xd0] sm:$0xff]
        %v623 = vld [vmem:[%s2 + $0xd8] sm:$0xff]
        %v624 = vld [vmem:[%s2 + $0xe0] sm:$0xff]
        %v625 = vld [vmem:[%s2 + $0xe8] sm:$0xff]
        %v626 = vld [vmem:[%s2 + $0xf0] sm:$0xff]
        %v627 = vld [vmem:[%s2 + $0xf8] sm:$0xff]
        %v628 = vld [vmem:[%s2 + $0x100] sm:$0xff]
        %v629 = vld [vmem:[%s2 + $0x108] sm:$0xff]
        %v630 = vld [vmem:[%s2 + $0x110] sm:$0xff]
        %v631 = vld [vmem:[%s2 + $0x118] sm:$0xff]
        %v632 = vld [vmem:[%s2 + $0x120] sm:$0xff]
        %v633 = vld [vmem:[%s2 + $0x128] sm:$0xff]
        %v634 = vld [vmem:[%s2 + $0x130] sm:$0xff]
        %v635 = vld [vmem:[%s2 + $0x138] sm:$0xff]
        %v636 = vld [vmem:[%s2 + $0x140] sm:$0xff]
        %v637 = vld [vmem:[%s2 + $0x148] sm:$0xff]
        %v638 = vld [vmem:[%s2 + $0x150] sm:$0xff]
        %v639 = vld [vmem:[%s2 + $0x158] sm:$0xff]
        %v640 = vld [vmem:[%s2 + $0x160] sm:$0xff]
        %v641 = vld [vmem:[%s2 + $0x168] sm:$0xff]
        %v642 = vld [vmem:[%s2 + $0x170] sm:$0xff]
        %v643 = vld [vmem:[%s2 + $0x178] sm:$0xff]
        %v644 = vrot.slane %v572, 7
        %v645 = vrot.slane %v573, 7
        %v646 = vrot.slane %v574, 7
        %v647 = vrot.slane %v575, 7
        %v648 = vrot.slane %v576, 7
        %v649 = vrot.slane %v577, 7
        %v650 = vrot.slane %v578, 7
        %v651 = vrot.slane %v579, 7
        %v652 = vrot.slane %v580, 7
        %v653 = vrot.slane %v581, 7
        %v654 = vrot.slane %v582, 7
        %v655 = vrot.slane %v583, 7
        %v656 = vrot.slane %v584, 7
        %v657 = vrot.slane %v585, 7
        %v658 = vrot.slane %v586, 7
        %v659 = vrot.slane %v587, 7
        %vm660 = vcmp.lt.s32.totalorder %v332, 1
        %v661 = vsel %vm660, %v658, %v659
        %v662 = vsel %vm660, %v657, %v658
        %v663 = vsel %vm660, %v656, %v657
        %v664 = vsel %vm660, %v655, %v656
        %v665 = vsel %vm660, %v654, %v655
        %v666 = vsel %vm660, %v653, %v654
        %v667 = vsel %vm660, %v652, %v653
        %v668 = vsel %vm660, %v651, %v652
        %v669 = vsel %vm660, %v650, %v651
        %v670 = vsel %vm660, %v649, %v650
        %v671 = vsel %vm660, %v648, %v649
        %v672 = vsel %vm660, %v647, %v648
        %v673 = vsel %vm660, %v646, %v647
        %v674 = vsel %vm660, %v645, %v646
        %v675 = vsel %vm660, %v644, %v645
        %v676 = vsel %vm660, %v659, %v644
        %v677 = vsel %vm540, %v676, 0.0
        %v678 = vsel %vm541, %v675, 0.0
        %v679 = vsel %vm542, %v674, 0.0
        %v680 = vsel %vm543, %v673, 0.0
        %v681 = vsel %vm544, %v672, 0.0
        %v682 = vsel %vm545, %v671, 0.0
        %v683 = vsel %vm546, %v670, 0.0
        %v684 = vsel %vm547, %v669, 0.0
        %v685 = vsel %vm548, %v668, 0.0
        %v686 = vsel %vm549, %v667, 0.0
        %v687 = vsel %vm550, %v666, 0.0
        %v688 = vsel %vm551, %v665, 0.0
        %v689 = vsel %vm552, %v664, 0.0
        %v690 = vsel %vm553, %v663, 0.0
        %v691 = vsel %vm554, %v662, 0.0
        %v692 = vsel %vm555, %v661, 0.0
        %v693 = vrot.slane %v572, 1
        %v694 = vrot.slane %v573, 1
        %v695 = vrot.slane %v574, 1
        %v696 = vrot.slane %v575, 1
        %v697 = vrot.slane %v576, 1
        %v698 = vrot.slane %v577, 1
        %v699 = vrot.slane %v578, 1
        %v700 = vrot.slane %v579, 1
        %v701 = vrot.slane %v580, 1
        %v702 = vrot.slane %v581, 1
        %v703 = vrot.slane %v582, 1
        %v704 = vrot.slane %v583, 1
        %v705 = vrot.slane %v584, 1
        %v706 = vrot.slane %v585, 1
        %v707 = vrot.slane %v586, 1
        %v708 = vrot.slane %v587, 1
        %vm709 = vcmp.lt.s32.totalorder %v332, 7
        %v710 = vsel %vm709, %v707, %v708
        %v711 = vsel %vm709, %v706, %v707
        %v712 = vsel %vm709, %v705, %v706
        %v713 = vsel %vm709, %v704, %v705
        %v714 = vsel %vm709, %v703, %v704
        %v715 = vsel %vm709, %v702, %v703
        %v716 = vsel %vm709, %v701, %v702
        %v717 = vsel %vm709, %v700, %v701
        %v718 = vsel %vm709, %v699, %v700
        %v719 = vsel %vm709, %v698, %v699
        %v720 = vsel %vm709, %v697, %v698
        %v721 = vsel %vm709, %v696, %v697
        %v722 = vsel %vm709, %v695, %v696
        %v723 = vsel %vm709, %v694, %v695
        %v724 = vsel %vm709, %v693, %v694
        %v725 = vsel %vm709, %v708, %v693
        %v726 = vsel %vm556, %v724, 0.0
        %v727 = vsel %vm557, %v723, 0.0
        %v728 = vsel %vm558, %v722, 0.0
        %v729 = vsel %vm559, %v721, 0.0
        %v730 = vsel %vm560, %v720, 0.0
        %v731 = vsel %vm561, %v719, 0.0
        %v732 = vsel %vm562, %v718, 0.0
        %v733 = vsel %vm563, %v717, 0.0
        %v734 = vsel %vm564, %v716, 0.0
        %v735 = vsel %vm565, %v715, 0.0
        %v736 = vsel %vm566, %v714, 0.0
        %v737 = vsel %vm567, %v713, 0.0
        %v738 = vsel %vm568, %v712, 0.0
        %v739 = vsel %vm569, %v711, 0.0
        %v740 = vsel %vm570, %v710, 0.0
        %v741 = vsel %vm571, %v725, 0.0
        %742 = vmatprep.subr.mxu0 0.0
        %743 = vmatpush1.msra.mxu0 %v611
        %744 = vmatprep.subr.mxu0 0.0
        %745 = vmatpush1.msra.mxu0 %v610
        %746 = vmatprep.subr.mxu0 0.0
        %747 = vmatpush1.msra.mxu0 %v609
        %748 = vmatprep.subr.mxu0 0.0
        %749 = vmatpush1.msra.mxu0 %v608
        %750 = vmatprep.subr.mxu0 0.0
        %751 = vmatpush1.msra.mxu0 %v607
        %752 = vmatprep.subr.mxu0 0.0
        %753 = vmatpush1.msra.mxu0 %v606
        %754 = vmatprep.subr.mxu0 0.0
        %755 = vmatpush1.msra.mxu0 %v605
        %756 = vmatprep.subr.mxu0 0.0
        %757 = vmatpush1.msra.mxu0 %v604
        %758 = vmatprep.subr.mxu0 0.0
        %759 = vmatpush1.msra.mxu0 %v603
        %760 = vmatprep.subr.mxu0 0.0
        %761 = vmatpush1.msra.mxu0 %v602
        %762 = vmatprep.subr.mxu0 0.0
        %763 = vmatpush1.msra.mxu0 %v601
        %764 = vmatprep.subr.mxu0 0.0
        %765 = vmatpush1.msra.mxu0 %v600
        %766 = vmatprep.subr.mxu0 0.0
        %767 = vmatpush1.msra.mxu0 %v599
        %768 = vmatprep.subr.mxu0 0.0
        %769 = vmatpush1.msra.mxu0 %v598
        %770 = vmatprep.subr.mxu0 0.0
        %771 = vmatpush1.msra.mxu0 %v597
        %772 = vmatprep.subr.mxu0 0.0
        %773 = vmatpush1.msra.mxu0 %v596
        %774 = vmatprep.subr.mxu0 0.0
        %775 = vmatpush2.msra.mxu0 %v627
        %776 = vmatprep.subr.mxu0 0.0
        %777 = vmatpush2.msra.mxu0 %v626
        %778 = vmatprep.subr.mxu0 0.0
        %779 = vmatpush2.msra.mxu0 %v625
        %780 = vmatprep.subr.mxu0 0.0
        %781 = vmatpush2.msra.mxu0 %v624
        %782 = vmatprep.subr.mxu0 0.0
        %783 = vmatpush2.msra.mxu0 %v623
        %784 = vmatprep.subr.mxu0 0.0
        %785 = vmatpush2.msra.mxu0 %v622
        %786 = vmatprep.subr.mxu0 0.0
        %787 = vmatpush2.msra.mxu0 %v621
        %788 = vmatprep.subr.mxu0 0.0
        %789 = vmatpush2.msra.mxu0 %v620
        %790 = vmatprep.subr.mxu0 0.0
        %791 = vmatpush2.msra.mxu0 %v619
        %792 = vmatprep.subr.mxu0 0.0
        %793 = vmatpush2.msra.mxu0 %v618
        %794 = vmatprep.subr.mxu0 0.0
        %795 = vmatpush2.msra.mxu0 %v617
        %796 = vmatprep.subr.mxu0 0.0
        %797 = vmatpush2.msra.mxu0 %v616
        %798 = vmatprep.subr.mxu0 0.0
        %799 = vmatpush2.msra.mxu0 %v615
        %800 = vmatprep.subr.mxu0 0.0
        %801 = vmatpush2.msra.mxu0 %v614
        %802 = vmatprep.subr.mxu0 0.0
        %803 = vmatpush2.msra.mxu0 %v613
        %804 = vmatprep.subr.mxu0 0.0
        %805 = vmatpush2.msra.mxu0 %v612
        %806 = vmatprep.mubr.f32.mxu0 %v572
        %807 = vmatmul.mubr.f32.gmra.mxu0 %v677
        %v808 = vpop.f32.mrf.mxu0
        %v809 = vadd.f32 0.0, %v808
        %v810 = vpop.f32.mrf.mxu0
        %811 = vmatprep.mubr.f32.mxu0 %v573
        %812 = vmatmul.mubr.f32.gmra.mxu0 %v678
        %v813 = vpop.f32.mrf.mxu0
        %v814 = vadd.f32 0.0, %v813
        %v815 = vpop.f32.mrf.mxu0
        %816 = vmatprep.mubr.f32.mxu0 %v574
        %817 = vmatmul.mubr.f32.gmra.mxu0 %v679
        %v818 = vpop.f32.mrf.mxu0
        %v819 = vadd.f32 0.0, %v818
        %v820 = vpop.f32.mrf.mxu0
        %821 = vmatprep.mubr.f32.mxu0 %v575
        %822 = vmatmul.mubr.f32.gmra.mxu0 %v680
        %v823 = vpop.f32.mrf.mxu0
        %v824 = vadd.f32 0.0, %v823
        %v825 = vpop.f32.mrf.mxu0
        %826 = vmatprep.mubr.f32.mxu0 %v576
        %827 = vmatmul.mubr.f32.gmra.mxu0 %v681
        %v828 = vpop.f32.mrf.mxu0
        %v829 = vadd.f32 0.0, %v828
        %v830 = vpop.f32.mrf.mxu0
        %831 = vmatprep.mubr.f32.mxu0 %v577
        %832 = vmatmul.mubr.f32.gmra.mxu0 %v682
        %v833 = vpop.f32.mrf.mxu0
        %v834 = vadd.f32 0.0, %v833
        %v835 = vpop.f32.mrf.mxu0
        %836 = vmatprep.mubr.f32.mxu0 %v578
        %837 = vmatmul.mubr.f32.gmra.mxu0 %v683
        %v838 = vpop.f32.mrf.mxu0
        %v839 = vadd.f32 0.0, %v838
        %v840 = vpop.f32.mrf.mxu0
        %841 = vmatprep.mubr.f32.mxu0 %v579
        %842 = vmatmul.mubr.f32.gmra.mxu0 %v684
        %v843 = vpop.f32.mrf.mxu0
        %v844 = vadd.f32 0.0, %v843
        %v845 = vpop.f32.mrf.mxu0
        %846 = vmatprep.mubr.f32.mxu0 %v580
        %847 = vmatmul.mubr.f32.gmra.mxu0 %v685
        %v848 = vpop.f32.mrf.mxu0
        %v849 = vadd.f32 0.0, %v848
        %v850 = vpop.f32.mrf.mxu0
        %851 = vmatprep.mubr.f32.mxu0 %v581
        %852 = vmatmul.mubr.f32.gmra.mxu0 %v686
        %v853 = vpop.f32.mrf.mxu0
        %v854 = vadd.f32 0.0, %v853
        %v855 = vpop.f32.mrf.mxu0
        %856 = vmatprep.mubr.f32.mxu0 %v582
        %857 = vmatmul.mubr.f32.gmra.mxu0 %v687
        %v858 = vpop.f32.mrf.mxu0
        %v859 = vadd.f32 0.0, %v858
        %v860 = vpop.f32.mrf.mxu0
        %861 = vmatprep.mubr.f32.mxu0 %v583
        %862 = vmatmul.mubr.f32.gmra.mxu0 %v688
        %v863 = vpop.f32.mrf.mxu0
        %v864 = vadd.f32 0.0, %v863
        %v865 = vpop.f32.mrf.mxu0
        %866 = vmatprep.mubr.f32.mxu0 %v584
        %867 = vmatmul.mubr.f32.gmra.mxu0 %v689
        %v868 = vpop.f32.mrf.mxu0
        %v869 = vadd.f32 0.0, %v868
        %v870 = vpop.f32.mrf.mxu0
        %871 = vmatprep.mubr.f32.mxu0 %v585
        %872 = vmatmul.mubr.f32.gmra.mxu0 %v690
        %v873 = vpop.f32.mrf.mxu0
        %v874 = vadd.f32 0.0, %v873
        %v875 = vpop.f32.mrf.mxu0
        %876 = vmatprep.mubr.f32.mxu0 %v586
        %877 = vmatmul.mubr.f32.gmra.mxu0 %v691
        %v878 = vpop.f32.mrf.mxu0
        %v879 = vadd.f32 0.0, %v878
        %v880 = vpop.f32.mrf.mxu0
        %881 = vmatprep.mubr.f32.mxu0 %v587
        %882 = vmatmul.mubr.f32.gmra.mxu0 %v692
        %v883 = vpop.f32.mrf.mxu0
        %v884 = vadd.f32 0.0, %v883
        %v885 = vpop.f32.mrf.mxu0
        %886 = vdwg.mxu0
        %887 = vmatprep.subr.mxu0 0.0
        %888 = vmatpush1.msra.mxu0 %v643
        %889 = vmatprep.subr.mxu0 0.0
        %890 = vmatpush1.msra.mxu0 %v642
        %891 = vmatprep.subr.mxu0 0.0
        %892 = vmatpush1.msra.mxu0 %v641
        %893 = vmatprep.subr.mxu0 0.0
        %894 = vmatpush1.msra.mxu0 %v640
        %895 = vmatprep.subr.mxu0 0.0
        %896 = vmatpush1.msra.mxu0 %v639
        %897 = vmatprep.subr.mxu0 0.0
        %898 = vmatpush1.msra.mxu0 %v638
        %899 = vmatprep.subr.mxu0 0.0
        %900 = vmatpush1.msra.mxu0 %v637
        %901 = vmatprep.subr.mxu0 0.0
        %902 = vmatpush1.msra.mxu0 %v636
        %903 = vmatprep.subr.mxu0 0.0
        %904 = vmatpush1.msra.mxu0 %v635
        %905 = vmatprep.subr.mxu0 0.0
        %906 = vmatpush1.msra.mxu0 %v634
        %907 = vmatprep.subr.mxu0 0.0
        %908 = vmatpush1.msra.mxu0 %v633
        %909 = vmatprep.subr.mxu0 0.0
        %910 = vmatpush1.msra.mxu0 %v632
        %911 = vmatprep.subr.mxu0 0.0
        %912 = vmatpush1.msra.mxu0 %v631
        %913 = vmatprep.subr.mxu0 0.0
        %914 = vmatpush1.msra.mxu0 %v630
        %915 = vmatprep.subr.mxu0 0.0
        %916 = vmatpush1.msra.mxu0 %v629
        %917 = vmatprep.subr.mxu0 0.0
        %918 = vmatpush1.msra.mxu0 %v628
        %919 = vmatprep.subr.mxu0 0.0
        %920 = vmatpush2.msra.mxu0 0.0
        %921 = vmatprep.subr.mxu0 0.0
        %922 = vmatpush2.msra.mxu0 0.0
        %923 = vmatprep.subr.mxu0 0.0
        %924 = vmatpush2.msra.mxu0 0.0
        %925 = vmatprep.subr.mxu0 0.0
        %926 = vmatpush2.msra.mxu0 0.0
        %927 = vmatprep.subr.mxu0 0.0
        %928 = vmatpush2.msra.mxu0 0.0
        %929 = vmatprep.subr.mxu0 0.0
        %930 = vmatpush2.msra.mxu0 0.0
        %931 = vmatprep.subr.mxu0 0.0
        %932 = vmatpush2.msra.mxu0 0.0
        %933 = vmatprep.subr.mxu0 0.0
        %934 = vmatpush2.msra.mxu0 0.0
        %935 = vmatprep.subr.mxu0 0.0
        %936 = vmatpush2.msra.mxu0 0.0
        %937 = vmatprep.subr.mxu0 0.0
        %938 = vmatpush2.msra.mxu0 0.0
        %939 = vmatprep.subr.mxu0 0.0
        %940 = vmatpush2.msra.mxu0 0.0
        %941 = vmatprep.subr.mxu0 0.0
        %942 = vmatpush2.msra.mxu0 0.0
        %943 = vmatprep.subr.mxu0 0.0
        %944 = vmatpush2.msra.mxu0 0.0
        %945 = vmatprep.subr.mxu0 0.0
        %946 = vmatpush2.msra.mxu0 0.0
        %947 = vmatprep.subr.mxu0 0.0
        %948 = vmatpush2.msra.mxu0 0.0
        %949 = vmatprep.subr.mxu0 0.0
        %950 = vmatpush2.msra.mxu0 0.0
        %951 = vmatprep.mubr.f32.mxu0 0.0
        %952 = vmatmul.mubr.f32.gmra.mxu0 %v726
        %v953 = vpop.f32.mrf.mxu0
        %v954 = vadd.f32 %v809, %v953
        %v955 = vpop.f32.mrf.mxu0
        %956 = vmatprep.mubr.f32.mxu0 0.0
        %957 = vmatmul.mubr.f32.gmra.mxu0 %v727
        %v958 = vpop.f32.mrf.mxu0
        %v959 = vadd.f32 %v814, %v958
        %v960 = vpop.f32.mrf.mxu0
        %961 = vmatprep.mubr.f32.mxu0 0.0
        %962 = vmatmul.mubr.f32.gmra.mxu0 %v728
        %v963 = vpop.f32.mrf.mxu0
        %v964 = vadd.f32 %v819, %v963
        %v965 = vpop.f32.mrf.mxu0
        %966 = vmatprep.mubr.f32.mxu0 0.0
        %967 = vmatmul.mubr.f32.gmra.mxu0 %v729
        %v968 = vpop.f32.mrf.mxu0
        %v969 = vadd.f32 %v824, %v968
        %v970 = vpop.f32.mrf.mxu0
        %971 = vmatprep.mubr.f32.mxu0 0.0
        %972 = vmatmul.mubr.f32.gmra.mxu0 %v730
        %v973 = vpop.f32.mrf.mxu0
        %v974 = vadd.f32 %v829, %v973
        %v975 = vpop.f32.mrf.mxu0
        %976 = vmatprep.mubr.f32.mxu0 0.0
        %977 = vmatmul.mubr.f32.gmra.mxu0 %v731
        %v978 = vpop.f32.mrf.mxu0
        %v979 = vadd.f32 %v834, %v978
        %v980 = vpop.f32.mrf.mxu0
        %981 = vmatprep.mubr.f32.mxu0 0.0
        %982 = vmatmul.mubr.f32.gmra.mxu0 %v732
        %v983 = vpop.f32.mrf.mxu0
        %v984 = vadd.f32 %v839, %v983
        %v985 = vpop.f32.mrf.mxu0
        %986 = vmatprep.mubr.f32.mxu0 0.0
        %987 = vmatmul.mubr.f32.gmra.mxu0 %v733
        %v988 = vpop.f32.mrf.mxu0
        %v989 = vadd.f32 %v844, %v988
        %v990 = vpop.f32.mrf.mxu0
        %991 = vmatprep.mubr.f32.mxu0 0.0
        %992 = vmatmul.mubr.f32.gmra.mxu0 %v734
        %v993 = vpop.f32.mrf.mxu0
        %v994 = vadd.f32 %v849, %v993
        %v995 = vpop.f32.mrf.mxu0
        %996 = vmatprep.mubr.f32.mxu0 0.0
        %997 = vmatmul.mubr.f32.gmra.mxu0 %v735
        %v998 = vpop.f32.mrf.mxu0
        %v999 = vadd.f32 %v854, %v998
        %v1000 = vpop.f32.mrf.mxu0
        %1001 = vmatprep.mubr.f32.mxu0 0.0
        %1002 = vmatmul.mubr.f32.gmra.mxu0 %v736
        %v1003 = vpop.f32.mrf.mxu0
        %v1004 = vadd.f32 %v859, %v1003
        %v1005 = vpop.f32.mrf.mxu0
        %1006 = vmatprep.mubr.f32.mxu0 0.0
        %1007 = vmatmul.mubr.f32.gmra.mxu0 %v737
        %v1008 = vpop.f32.mrf.mxu0
        %v1009 = vadd.f32 %v864, %v1008
        %v1010 = vpop.f32.mrf.mxu0
        %1011 = vmatprep.mubr.f32.mxu0 0.0
        %1012 = vmatmul.mubr.f32.gmra.mxu0 %v738
        %v1013 = vpop.f32.mrf.mxu0
        %v1014 = vadd.f32 %v869, %v1013
        %v1015 = vpop.f32.mrf.mxu0
        %1016 = vmatprep.mubr.f32.mxu0 0.0
        %1017 = vmatmul.mubr.f32.gmra.mxu0 %v739
        %v1018 = vpop.f32.mrf.mxu0
        %v1019 = vadd.f32 %v874, %v1018
        %v1020 = vpop.f32.mrf.mxu0
        %1021 = vmatprep.mubr.f32.mxu0 0.0
        %1022 = vmatmul.mubr.f32.gmra.mxu0 %v740
        %v1023 = vpop.f32.mrf.mxu0
        %v1024 = vadd.f32 %v879, %v1023
        %v1025 = vpop.f32.mrf.mxu0
        %1026 = vmatprep.mubr.f32.mxu0 0.0
        %1027 = vmatmul.mubr.f32.gmra.mxu0 %v741
        %v1028 = vpop.f32.mrf.mxu0
        %v1029 = vadd.f32 %v884, %v1028
        %v1030 = vpop.f32.mrf.mxu0
        %1031 = vdwg.mxu0
        %v1032 = vlaneseq
        %v1033 = vshrl.u32 %v1032, 7
        %v1034 = vsub.s32 0, %v1033
        %v1035 = vrot.slane %v588, %v1034
        %v1036 = vlaneseq
        %v1037 = vshrl.u32 %v1036, 7
        %v1038 = vsub.s32 0, %v1037
        %v1039 = vrot.slane %v589, %v1038
        %v1040 = vlaneseq
        %v1041 = vshrl.u32 %v1040, 7
        %v1042 = vsub.s32 0, %v1041
        %v1043 = vrot.slane %v590, %v1042
        %v1044 = vlaneseq
        %v1045 = vshrl.u32 %v1044, 7
        %v1046 = vsub.s32 0, %v1045
        %v1047 = vrot.slane %v591, %v1046
        %v1048 = vlaneseq
        %v1049 = vshrl.u32 %v1048, 7
        %v1050 = vsub.s32 0, %v1049
        %v1051 = vrot.slane %v592, %v1050
        %v1052 = vlaneseq
        %v1053 = vshrl.u32 %v1052, 7
        %v1054 = vsub.s32 0, %v1053
        %v1055 = vrot.slane %v593, %v1054
        %v1056 = vlaneseq
        %v1057 = vshrl.u32 %v1056, 7
        %v1058 = vsub.s32 0, %v1057
        %v1059 = vrot.slane %v594, %v1058
        %v1060 = vlaneseq
        %v1061 = vshrl.u32 %v1060, 7
        %v1062 = vsub.s32 0, %v1061
        %v1063 = vrot.slane %v595, %v1062
        %v1064 = vmul.f32 %v954, %v1035
        %v1065 = vmul.f32 %v959, %v1035
        %v1066 = vmul.f32 %v964, %v1039
        %v1067 = vmul.f32 %v969, %v1039
        %v1068 = vmul.f32 %v974, %v1043
        %v1069 = vmul.f32 %v979, %v1043
        %v1070 = vmul.f32 %v984, %v1047
        %v1071 = vmul.f32 %v989, %v1047
        %v1072 = vmul.f32 %v994, %v1051
        %v1073 = vmul.f32 %v999, %v1051
        %v1074 = vmul.f32 %v1004, %v1055
        %v1075 = vmul.f32 %v1009, %v1055
        %v1076 = vmul.f32 %v1014, %v1059
        %v1077 = vmul.f32 %v1019, %v1059
        %v1078 = vmul.f32 %v1024, %v1063
        %v1079 = vmul.f32 %v1029, %v1063
        %v1080 = vlaneseq
        %v1081 = vshrl.u32 %v1080, 7
        %v1082 = vsub.s32 1, %v1081
        %v1083 = vrot.slane %v588, %v1082
        %v1084 = vlaneseq
        %v1085 = vshrl.u32 %v1084, 7
        %v1086 = vsub.s32 1, %v1085
        %v1087 = vrot.slane %v589, %v1086
        %v1088 = vlaneseq
        %v1089 = vshrl.u32 %v1088, 7
        %v1090 = vsub.s32 1, %v1089
        %v1091 = vrot.slane %v590, %v1090
        %v1092 = vlaneseq
        %v1093 = vshrl.u32 %v1092, 7
        %v1094 = vsub.s32 1, %v1093
        %v1095 = vrot.slane %v591, %v1094
        %v1096 = vlaneseq
        %v1097 = vshrl.u32 %v1096, 7
        %v1098 = vsub.s32 1, %v1097
        %v1099 = vrot.slane %v592, %v1098
        %v1100 = vlaneseq
        %v1101 = vshrl.u32 %v1100, 7
        %v1102 = vsub.s32 1, %v1101
        %v1103 = vrot.slane %v593, %v1102
        %v1104 = vlaneseq
        %v1105 = vshrl.u32 %v1104, 7
        %v1106 = vsub.s32 1, %v1105
        %v1107 = vrot.slane %v594, %v1106
        %v1108 = vlaneseq
        %v1109 = vshrl.u32 %v1108, 7
        %v1110 = vsub.s32 1, %v1109
        %v1111 = vrot.slane %v595, %v1110
        %v1112 = vadd.f32 %v1064, %v1083
        %v1113 = vadd.f32 %v1065, %v1083
        %v1114 = vadd.f32 %v1066, %v1087
        %v1115 = vadd.f32 %v1067, %v1087
        %v1116 = vadd.f32 %v1068, %v1091
        %v1117 = vadd.f32 %v1069, %v1091
        %v1118 = vadd.f32 %v1070, %v1095
        %v1119 = vadd.f32 %v1071, %v1095
        %v1120 = vadd.f32 %v1072, %v1099
        %v1121 = vadd.f32 %v1073, %v1099
        %v1122 = vadd.f32 %v1074, %v1103
        %v1123 = vadd.f32 %v1075, %v1103
        %v1124 = vadd.f32 %v1076, %v1107
        %v1125 = vadd.f32 %v1077, %v1107
        %v1126 = vadd.f32 %v1078, %v1111
        %v1127 = vadd.f32 %v1079, %v1111
        %v1128 = vmax.f32 %v1112, 0.0
        %v1129 = vmax.f32 %v1113, 0.0
        %v1130 = vmax.f32 %v1114, 0.0
        %v1131 = vmax.f32 %v1115, 0.0
        %v1132 = vmax.f32 %v1116, 0.0
        %v1133 = vmax.f32 %v1117, 0.0
        %v1134 = vmax.f32 %v1118, 0.0
        %v1135 = vmax.f32 %v1119, 0.0
        %v1136 = vmax.f32 %v1120, 0.0
        %v1137 = vmax.f32 %v1121, 0.0
        %v1138 = vmax.f32 %v1122, 0.0
        %v1139 = vmax.f32 %v1123, 0.0
        %v1140 = vmax.f32 %v1124, 0.0
        %v1141 = vmax.f32 %v1125, 0.0
        %v1142 = vmax.f32 %v1126, 0.0
        %v1143 = vmax.f32 %v1127, 0.0
        %s1144 = scalar_lea.vmem %s2, 384
        %v1145 = vld [vmem:[%s1144] sm:$0xff]
        %v1146 = vld [vmem:[%s1144 + $0x8] sm:$0xff]
        %v1147 = vld [vmem:[%s1144 + $0x10] sm:$0xff]
        %v1148 = vld [vmem:[%s1144 + $0x18] sm:$0xff]
        %v1149 = vld [vmem:[%s1144 + $0x20] sm:$0xff]
        %v1150 = vld [vmem:[%s1144 + $0x28] sm:$0xff]
        %v1151 = vld [vmem:[%s1144 + $0x30] sm:$0xff]
        %v1152 = vld [vmem:[%s1144 + $0x38] sm:$0xff]
        %v1153 = vld [vmem:[%s1144 + $0x40] sm:$0xff]
        %v1154 = vld [vmem:[%s1144 + $0x48] sm:$0xff]
        %v1155 = vld [vmem:[%s1144 + $0x50] sm:$0xff]
        %v1156 = vld [vmem:[%s1144 + $0x58] sm:$0xff]
        %v1157 = vld [vmem:[%s1144 + $0x60] sm:$0xff]
        %v1158 = vld [vmem:[%s1144 + $0x68] sm:$0xff]
        %v1159 = vld [vmem:[%s1144 + $0x70] sm:$0xff]
        %v1160 = vld [vmem:[%s1144 + $0x78] sm:$0xff]
        %v1161 = vld [vmem:[%s1144 + $0x80] sm:$0xff]
        %v1162 = vld [vmem:[%s1144 + $0x88] sm:$0xff]
        %v1163 = vld [vmem:[%s1144 + $0x90] sm:$0xff]
        %v1164 = vld [vmem:[%s1144 + $0x98] sm:$0xff]
        %v1165 = vld [vmem:[%s1144 + $0xa0] sm:$0xff]
        %v1166 = vld [vmem:[%s1144 + $0xa8] sm:$0xff]
        %v1167 = vld [vmem:[%s1144 + $0xb0] sm:$0xff]
        %v1168 = vld [vmem:[%s1144 + $0xb8] sm:$0xff]
        %v1169 = vld [vmem:[%s1144 + $0xc0] sm:$0xff]
        %v1170 = vld [vmem:[%s1144 + $0xc8] sm:$0xff]
        %v1171 = vld [vmem:[%s1144 + $0xd0] sm:$0xff]
        %v1172 = vld [vmem:[%s1144 + $0xd8] sm:$0xff]
        %v1173 = vld [vmem:[%s1144 + $0xe0] sm:$0xff]
        %v1174 = vld [vmem:[%s1144 + $0xe8] sm:$0xff]
        %v1175 = vld [vmem:[%s1144 + $0xf0] sm:$0xff]
        %v1176 = vld [vmem:[%s1144 + $0xf8] sm:$0xff]
        %v1177 = vld [vmem:[%s1144 + $0x100] sm:$0xff]
        %v1178 = vld [vmem:[%s1144 + $0x108] sm:$0xff]
        %v1179 = vld [vmem:[%s1144 + $0x110] sm:$0xff]
        %v1180 = vld [vmem:[%s1144 + $0x118] sm:$0xff]
        %v1181 = vld [vmem:[%s1144 + $0x120] sm:$0xff]
        %v1182 = vld [vmem:[%s1144 + $0x128] sm:$0xff]
        %v1183 = vld [vmem:[%s1144 + $0x130] sm:$0xff]
        %v1184 = vld [vmem:[%s1144 + $0x138] sm:$0xff]
        %v1185 = vld [vmem:[%s1144 + $0x140] sm:$0xff]
        %v1186 = vld [vmem:[%s1144 + $0x148] sm:$0xff]
        %v1187 = vld [vmem:[%s1144 + $0x150] sm:$0xff]
        %v1188 = vld [vmem:[%s1144 + $0x158] sm:$0xff]
        %v1189 = vld [vmem:[%s1144 + $0x160] sm:$0xff]
        %v1190 = vld [vmem:[%s1144 + $0x168] sm:$0xff]
        %v1191 = vld [vmem:[%s1144 + $0x170] sm:$0xff]
        %v1192 = vld [vmem:[%s1144 + $0x178] sm:$0xff]
        %v1193 = vrot.slane %v1128, 7
        %v1194 = vrot.slane %v1129, 7
        %v1195 = vrot.slane %v1130, 7
        %v1196 = vrot.slane %v1131, 7
        %v1197 = vrot.slane %v1132, 7
        %v1198 = vrot.slane %v1133, 7
        %v1199 = vrot.slane %v1134, 7
        %v1200 = vrot.slane %v1135, 7
        %v1201 = vrot.slane %v1136, 7
        %v1202 = vrot.slane %v1137, 7
        %v1203 = vrot.slane %v1138, 7
        %v1204 = vrot.slane %v1139, 7
        %v1205 = vrot.slane %v1140, 7
        %v1206 = vrot.slane %v1141, 7
        %v1207 = vrot.slane %v1142, 7
        %v1208 = vrot.slane %v1143, 7
        %v1209 = vsel %vm660, %v1207, %v1208
        %v1210 = vsel %vm660, %v1206, %v1207
        %v1211 = vsel %vm660, %v1205, %v1206
        %v1212 = vsel %vm660, %v1204, %v1205
        %v1213 = vsel %vm660, %v1203, %v1204
        %v1214 = vsel %vm660, %v1202, %v1203
        %v1215 = vsel %vm660, %v1201, %v1202
        %v1216 = vsel %vm660, %v1200, %v1201
        %v1217 = vsel %vm660, %v1199, %v1200
        %v1218 = vsel %vm660, %v1198, %v1199
        %v1219 = vsel %vm660, %v1197, %v1198
        %v1220 = vsel %vm660, %v1196, %v1197
        %v1221 = vsel %vm660, %v1195, %v1196
        %v1222 = vsel %vm660, %v1194, %v1195
        %v1223 = vsel %vm660, %v1193, %v1194
        %v1224 = vsel %vm660, %v1208, %v1193
        %v1225 = vsel %vm540, %v1224, 0.0
        %v1226 = vsel %vm541, %v1223, 0.0
        %v1227 = vsel %vm542, %v1222, 0.0
        %v1228 = vsel %vm543, %v1221, 0.0
        %v1229 = vsel %vm544, %v1220, 0.0
        %v1230 = vsel %vm545, %v1219, 0.0
        %v1231 = vsel %vm546, %v1218, 0.0
        %v1232 = vsel %vm547, %v1217, 0.0
        %v1233 = vsel %vm548, %v1216, 0.0
        %v1234 = vsel %vm549, %v1215, 0.0
        %v1235 = vsel %vm550, %v1214, 0.0
        %v1236 = vsel %vm551, %v1213, 0.0
        %v1237 = vsel %vm552, %v1212, 0.0
        %v1238 = vsel %vm553, %v1211, 0.0
        %v1239 = vsel %vm554, %v1210, 0.0
        %v1240 = vsel %vm555, %v1209, 0.0
        %v1241 = vrot.slane %v1128, 1
        %v1242 = vrot.slane %v1129, 1
        %v1243 = vrot.slane %v1130, 1
        %v1244 = vrot.slane %v1131, 1
        %v1245 = vrot.slane %v1132, 1
        %v1246 = vrot.slane %v1133, 1
        %v1247 = vrot.slane %v1134, 1
        %v1248 = vrot.slane %v1135, 1
        %v1249 = vrot.slane %v1136, 1
        %v1250 = vrot.slane %v1137, 1
        %v1251 = vrot.slane %v1138, 1
        %v1252 = vrot.slane %v1139, 1
        %v1253 = vrot.slane %v1140, 1
        %v1254 = vrot.slane %v1141, 1
        %v1255 = vrot.slane %v1142, 1
        %v1256 = vrot.slane %v1143, 1
        %v1257 = vsel %vm709, %v1255, %v1256
        %v1258 = vsel %vm709, %v1254, %v1255
        %v1259 = vsel %vm709, %v1253, %v1254
        %v1260 = vsel %vm709, %v1252, %v1253
        %v1261 = vsel %vm709, %v1251, %v1252
        %v1262 = vsel %vm709, %v1250, %v1251
        %v1263 = vsel %vm709, %v1249, %v1250
        %v1264 = vsel %vm709, %v1248, %v1249
        %v1265 = vsel %vm709, %v1247, %v1248
        %v1266 = vsel %vm709, %v1246, %v1247
        %v1267 = vsel %vm709, %v1245, %v1246
        %v1268 = vsel %vm709, %v1244, %v1245
        %v1269 = vsel %vm709, %v1243, %v1244
        %v1270 = vsel %vm709, %v1242, %v1243
        %v1271 = vsel %vm709, %v1241, %v1242
        %v1272 = vsel %vm709, %v1256, %v1241
        %v1273 = vsel %vm556, %v1271, 0.0
        %v1274 = vsel %vm557, %v1270, 0.0
        %v1275 = vsel %vm558, %v1269, 0.0
        %v1276 = vsel %vm559, %v1268, 0.0
        %v1277 = vsel %vm560, %v1267, 0.0
        %v1278 = vsel %vm561, %v1266, 0.0
        %v1279 = vsel %vm562, %v1265, 0.0
        %v1280 = vsel %vm563, %v1264, 0.0
        %v1281 = vsel %vm564, %v1263, 0.0
        %v1282 = vsel %vm565, %v1262, 0.0
        %v1283 = vsel %vm566, %v1261, 0.0
        %v1284 = vsel %vm567, %v1260, 0.0
        %v1285 = vsel %vm568, %v1259, 0.0
        %v1286 = vsel %vm569, %v1258, 0.0
        %v1287 = vsel %vm570, %v1257, 0.0
        %v1288 = vsel %vm571, %v1272, 0.0
        %1289 = vmatprep.subr.mxu0 0.0
        %1290 = vmatpush1.msra.mxu0 %v1160
        %1291 = vmatprep.subr.mxu0 0.0
        %1292 = vmatpush1.msra.mxu0 %v1159
        %1293 = vmatprep.subr.mxu0 0.0
        %1294 = vmatpush1.msra.mxu0 %v1158
        %1295 = vmatprep.subr.mxu0 0.0
        %1296 = vmatpush1.msra.mxu0 %v1157
        %1297 = vmatprep.subr.mxu0 0.0
        %1298 = vmatpush1.msra.mxu0 %v1156
        %1299 = vmatprep.subr.mxu0 0.0
        %1300 = vmatpush1.msra.mxu0 %v1155
        %1301 = vmatprep.subr.mxu0 0.0
        %1302 = vmatpush1.msra.mxu0 %v1154
        %1303 = vmatprep.subr.mxu0 0.0
        %1304 = vmatpush1.msra.mxu0 %v1153
        %1305 = vmatprep.subr.mxu0 0.0
        %1306 = vmatpush1.msra.mxu0 %v1152
        %1307 = vmatprep.subr.mxu0 0.0
        %1308 = vmatpush1.msra.mxu0 %v1151
        %1309 = vmatprep.subr.mxu0 0.0
        %1310 = vmatpush1.msra.mxu0 %v1150
        %1311 = vmatprep.subr.mxu0 0.0
        %1312 = vmatpush1.msra.mxu0 %v1149
        %1313 = vmatprep.subr.mxu0 0.0
        %1314 = vmatpush1.msra.mxu0 %v1148
        %1315 = vmatprep.subr.mxu0 0.0
        %1316 = vmatpush1.msra.mxu0 %v1147
        %1317 = vmatprep.subr.mxu0 0.0
        %1318 = vmatpush1.msra.mxu0 %v1146
        %1319 = vmatprep.subr.mxu0 0.0
        %1320 = vmatpush1.msra.mxu0 %v1145
        %1321 = vmatprep.subr.mxu0 0.0
        %1322 = vmatpush2.msra.mxu0 %v1176
        %1323 = vmatprep.subr.mxu0 0.0
        %1324 = vmatpush2.msra.mxu0 %v1175
        %1325 = vmatprep.subr.mxu0 0.0
        %1326 = vmatpush2.msra.mxu0 %v1174
        %1327 = vmatprep.subr.mxu0 0.0
        %1328 = vmatpush2.msra.mxu0 %v1173
        %1329 = vmatprep.subr.mxu0 0.0
        %1330 = vmatpush2.msra.mxu0 %v1172
        %1331 = vmatprep.subr.mxu0 0.0
        %1332 = vmatpush2.msra.mxu0 %v1171
        %1333 = vmatprep.subr.mxu0 0.0
        %1334 = vmatpush2.msra.mxu0 %v1170
        %1335 = vmatprep.subr.mxu0 0.0
        %1336 = vmatpush2.msra.mxu0 %v1169
        %1337 = vmatprep.subr.mxu0 0.0
        %1338 = vmatpush2.msra.mxu0 %v1168
        %1339 = vmatprep.subr.mxu0 0.0
        %1340 = vmatpush2.msra.mxu0 %v1167
        %1341 = vmatprep.subr.mxu0 0.0
        %1342 = vmatpush2.msra.mxu0 %v1166
        %1343 = vmatprep.subr.mxu0 0.0
        %1344 = vmatpush2.msra.mxu0 %v1165
        %1345 = vmatprep.subr.mxu0 0.0
        %1346 = vmatpush2.msra.mxu0 %v1164
        %1347 = vmatprep.subr.mxu0 0.0
        %1348 = vmatpush2.msra.mxu0 %v1163
        %1349 = vmatprep.subr.mxu0 0.0
        %1350 = vmatpush2.msra.mxu0 %v1162
        %1351 = vmatprep.subr.mxu0 0.0
        %1352 = vmatpush2.msra.mxu0 %v1161
        %1353 = vmatprep.mubr.f32.mxu0 %v1128
        %1354 = vmatmul.mubr.f32.gmra.mxu0 %v1225
        %v1355 = vpop.f32.mrf.mxu0
        %v1356 = vadd.f32 0.0, %v1355
        %v1357 = vpop.f32.mrf.mxu0
        %1358 = vmatprep.mubr.f32.mxu0 %v1129
        %1359 = vmatmul.mubr.f32.gmra.mxu0 %v1226
        %v1360 = vpop.f32.mrf.mxu0
        %v1361 = vadd.f32 0.0, %v1360
        %v1362 = vpop.f32.mrf.mxu0
        %1363 = vmatprep.mubr.f32.mxu0 %v1130
        %1364 = vmatmul.mubr.f32.gmra.mxu0 %v1227
        %v1365 = vpop.f32.mrf.mxu0
        %v1366 = vadd.f32 0.0, %v1365
        %v1367 = vpop.f32.mrf.mxu0
        %1368 = vmatprep.mubr.f32.mxu0 %v1131
        %1369 = vmatmul.mubr.f32.gmra.mxu0 %v1228
        %v1370 = vpop.f32.mrf.mxu0
        %v1371 = vadd.f32 0.0, %v1370
        %v1372 = vpop.f32.mrf.mxu0
        %1373 = vmatprep.mubr.f32.mxu0 %v1132
        %1374 = vmatmul.mubr.f32.gmra.mxu0 %v1229
        %v1375 = vpop.f32.mrf.mxu0
        %v1376 = vadd.f32 0.0, %v1375
        %v1377 = vpop.f32.mrf.mxu0
        %1378 = vmatprep.mubr.f32.mxu0 %v1133
        %1379 = vmatmul.mubr.f32.gmra.mxu0 %v1230
        %v1380 = vpop.f32.mrf.mxu0
        %v1381 = vadd.f32 0.0, %v1380
        %v1382 = vpop.f32.mrf.mxu0
        %1383 = vmatprep.mubr.f32.mxu0 %v1134
        %1384 = vmatmul.mubr.f32.gmra.mxu0 %v1231
        %v1385 = vpop.f32.mrf.mxu0
        %v1386 = vadd.f32 0.0, %v1385
        %v1387 = vpop.f32.mrf.mxu0
        %1388 = vmatprep.mubr.f32.mxu0 %v1135
        %1389 = vmatmul.mubr.f32.gmra.mxu0 %v1232
        %v1390 = vpop.f32.mrf.mxu0
        %v1391 = vadd.f32 0.0, %v1390
        %v1392 = vpop.f32.mrf.mxu0
        %1393 = vmatprep.mubr.f32.mxu0 %v1136
        %1394 = vmatmul.mubr.f32.gmra.mxu0 %v1233
        %v1395 = vpop.f32.mrf.mxu0
        %v1396 = vadd.f32 0.0, %v1395
        %v1397 = vpop.f32.mrf.mxu0
        %1398 = vmatprep.mubr.f32.mxu0 %v1137
        %1399 = vmatmul.mubr.f32.gmra.mxu0 %v1234
        %v1400 = vpop.f32.mrf.mxu0
        %v1401 = vadd.f32 0.0, %v1400
        %v1402 = vpop.f32.mrf.mxu0
        %1403 = vmatprep.mubr.f32.mxu0 %v1138
        %1404 = vmatmul.mubr.f32.gmra.mxu0 %v1235
        %v1405 = vpop.f32.mrf.mxu0
        %v1406 = vadd.f32 0.0, %v1405
        %v1407 = vpop.f32.mrf.mxu0
        %1408 = vmatprep.mubr.f32.mxu0 %v1139
        %1409 = vmatmul.mubr.f32.gmra.mxu0 %v1236
        %v1410 = vpop.f32.mrf.mxu0
        %v1411 = vadd.f32 0.0, %v1410
        %v1412 = vpop.f32.mrf.mxu0
        %1413 = vmatprep.mubr.f32.mxu0 %v1140
        %1414 = vmatmul.mubr.f32.gmra.mxu0 %v1237
        %v1415 = vpop.f32.mrf.mxu0
        %v1416 = vadd.f32 0.0, %v1415
        %v1417 = vpop.f32.mrf.mxu0
        %1418 = vmatprep.mubr.f32.mxu0 %v1141
        %1419 = vmatmul.mubr.f32.gmra.mxu0 %v1238
        %v1420 = vpop.f32.mrf.mxu0
        %v1421 = vadd.f32 0.0, %v1420
        %v1422 = vpop.f32.mrf.mxu0
        %1423 = vmatprep.mubr.f32.mxu0 %v1142
        %1424 = vmatmul.mubr.f32.gmra.mxu0 %v1239
        %v1425 = vpop.f32.mrf.mxu0
        %v1426 = vadd.f32 0.0, %v1425
        %v1427 = vpop.f32.mrf.mxu0
        %1428 = vmatprep.mubr.f32.mxu0 %v1143
        %1429 = vmatmul.mubr.f32.gmra.mxu0 %v1240
        %v1430 = vpop.f32.mrf.mxu0
        %v1431 = vadd.f32 0.0, %v1430
        %v1432 = vpop.f32.mrf.mxu0
        %1433 = vdwg.mxu0
        %1434 = vmatprep.subr.mxu0 0.0
        %1435 = vmatpush1.msra.mxu0 %v1192
        %1436 = vmatprep.subr.mxu0 0.0
        %1437 = vmatpush1.msra.mxu0 %v1191
        %1438 = vmatprep.subr.mxu0 0.0
        %1439 = vmatpush1.msra.mxu0 %v1190
        %1440 = vmatprep.subr.mxu0 0.0
        %1441 = vmatpush1.msra.mxu0 %v1189
        %1442 = vmatprep.subr.mxu0 0.0
        %1443 = vmatpush1.msra.mxu0 %v1188
        %1444 = vmatprep.subr.mxu0 0.0
        %1445 = vmatpush1.msra.mxu0 %v1187
        %1446 = vmatprep.subr.mxu0 0.0
        %1447 = vmatpush1.msra.mxu0 %v1186
        %1448 = vmatprep.subr.mxu0 0.0
        %1449 = vmatpush1.msra.mxu0 %v1185
        %1450 = vmatprep.subr.mxu0 0.0
        %1451 = vmatpush1.msra.mxu0 %v1184
        %1452 = vmatprep.subr.mxu0 0.0
        %1453 = vmatpush1.msra.mxu0 %v1183
        %1454 = vmatprep.subr.mxu0 0.0
        %1455 = vmatpush1.msra.mxu0 %v1182
        %1456 = vmatprep.subr.mxu0 0.0
        %1457 = vmatpush1.msra.mxu0 %v1181
        %1458 = vmatprep.subr.mxu0 0.0
        %1459 = vmatpush1.msra.mxu0 %v1180
        %1460 = vmatprep.subr.mxu0 0.0
        %1461 = vmatpush1.msra.mxu0 %v1179
        %1462 = vmatprep.subr.mxu0 0.0
        %1463 = vmatpush1.msra.mxu0 %v1178
        %1464 = vmatprep.subr.mxu0 0.0
        %1465 = vmatpush1.msra.mxu0 %v1177
        %1466 = vmatprep.subr.mxu0 0.0
        %1467 = vmatpush2.msra.mxu0 0.0
        %1468 = vmatprep.subr.mxu0 0.0
        %1469 = vmatpush2.msra.mxu0 0.0
        %1470 = vmatprep.subr.mxu0 0.0
        %1471 = vmatpush2.msra.mxu0 0.0
        %1472 = vmatprep.subr.mxu0 0.0
        %1473 = vmatpush2.msra.mxu0 0.0
        %1474 = vmatprep.subr.mxu0 0.0
        %1475 = vmatpush2.msra.mxu0 0.0
        %1476 = vmatprep.subr.mxu0 0.0
        %1477 = vmatpush2.msra.mxu0 0.0
        %1478 = vmatprep.subr.mxu0 0.0
        %1479 = vmatpush2.msra.mxu0 0.0
        %1480 = vmatprep.subr.mxu0 0.0
        %1481 = vmatpush2.msra.mxu0 0.0
        %1482 = vmatprep.subr.mxu0 0.0
        %1483 = vmatpush2.msra.mxu0 0.0
        %1484 = vmatprep.subr.mxu0 0.0
        %1485 = vmatpush2.msra.mxu0 0.0
        %1486 = vmatprep.subr.mxu0 0.0
        %1487 = vmatpush2.msra.mxu0 0.0
        %1488 = vmatprep.subr.mxu0 0.0
        %1489 = vmatpush2.msra.mxu0 0.0
        %1490 = vmatprep.subr.mxu0 0.0
        %1491 = vmatpush2.msra.mxu0 0.0
        %1492 = vmatprep.subr.mxu0 0.0
        %1493 = vmatpush2.msra.mxu0 0.0
        %1494 = vmatprep.subr.mxu0 0.0
        %1495 = vmatpush2.msra.mxu0 0.0
        %1496 = vmatprep.subr.mxu0 0.0
        %1497 = vmatpush2.msra.mxu0 0.0
        %1498 = vmatprep.mubr.f32.mxu0 0.0
        %1499 = vmatmul.mubr.f32.gmra.mxu0 %v1273
        %v1500 = vpop.f32.mrf.mxu0
        %v1501 = vadd.f32 %v1356, %v1500
        %v1502 = vpop.f32.mrf.mxu0
        %1503 = vmatprep.mubr.f32.mxu0 0.0
        %1504 = vmatmul.mubr.f32.gmra.mxu0 %v1274
        %v1505 = vpop.f32.mrf.mxu0
        %v1506 = vadd.f32 %v1361, %v1505
        %v1507 = vpop.f32.mrf.mxu0
        %1508 = vmatprep.mubr.f32.mxu0 0.0
        %1509 = vmatmul.mubr.f32.gmra.mxu0 %v1275
        %v1510 = vpop.f32.mrf.mxu0
        %v1511 = vadd.f32 %v1366, %v1510
        %v1512 = vpop.f32.mrf.mxu0
        %1513 = vmatprep.mubr.f32.mxu0 0.0
        %1514 = vmatmul.mubr.f32.gmra.mxu0 %v1276
        %v1515 = vpop.f32.mrf.mxu0
        %v1516 = vadd.f32 %v1371, %v1515
        %v1517 = vpop.f32.mrf.mxu0
        %1518 = vmatprep.mubr.f32.mxu0 0.0
        %1519 = vmatmul.mubr.f32.gmra.mxu0 %v1277
        %v1520 = vpop.f32.mrf.mxu0
        %v1521 = vadd.f32 %v1376, %v1520
        %v1522 = vpop.f32.mrf.mxu0
        %1523 = vmatprep.mubr.f32.mxu0 0.0
        %1524 = vmatmul.mubr.f32.gmra.mxu0 %v1278
        %v1525 = vpop.f32.mrf.mxu0
        %v1526 = vadd.f32 %v1381, %v1525
        %v1527 = vpop.f32.mrf.mxu0
        %1528 = vmatprep.mubr.f32.mxu0 0.0
        %1529 = vmatmul.mubr.f32.gmra.mxu0 %v1279
        %v1530 = vpop.f32.mrf.mxu0
        %v1531 = vadd.f32 %v1386, %v1530
        %v1532 = vpop.f32.mrf.mxu0
        %1533 = vmatprep.mubr.f32.mxu0 0.0
        %1534 = vmatmul.mubr.f32.gmra.mxu0 %v1280
        %v1535 = vpop.f32.mrf.mxu0
        %v1536 = vadd.f32 %v1391, %v1535
        %v1537 = vpop.f32.mrf.mxu0
        %1538 = vmatprep.mubr.f32.mxu0 0.0
        %1539 = vmatmul.mubr.f32.gmra.mxu0 %v1281
        %v1540 = vpop.f32.mrf.mxu0
        %v1541 = vadd.f32 %v1396, %v1540
        %v1542 = vpop.f32.mrf.mxu0
        %1543 = vmatprep.mubr.f32.mxu0 0.0
        %1544 = vmatmul.mubr.f32.gmra.mxu0 %v1282
        %v1545 = vpop.f32.mrf.mxu0
        %v1546 = vadd.f32 %v1401, %v1545
        %v1547 = vpop.f32.mrf.mxu0
        %1548 = vmatprep.mubr.f32.mxu0 0.0
        %1549 = vmatmul.mubr.f32.gmra.mxu0 %v1283
        %v1550 = vpop.f32.mrf.mxu0
        %v1551 = vadd.f32 %v1406, %v1550
        %v1552 = vpop.f32.mrf.mxu0
        %1553 = vmatprep.mubr.f32.mxu0 0.0
        %1554 = vmatmul.mubr.f32.gmra.mxu0 %v1284
        %v1555 = vpop.f32.mrf.mxu0
        %v1556 = vadd.f32 %v1411, %v1555
        %v1557 = vpop.f32.mrf.mxu0
        %1558 = vmatprep.mubr.f32.mxu0 0.0
        %1559 = vmatmul.mubr.f32.gmra.mxu0 %v1285
        %v1560 = vpop.f32.mrf.mxu0
        %v1561 = vadd.f32 %v1416, %v1560
        %v1562 = vpop.f32.mrf.mxu0
        %1563 = vmatprep.mubr.f32.mxu0 0.0
        %1564 = vmatmul.mubr.f32.gmra.mxu0 %v1286
        %v1565 = vpop.f32.mrf.mxu0
        %v1566 = vadd.f32 %v1421, %v1565
        %v1567 = vpop.f32.mrf.mxu0
        %1568 = vmatprep.mubr.f32.mxu0 0.0
        %1569 = vmatmul.mubr.f32.gmra.mxu0 %v1287
        %v1570 = vpop.f32.mrf.mxu0
        %v1571 = vadd.f32 %v1426, %v1570
        %v1572 = vpop.f32.mrf.mxu0
        %1573 = vmatprep.mubr.f32.mxu0 0.0
        %1574 = vmatmul.mubr.f32.gmra.mxu0 %v1288
        %v1575 = vpop.f32.mrf.mxu0
        %v1576 = vadd.f32 %v1431, %v1575
        %v1577 = vpop.f32.mrf.mxu0
        %1578 = vdwg.mxu0
        %v1579 = vlaneseq
        %v1580 = vshrl.u32 %v1579, 7
        %v1581 = vsub.s32 2, %v1580
        %v1582 = vrot.slane %v588, %v1581
        %v1583 = vlaneseq
        %v1584 = vshrl.u32 %v1583, 7
        %v1585 = vsub.s32 2, %v1584
        %v1586 = vrot.slane %v589, %v1585
        %v1587 = vlaneseq
        %v1588 = vshrl.u32 %v1587, 7
        %v1589 = vsub.s32 2, %v1588
        %v1590 = vrot.slane %v590, %v1589
        %v1591 = vlaneseq
        %v1592 = vshrl.u32 %v1591, 7
        %v1593 = vsub.s32 2, %v1592
        %v1594 = vrot.slane %v591, %v1593
        %v1595 = vlaneseq
        %v1596 = vshrl.u32 %v1595, 7
        %v1597 = vsub.s32 2, %v1596
        %v1598 = vrot.slane %v592, %v1597
        %v1599 = vlaneseq
        %v1600 = vshrl.u32 %v1599, 7
        %v1601 = vsub.s32 2, %v1600
        %v1602 = vrot.slane %v593, %v1601
        %v1603 = vlaneseq
        %v1604 = vshrl.u32 %v1603, 7
        %v1605 = vsub.s32 2, %v1604
        %v1606 = vrot.slane %v594, %v1605
        %v1607 = vlaneseq
        %v1608 = vshrl.u32 %v1607, 7
        %v1609 = vsub.s32 2, %v1608
        %v1610 = vrot.slane %v595, %v1609
        %v1611 = vmul.f32 %v1501, %v1582
        %v1612 = vmul.f32 %v1506, %v1582
        %v1613 = vmul.f32 %v1511, %v1586
        %v1614 = vmul.f32 %v1516, %v1586
        %v1615 = vmul.f32 %v1521, %v1590
        %v1616 = vmul.f32 %v1526, %v1590
        %v1617 = vmul.f32 %v1531, %v1594
        %v1618 = vmul.f32 %v1536, %v1594
        %v1619 = vmul.f32 %v1541, %v1598
        %v1620 = vmul.f32 %v1546, %v1598
        %v1621 = vmul.f32 %v1551, %v1602
        %v1622 = vmul.f32 %v1556, %v1602
        %v1623 = vmul.f32 %v1561, %v1606
        %v1624 = vmul.f32 %v1566, %v1606
        %v1625 = vmul.f32 %v1571, %v1610
        %v1626 = vmul.f32 %v1576, %v1610
        %v1627 = vlaneseq
        %v1628 = vshrl.u32 %v1627, 7
        %v1629 = vsub.s32 3, %v1628
        %v1630 = vrot.slane %v588, %v1629
        %v1631 = vlaneseq
        %v1632 = vshrl.u32 %v1631, 7
        %v1633 = vsub.s32 3, %v1632
        %v1634 = vrot.slane %v589, %v1633
        %v1635 = vlaneseq
        %v1636 = vshrl.u32 %v1635, 7
        %v1637 = vsub.s32 3, %v1636
        %v1638 = vrot.slane %v590, %v1637
        %v1639 = vlaneseq
        %v1640 = vshrl.u32 %v1639, 7
        %v1641 = vsub.s32 3, %v1640
        %v1642 = vrot.slane %v591, %v1641
        %v1643 = vlaneseq
        %v1644 = vshrl.u32 %v1643, 7
        %v1645 = vsub.s32 3, %v1644
        %v1646 = vrot.slane %v592, %v1645
        %v1647 = vlaneseq
        %v1648 = vshrl.u32 %v1647, 7
        %v1649 = vsub.s32 3, %v1648
        %v1650 = vrot.slane %v593, %v1649
        %v1651 = vlaneseq
        %v1652 = vshrl.u32 %v1651, 7
        %v1653 = vsub.s32 3, %v1652
        %v1654 = vrot.slane %v594, %v1653
        %v1655 = vlaneseq
        %v1656 = vshrl.u32 %v1655, 7
        %v1657 = vsub.s32 3, %v1656
        %v1658 = vrot.slane %v595, %v1657
        %v1659 = vadd.f32 %v1611, %v1630
        %v1660 = vadd.f32 %v1612, %v1630
        %v1661 = vadd.f32 %v1613, %v1634
        %v1662 = vadd.f32 %v1614, %v1634
        %v1663 = vadd.f32 %v1615, %v1638
        %v1664 = vadd.f32 %v1616, %v1638
        %v1665 = vadd.f32 %v1617, %v1642
        %v1666 = vadd.f32 %v1618, %v1642
        %v1667 = vadd.f32 %v1619, %v1646
        %v1668 = vadd.f32 %v1620, %v1646
        %v1669 = vadd.f32 %v1621, %v1650
        %v1670 = vadd.f32 %v1622, %v1650
        %v1671 = vadd.f32 %v1623, %v1654
        %v1672 = vadd.f32 %v1624, %v1654
        %v1673 = vadd.f32 %v1625, %v1658
        %v1674 = vadd.f32 %v1626, %v1658
        %v1675 = vadd.f32 %v572, %v1659
        %v1676 = vadd.f32 %v573, %v1660
        %v1677 = vadd.f32 %v574, %v1661
        %v1678 = vadd.f32 %v575, %v1662
        %v1679 = vadd.f32 %v576, %v1663
        %v1680 = vadd.f32 %v577, %v1664
        %v1681 = vadd.f32 %v578, %v1665
        %v1682 = vadd.f32 %v579, %v1666
        %v1683 = vadd.f32 %v580, %v1667
        %v1684 = vadd.f32 %v581, %v1668
        %v1685 = vadd.f32 %v582, %v1669
        %v1686 = vadd.f32 %v583, %v1670
        %v1687 = vadd.f32 %v584, %v1671
        %v1688 = vadd.f32 %v585, %v1672
        %v1689 = vadd.f32 %v586, %v1673
        %v1690 = vadd.f32 %v587, %v1674
        %s1691 = scalar_lea.vmem %s292, 32 [#allocation2]
        %v1692 = vld [vmem:[%s1691] sm:$0xf]
        %v1693 = vld [vmem:[%s1691 + $0x4] sm:$0xf]
        %v1694 = vld [vmem:[%s1691 + $0x8] sm:$0xf]
        %v1695 = vld [vmem:[%s1691 + $0xc] sm:$0xf]
        %v1696 = vld [vmem:[%s1691 + $0x10] sm:$0xf]
        %v1697 = vld [vmem:[%s1691 + $0x14] sm:$0xf]
        %v1698 = vld [vmem:[%s1691 + $0x18] sm:$0xf]
        %v1699 = vld [vmem:[%s1691 + $0x1c] sm:$0xf]
        %s1700 = scalar_lea.vmem %s2, 768
        %v1701 = vld [vmem:[%s1700] sm:$0xff]
        %v1702 = vld [vmem:[%s1700 + $0x8] sm:$0xff]
        %v1703 = vld [vmem:[%s1700 + $0x10] sm:$0xff]
        %v1704 = vld [vmem:[%s1700 + $0x18] sm:$0xff]
        %v1705 = vld [vmem:[%s1700 + $0x20] sm:$0xff]
        %v1706 = vld [vmem:[%s1700 + $0x28] sm:$0xff]
        %v1707 = vld [vmem:[%s1700 + $0x30] sm:$0xff]
        %v1708 = vld [vmem:[%s1700 + $0x38] sm:$0xff]
        %v1709 = vld [vmem:[%s1700 + $0x40] sm:$0xff]
        %v1710 = vld [vmem:[%s1700 + $0x48] sm:$0xff]
        %v1711 = vld [vmem:[%s1700 + $0x50] sm:$0xff]
        %v1712 = vld [vmem:[%s1700 + $0x58] sm:$0xff]
        %v1713 = vld [vmem:[%s1700 + $0x60] sm:$0xff]
        %v1714 = vld [vmem:[%s1700 + $0x68] sm:$0xff]
        %v1715 = vld [vmem:[%s1700 + $0x70] sm:$0xff]
        %v1716 = vld [vmem:[%s1700 + $0x78] sm:$0xff]
        %v1717 = vld [vmem:[%s1700 + $0x80] sm:$0xff]
        %v1718 = vld [vmem:[%s1700 + $0x88] sm:$0xff]
        %v1719 = vld [vmem:[%s1700 + $0x90] sm:$0xff]
        %v1720 = vld [vmem:[%s1700 + $0x98] sm:$0xff]
        %v1721 = vld [vmem:[%s1700 + $0xa0] sm:$0xff]
        %v1722 = vld [vmem:[%s1700 + $0xa8] sm:$0xff]
        %v1723 = vld [vmem:[%s1700 + $0xb0] sm:$0xff]
        %v1724 = vld [vmem:[%s1700 + $0xb8] sm:$0xff]
        %v1725 = vld [vmem:[%s1700 + $0xc0] sm:$0xff]
        %v1726 = vld [vmem:[%s1700 + $0xc8] sm:$0xff]
        %v1727 = vld [vmem:[%s1700 + $0xd0] sm:$0xff]
        %v1728 = vld [vmem:[%s1700 + $0xd8] sm:$0xff]
        %v1729 = vld [vmem:[%s1700 + $0xe0] sm:$0xff]
        %v1730 = vld [vmem:[%s1700 + $0xe8] sm:$0xff]
        %v1731 = vld [vmem:[%s1700 + $0xf0] sm:$0xff]
        %v1732 = vld [vmem:[%s1700 + $0xf8] sm:$0xff]
        %v1733 = vld [vmem:[%s1700 + $0x100] sm:$0xff]
        %v1734 = vld [vmem:[%s1700 + $0x108] sm:$0xff]
        %v1735 = vld [vmem:[%s1700 + $0x110] sm:$0xff]
        %v1736 = vld [vmem:[%s1700 + $0x118] sm:$0xff]
        %v1737 = vld [vmem:[%s1700 + $0x120] sm:$0xff]
        %v1738 = vld [vmem:[%s1700 + $0x128] sm:$0xff]
        %v1739 = vld [vmem:[%s1700 + $0x130] sm:$0xff]
        %v1740 = vld [vmem:[%s1700 + $0x138] sm:$0xff]
        %v1741 = vld [vmem:[%s1700 + $0x140] sm:$0xff]
        %v1742 = vld [vmem:[%s1700 + $0x148] sm:$0xff]
        %v1743 = vld [vmem:[%s1700 + $0x150] sm:$0xff]
        %v1744 = vld [vmem:[%s1700 + $0x158] sm:$0xff]
        %v1745 = vld [vmem:[%s1700 + $0x160] sm:$0xff]
        %v1746 = vld [vmem:[%s1700 + $0x168] sm:$0xff]
        %v1747 = vld [vmem:[%s1700 + $0x170] sm:$0xff]
        %v1748 = vld [vmem:[%s1700 + $0x178] sm:$0xff]
        %v1749 = vrot.slane %v1675, 7
        %v1750 = vrot.slane %v1676, 7
        %v1751 = vrot.slane %v1677, 7
        %v1752 = vrot.slane %v1678, 7
        %v1753 = vrot.slane %v1679, 7
        %v1754 = vrot.slane %v1680, 7
        %v1755 = vrot.slane %v1681, 7
        %v1756 = vrot.slane %v1682, 7
        %v1757 = vrot.slane %v1683, 7
        %v1758 = vrot.slane %v1684, 7
        %v1759 = vrot.slane %v1685, 7
        %v1760 = vrot.slane %v1686, 7
        %v1761 = vrot.slane %v1687, 7
        %v1762 = vrot.slane %v1688, 7
        %v1763 = vrot.slane %v1689, 7
        %v1764 = vrot.slane %v1690, 7
        %v1765 = vsel %vm660, %v1763, %v1764
        %v1766 = vsel %vm660, %v1762, %v1763
        %v1767 = vsel %vm660, %v1761, %v1762
        %v1768 = vsel %vm660, %v1760, %v1761
        %v1769 = vsel %vm660, %v1759, %v1760
        %v1770 = vsel %vm660, %v1758, %v1759
        %v1771 = vsel %vm660, %v1757, %v1758
        %v1772 = vsel %vm660, %v1756, %v1757
        %v1773 = vsel %vm660, %v1755, %v1756
        %v1774 = vsel %vm660, %v1754, %v1755
        %v1775 = vsel %vm660, %v1753, %v1754
        %v1776 = vsel %vm660, %v1752, %v1753
        %v1777 = vsel %vm660, %v1751, %v1752
        %v1778 = vsel %vm660, %v1750, %v1751
        %v1779 = vsel %vm660, %v1749, %v1750
        %v1780 = vsel %vm660, %v1764, %v1749
        %v1781 = vsel %vm540, %v1780, 0.0
        %v1782 = vsel %vm541, %v1779, 0.0
        %v1783 = vsel %vm542, %v1778, 0.0
        %v1784 = vsel %vm543, %v1777, 0.0
        %v1785 = vsel %vm544, %v1776, 0.0
        %v1786 = vsel %vm545, %v1775, 0.0
        %v1787 = vsel %vm546, %v1774, 0.0
        %v1788 = vsel %vm547, %v1773, 0.0
        %v1789 = vsel %vm548, %v1772, 0.0
        %v1790 = vsel %vm549, %v1771, 0.0
        %v1791 = vsel %vm550, %v1770, 0.0
        %v1792 = vsel %vm551, %v1769, 0.0
        %v1793 = vsel %vm552, %v1768, 0.0
        %v1794 = vsel %vm553, %v1767, 0.0
        %v1795 = vsel %vm554, %v1766, 0.0
        %v1796 = vsel %vm555, %v1765, 0.0
        %v1797 = vrot.slane %v1675, 1
        %v1798 = vrot.slane %v1676, 1
        %v1799 = vrot.slane %v1677, 1
        %v1800 = vrot.slane %v1678, 1
        %v1801 = vrot.slane %v1679, 1
        %v1802 = vrot.slane %v1680, 1
        %v1803 = vrot.slane %v1681, 1
        %v1804 = vrot.slane %v1682, 1
        %v1805 = vrot.slane %v1683, 1
        %v1806 = vrot.slane %v1684, 1
        %v1807 = vrot.slane %v1685, 1
        %v1808 = vrot.slane %v1686, 1
        %v1809 = vrot.slane %v1687, 1
        %v1810 = vrot.slane %v1688, 1
        %v1811 = vrot.slane %v1689, 1
        %v1812 = vrot.slane %v1690, 1
        %v1813 = vsel %vm709, %v1811, %v1812
        %v1814 = vsel %vm709, %v1810, %v1811
        %v1815 = vsel %vm709, %v1809, %v1810
        %v1816 = vsel %vm709, %v1808, %v1809
        %v1817 = vsel %vm709, %v1807, %v1808
        %v1818 = vsel %vm709, %v1806, %v1807
        %v1819 = vsel %vm709, %v1805, %v1806
        %v1820 = vsel %vm709, %v1804, %v1805
        %v1821 = vsel %vm709, %v1803, %v1804
        %v1822 = vsel %vm709, %v1802, %v1803
        %v1823 = vsel %vm709, %v1801, %v1802
        %v1824 = vsel %vm709, %v1800, %v1801
        %v1825 = vsel %vm709, %v1799, %v1800
        %v1826 = vsel %vm709, %v1798, %v1799
        %v1827 = vsel %vm709, %v1797, %v1798
        %v1828 = vsel %vm709, %v1812, %v1797
        %v1829 = vsel %vm556, %v1827, 0.0
        %v1830 = vsel %vm557, %v1826, 0.0
        %v1831 = vsel %vm558, %v1825, 0.0
        %v1832 = vsel %vm559, %v1824, 0.0
        %v1833 = vsel %vm560, %v1823, 0.0
        %v1834 = vsel %vm561, %v1822, 0.0
        %v1835 = vsel %vm562, %v1821, 0.0
        %v1836 = vsel %vm563, %v1820, 0.0
        %v1837 = vsel %vm564, %v1819, 0.0
        %v1838 = vsel %vm565, %v1818, 0.0
        %v1839 = vsel %vm566, %v1817, 0.0
        %v1840 = vsel %vm567, %v1816, 0.0
        %v1841 = vsel %vm568, %v1815, 0.0
        %v1842 = vsel %vm569, %v1814, 0.0
        %v1843 = vsel %vm570, %v1813, 0.0
        %v1844 = vsel %vm571, %v1828, 0.0
        %1845 = vmatprep.subr.mxu0 0.0
        %1846 = vmatpush1.msra.mxu0 %v1716
        %1847 = vmatprep.subr.mxu0 0.0
        %1848 = vmatpush1.msra.mxu0 %v1715
        %1849 = vmatprep.subr.mxu0 0.0
        %1850 = vmatpush1.msra.mxu0 %v1714
        %1851 = vmatprep.subr.mxu0 0.0
        %1852 = vmatpush1.msra.mxu0 %v1713
        %1853 = vmatprep.subr.mxu0 0.0
        %1854 = vmatpush1.msra.mxu0 %v1712
        %1855 = vmatprep.subr.mxu0 0.0
        %1856 = vmatpush1.msra.mxu0 %v1711
        %1857 = vmatprep.subr.mxu0 0.0
        %1858 = vmatpush1.msra.mxu0 %v1710
        %1859 = vmatprep.subr.mxu0 0.0
        %1860 = vmatpush1.msra.mxu0 %v1709
        %1861 = vmatprep.subr.mxu0 0.0
        %1862 = vmatpush1.msra.mxu0 %v1708
        %1863 = vmatprep.subr.mxu0 0.0
        %1864 = vmatpush1.msra.mxu0 %v1707
        %1865 = vmatprep.subr.mxu0 0.0
        %1866 = vmatpush1.msra.mxu0 %v1706
        %1867 = vmatprep.subr.mxu0 0.0
        %1868 = vmatpush1.msra.mxu0 %v1705
        %1869 = vmatprep.subr.mxu0 0.0
        %1870 = vmatpush1.msra.mxu0 %v1704
        %1871 = vmatprep.subr.mxu0 0.0
        %1872 = vmatpush1.msra.mxu0 %v1703
        %1873 = vmatprep.subr.mxu0 0.0
        %1874 = vmatpush1.msra.mxu0 %v1702
        %1875 = vmatprep.subr.mxu0 0.0
        %1876 = vmatpush1.msra.mxu0 %v1701
        %1877 = vmatprep.subr.mxu0 0.0
        %1878 = vmatpush2.msra.mxu0 %v1732
        %1879 = vmatprep.subr.mxu0 0.0
        %1880 = vmatpush2.msra.mxu0 %v1731
        %1881 = vmatprep.subr.mxu0 0.0
        %1882 = vmatpush2.msra.mxu0 %v1730
        %1883 = vmatprep.subr.mxu0 0.0
        %1884 = vmatpush2.msra.mxu0 %v1729
        %1885 = vmatprep.subr.mxu0 0.0
        %1886 = vmatpush2.msra.mxu0 %v1728
        %1887 = vmatprep.subr.mxu0 0.0
        %1888 = vmatpush2.msra.mxu0 %v1727
        %1889 = vmatprep.subr.mxu0 0.0
        %1890 = vmatpush2.msra.mxu0 %v1726
        %1891 = vmatprep.subr.mxu0 0.0
        %1892 = vmatpush2.msra.mxu0 %v1725
        %1893 = vmatprep.subr.mxu0 0.0
        %1894 = vmatpush2.msra.mxu0 %v1724
        %1895 = vmatprep.subr.mxu0 0.0
        %1896 = vmatpush2.msra.mxu0 %v1723
        %1897 = vmatprep.subr.mxu0 0.0
        %1898 = vmatpush2.msra.mxu0 %v1722
        %1899 = vmatprep.subr.mxu0 0.0
        %1900 = vmatpush2.msra.mxu0 %v1721
        %1901 = vmatprep.subr.mxu0 0.0
        %1902 = vmatpush2.msra.mxu0 %v1720
        %1903 = vmatprep.subr.mxu0 0.0
        %1904 = vmatpush2.msra.mxu0 %v1719
        %1905 = vmatprep.subr.mxu0 0.0
        %1906 = vmatpush2.msra.mxu0 %v1718
        %1907 = vmatprep.subr.mxu0 0.0
        %1908 = vmatpush2.msra.mxu0 %v1717
        %1909 = vmatprep.mubr.f32.mxu0 %v1675
        %1910 = vmatmul.mubr.f32.gmra.mxu0 %v1781
        %v1911 = vpop.f32.mrf.mxu0
        %v1912 = vadd.f32 0.0, %v1911
        %v1913 = vpop.f32.mrf.mxu0
        %1914 = vmatprep.mubr.f32.mxu0 %v1676
        %1915 = vmatmul.mubr.f32.gmra.mxu0 %v1782
        %v1916 = vpop.f32.mrf.mxu0
        %v1917 = vadd.f32 0.0, %v1916
        %v1918 = vpop.f32.mrf.mxu0
        %1919 = vmatprep.mubr.f32.mxu0 %v1677
        %1920 = vmatmul.mubr.f32.gmra.mxu0 %v1783
        %v1921 = vpop.f32.mrf.mxu0
        %v1922 = vadd.f32 0.0, %v1921
        %v1923 = vpop.f32.mrf.mxu0
        %1924 = vmatprep.mubr.f32.mxu0 %v1678
        %1925 = vmatmul.mubr.f32.gmra.mxu0 %v1784
        %v1926 = vpop.f32.mrf.mxu0
        %v1927 = vadd.f32 0.0, %v1926
        %v1928 = vpop.f32.mrf.mxu0
        %1929 = vmatprep.mubr.f32.mxu0 %v1679
        %1930 = vmatmul.mubr.f32.gmra.mxu0 %v1785
        %v1931 = vpop.f32.mrf.mxu0
        %v1932 = vadd.f32 0.0, %v1931
        %v1933 = vpop.f32.mrf.mxu0
        %1934 = vmatprep.mubr.f32.mxu0 %v1680
        %1935 = vmatmul.mubr.f32.gmra.mxu0 %v1786
        %v1936 = vpop.f32.mrf.mxu0
        %v1937 = vadd.f32 0.0, %v1936
        %v1938 = vpop.f32.mrf.mxu0
        %1939 = vmatprep.mubr.f32.mxu0 %v1681
        %1940 = vmatmul.mubr.f32.gmra.mxu0 %v1787
        %v1941 = vpop.f32.mrf.mxu0
        %v1942 = vadd.f32 0.0, %v1941
        %v1943 = vpop.f32.mrf.mxu0
        %1944 = vmatprep.mubr.f32.mxu0 %v1682
        %1945 = vmatmul.mubr.f32.gmra.mxu0 %v1788
        %v1946 = vpop.f32.mrf.mxu0
        %v1947 = vadd.f32 0.0, %v1946
        %v1948 = vpop.f32.mrf.mxu0
        %1949 = vmatprep.mubr.f32.mxu0 %v1683
        %1950 = vmatmul.mubr.f32.gmra.mxu0 %v1789
        %v1951 = vpop.f32.mrf.mxu0
        %v1952 = vadd.f32 0.0, %v1951
        %v1953 = vpop.f32.mrf.mxu0
        %1954 = vmatprep.mubr.f32.mxu0 %v1684
        %1955 = vmatmul.mubr.f32.gmra.mxu0 %v1790
        %v1956 = vpop.f32.mrf.mxu0
        %v1957 = vadd.f32 0.0, %v1956
        %v1958 = vpop.f32.mrf.mxu0
        %1959 = vmatprep.mubr.f32.mxu0 %v1685
        %1960 = vmatmul.mubr.f32.gmra.mxu0 %v1791
        %v1961 = vpop.f32.mrf.mxu0
        %v1962 = vadd.f32 0.0, %v1961
        %v1963 = vpop.f32.mrf.mxu0
        %1964 = vmatprep.mubr.f32.mxu0 %v1686
        %1965 = vmatmul.mubr.f32.gmra.mxu0 %v1792
        %v1966 = vpop.f32.mrf.mxu0
        %v1967 = vadd.f32 0.0, %v1966
        %v1968 = vpop.f32.mrf.mxu0
        %1969 = vmatprep.mubr.f32.mxu0 %v1687
        %1970 = vmatmul.mubr.f32.gmra.mxu0 %v1793
        %v1971 = vpop.f32.mrf.mxu0
        %v1972 = vadd.f32 0.0, %v1971
        %v1973 = vpop.f32.mrf.mxu0
        %1974 = vmatprep.mubr.f32.mxu0 %v1688
        %1975 = vmatmul.mubr.f32.gmra.mxu0 %v1794
        %v1976 = vpop.f32.mrf.mxu0
        %v1977 = vadd.f32 0.0, %v1976
        %v1978 = vpop.f32.mrf.mxu0
        %1979 = vmatprep.mubr.f32.mxu0 %v1689
        %1980 = vmatmul.mubr.f32.gmra.mxu0 %v1795
        %v1981 = vpop.f32.mrf.mxu0
        %v1982 = vadd.f32 0.0, %v1981
        %v1983 = vpop.f32.mrf.mxu0
        %1984 = vmatprep.mubr.f32.mxu0 %v1690
        %1985 = vmatmul.mubr.f32.gmra.mxu0 %v1796
        %v1986 = vpop.f32.mrf.mxu0
        %v1987 = vadd.f32 0.0, %v1986
        %v1988 = vpop.f32.mrf.mxu0
        %1989 = vdwg.mxu0
        %1990 = vmatprep.subr.mxu0 0.0
        %1991 = vmatpush1.msra.mxu0 %v1748
        %1992 = vmatprep.subr.mxu0 0.0
        %1993 = vmatpush1.msra.mxu0 %v1747
        %1994 = vmatprep.subr.mxu0 0.0
        %1995 = vmatpush1.msra.mxu0 %v1746
        %1996 = vmatprep.subr.mxu0 0.0
        %1997 = vmatpush1.msra.mxu0 %v1745
        %1998 = vmatprep.subr.mxu0 0.0
        %1999 = vmatpush1.msra.mxu0 %v1744
        %2000 = vmatprep.subr.mxu0 0.0
        %2001 = vmatpush1.msra.mxu0 %v1743
        %2002 = vmatprep.subr.mxu0 0.0
        %2003 = vmatpush1.msra.mxu0 %v1742
        %2004 = vmatprep.subr.mxu0 0.0
        %2005 = vmatpush1.msra.mxu0 %v1741
        %2006 = vmatprep.subr.mxu0 0.0
        %2007 = vmatpush1.msra.mxu0 %v1740
        %2008 = vmatprep.subr.mxu0 0.0
        %2009 = vmatpush1.msra.mxu0 %v1739
        %2010 = vmatprep.subr.mxu0 0.0
        %2011 = vmatpush1.msra.mxu0 %v1738
        %2012 = vmatprep.subr.mxu0 0.0
        %2013 = vmatpush1.msra.mxu0 %v1737
        %2014 = vmatprep.subr.mxu0 0.0
        %2015 = vmatpush1.msra.mxu0 %v1736
        %2016 = vmatprep.subr.mxu0 0.0
        %2017 = vmatpush1.msra.mxu0 %v1735
        %2018 = vmatprep.subr.mxu0 0.0
        %2019 = vmatpush1.msra.mxu0 %v1734
        %2020 = vmatprep.subr.mxu0 0.0
        %2021 = vmatpush1.msra.mxu0 %v1733
        %2022 = vmatprep.subr.mxu0 0.0
        %2023 = vmatpush2.msra.mxu0 0.0
        %2024 = vmatprep.subr.mxu0 0.0
        %2025 = vmatpush2.msra.mxu0 0.0
        %2026 = vmatprep.subr.mxu0 0.0
        %2027 = vmatpush2.msra.mxu0 0.0
        %2028 = vmatprep.subr.mxu0 0.0
        %2029 = vmatpush2.msra.mxu0 0.0
        %2030 = vmatprep.subr.mxu0 0.0
        %2031 = vmatpush2.msra.mxu0 0.0
        %2032 = vmatprep.subr.mxu0 0.0
        %2033 = vmatpush2.msra.mxu0 0.0
        %2034 = vmatprep.subr.mxu0 0.0
        %2035 = vmatpush2.msra.mxu0 0.0
        %2036 = vmatprep.subr.mxu0 0.0
        %2037 = vmatpush2.msra.mxu0 0.0
        %2038 = vmatprep.subr.mxu0 0.0
        %2039 = vmatpush2.msra.mxu0 0.0
        %2040 = vmatprep.subr.mxu0 0.0
        %2041 = vmatpush2.msra.mxu0 0.0
        %2042 = vmatprep.subr.mxu0 0.0
        %2043 = vmatpush2.msra.mxu0 0.0
        %2044 = vmatprep.subr.mxu0 0.0
        %2045 = vmatpush2.msra.mxu0 0.0
        %2046 = vmatprep.subr.mxu0 0.0
        %2047 = vmatpush2.msra.mxu0 0.0
        %2048 = vmatprep.subr.mxu0 0.0
        %2049 = vmatpush2.msra.mxu0 0.0
        %2050 = vmatprep.subr.mxu0 0.0
        %2051 = vmatpush2.msra.mxu0 0.0
        %2052 = vmatprep.subr.mxu0 0.0
        %2053 = vmatpush2.msra.mxu0 0.0
        %2054 = vmatprep.mubr.f32.mxu0 0.0
        %2055 = vmatmul.mubr.f32.gmra.mxu0 %v1829
        %v2056 = vpop.f32.mrf.mxu0
        %v2057 = vadd.f32 %v1912, %v2056
        %v2058 = vpop.f32.mrf.mxu0
        %2059 = vmatprep.mubr.f32.mxu0 0.0
        %2060 = vmatmul.mubr.f32.gmra.mxu0 %v1830
        %v2061 = vpop.f32.mrf.mxu0
        %v2062 = vadd.f32 %v1917, %v2061
        %v2063 = vpop.f32.mrf.mxu0
        %2064 = vmatprep.mubr.f32.mxu0 0.0
        %2065 = vmatmul.mubr.f32.gmra.mxu0 %v1831
        %v2066 = vpop.f32.mrf.mxu0
        %v2067 = vadd.f32 %v1922, %v2066
        %v2068 = vpop.f32.mrf.mxu0
        %2069 = vmatprep.mubr.f32.mxu0 0.0
        %2070 = vmatmul.mubr.f32.gmra.mxu0 %v1832
        %v2071 = vpop.f32.mrf.mxu0
        %v2072 = vadd.f32 %v1927, %v2071
        %v2073 = vpop.f32.mrf.mxu0
        %2074 = vmatprep.mubr.f32.mxu0 0.0
        %2075 = vmatmul.mubr.f32.gmra.mxu0 %v1833
        %v2076 = vpop.f32.mrf.mxu0
        %v2077 = vadd.f32 %v1932, %v2076
        %v2078 = vpop.f32.mrf.mxu0
        %2079 = vmatprep.mubr.f32.mxu0 0.0
        %2080 = vmatmul.mubr.f32.gmra.mxu0 %v1834
        %v2081 = vpop.f32.mrf.mxu0
        %v2082 = vadd.f32 %v1937, %v2081
        %v2083 = vpop.f32.mrf.mxu0
        %2084 = vmatprep.mubr.f32.mxu0 0.0
        %2085 = vmatmul.mubr.f32.gmra.mxu0 %v1835
        %v2086 = vpop.f32.mrf.mxu0
        %v2087 = vadd.f32 %v1942, %v2086
        %v2088 = vpop.f32.mrf.mxu0
        %2089 = vmatprep.mubr.f32.mxu0 0.0
        %2090 = vmatmul.mubr.f32.gmra.mxu0 %v1836
        %v2091 = vpop.f32.mrf.mxu0
        %v2092 = vadd.f32 %v1947, %v2091
        %v2093 = vpop.f32.mrf.mxu0
        %2094 = vmatprep.mubr.f32.mxu0 0.0
        %2095 = vmatmul.mubr.f32.gmra.mxu0 %v1837
        %v2096 = vpop.f32.mrf.mxu0
        %v2097 = vadd.f32 %v1952, %v2096
        %v2098 = vpop.f32.mrf.mxu0
        %2099 = vmatprep.mubr.f32.mxu0 0.0
        %2100 = vmatmul.mubr.f32.gmra.mxu0 %v1838
        %v2101 = vpop.f32.mrf.mxu0
        %v2102 = vadd.f32 %v1957, %v2101
        %v2103 = vpop.f32.mrf.mxu0
        %2104 = vmatprep.mubr.f32.mxu0 0.0
        %2105 = vmatmul.mubr.f32.gmra.mxu0 %v1839
        %v2106 = vpop.f32.mrf.mxu0
        %v2107 = vadd.f32 %v1962, %v2106
        %v2108 = vpop.f32.mrf.mxu0
        %2109 = vmatprep.mubr.f32.mxu0 0.0
        %2110 = vmatmul.mubr.f32.gmra.mxu0 %v1840
        %v2111 = vpop.f32.mrf.mxu0
        %v2112 = vadd.f32 %v1967, %v2111
        %v2113 = vpop.f32.mrf.mxu0
        %2114 = vmatprep.mubr.f32.mxu0 0.0
        %2115 = vmatmul.mubr.f32.gmra.mxu0 %v1841
        %v2116 = vpop.f32.mrf.mxu0
        %v2117 = vadd.f32 %v1972, %v2116
        %v2118 = vpop.f32.mrf.mxu0
        %2119 = vmatprep.mubr.f32.mxu0 0.0
        %2120 = vmatmul.mubr.f32.gmra.mxu0 %v1842
        %v2121 = vpop.f32.mrf.mxu0
        %v2122 = vadd.f32 %v1977, %v2121
        %v2123 = vpop.f32.mrf.mxu0
        %2124 = vmatprep.mubr.f32.mxu0 0.0
        %2125 = vmatmul.mubr.f32.gmra.mxu0 %v1843
        %v2126 = vpop.f32.mrf.mxu0
        %v2127 = vadd.f32 %v1982, %v2126
        %v2128 = vpop.f32.mrf.mxu0
        %2129 = vmatprep.mubr.f32.mxu0 0.0
        %2130 = vmatmul.mubr.f32.gmra.mxu0 %v1844
        %v2131 = vpop.f32.mrf.mxu0
        %v2132 = vadd.f32 %v1987, %v2131
        %v2133 = vpop.f32.mrf.mxu0
        %2134 = vdwg.mxu0
        %v2135 = vlaneseq
        %v2136 = vshrl.u32 %v2135, 7
        %v2137 = vsub.s32 0, %v2136
        %v2138 = vrot.slane %v1692, %v2137
        %v2139 = vlaneseq
        %v2140 = vshrl.u32 %v2139, 7
        %v2141 = vsub.s32 0, %v2140
        %v2142 = vrot.slane %v1693, %v2141
        %v2143 = vlaneseq
        %v2144 = vshrl.u32 %v2143, 7
        %v2145 = vsub.s32 0, %v2144
        %v2146 = vrot.slane %v1694, %v2145
        %v2147 = vlaneseq
        %v2148 = vshrl.u32 %v2147, 7
        %v2149 = vsub.s32 0, %v2148
        %v2150 = vrot.slane %v1695, %v2149
        %v2151 = vlaneseq
        %v2152 = vshrl.u32 %v2151, 7
        %v2153 = vsub.s32 0, %v2152
        %v2154 = vrot.slane %v1696, %v2153
        %v2155 = vlaneseq
        %v2156 = vshrl.u32 %v2155, 7
        %v2157 = vsub.s32 0, %v2156
        %v2158 = vrot.slane %v1697, %v2157
        %v2159 = vlaneseq
        %v2160 = vshrl.u32 %v2159, 7
        %v2161 = vsub.s32 0, %v2160
        %v2162 = vrot.slane %v1698, %v2161
        %v2163 = vlaneseq
        %v2164 = vshrl.u32 %v2163, 7
        %v2165 = vsub.s32 0, %v2164
        %v2166 = vrot.slane %v1699, %v2165
        %v2167 = vmul.f32 %v2057, %v2138
        %v2168 = vmul.f32 %v2062, %v2138
        %v2169 = vmul.f32 %v2067, %v2142
        %v2170 = vmul.f32 %v2072, %v2142
        %v2171 = vmul.f32 %v2077, %v2146
        %v2172 = vmul.f32 %v2082, %v2146
        %v2173 = vmul.f32 %v2087, %v2150
        %v2174 = vmul.f32 %v2092, %v2150
        %v2175 = vmul.f32 %v2097, %v2154
        %v2176 = vmul.f32 %v2102, %v2154
        %v2177 = vmul.f32 %v2107, %v2158
        %v2178 = vmul.f32 %v2112, %v2158
        %v2179 = vmul.f32 %v2117, %v2162
        %v2180 = vmul.f32 %v2122, %v2162
        %v2181 = vmul.f32 %v2127, %v2166
        %v2182 = vmul.f32 %v2132, %v2166
        %v2183 = vlaneseq
        %v2184 = vshrl.u32 %v2183, 7
        %v2185 = vsub.s32 1, %v2184
        %v2186 = vrot.slane %v1692, %v2185
        %v2187 = vlaneseq
        %v2188 = vshrl.u32 %v2187, 7
        %v2189 = vsub.s32 1, %v2188
        %v2190 = vrot.slane %v1693, %v2189
        %v2191 = vlaneseq
        %v2192 = vshrl.u32 %v2191, 7
        %v2193 = vsub.s32 1, %v2192
        %v2194 = vrot.slane %v1694, %v2193
        %v2195 = vlaneseq
        %v2196 = vshrl.u32 %v2195, 7
        %v2197 = vsub.s32 1, %v2196
        %v2198 = vrot.slane %v1695, %v2197
        %v2199 = vlaneseq
        %v2200 = vshrl.u32 %v2199, 7
        %v2201 = vsub.s32 1, %v2200
        %v2202 = vrot.slane %v1696, %v2201
        %v2203 = vlaneseq
        %v2204 = vshrl.u32 %v2203, 7
        %v2205 = vsub.s32 1, %v2204
        %v2206 = vrot.slane %v1697, %v2205
        %v2207 = vlaneseq
        %v2208 = vshrl.u32 %v2207, 7
        %v2209 = vsub.s32 1, %v2208
        %v2210 = vrot.slane %v1698, %v2209
        %v2211 = vlaneseq
        %v2212 = vshrl.u32 %v2211, 7
        %v2213 = vsub.s32 1, %v2212
        %v2214 = vrot.slane %v1699, %v2213
        %v2215 = vadd.f32 %v2167, %v2186
        %v2216 = vadd.f32 %v2168, %v2186
        %v2217 = vadd.f32 %v2169, %v2190
        %v2218 = vadd.f32 %v2170, %v2190
        %v2219 = vadd.f32 %v2171, %v2194
        %v2220 = vadd.f32 %v2172, %v2194
        %v2221 = vadd.f32 %v2173, %v2198
        %v2222 = vadd.f32 %v2174, %v2198
        %v2223 = vadd.f32 %v2175, %v2202
        %v2224 = vadd.f32 %v2176, %v2202
        %v2225 = vadd.f32 %v2177, %v2206
        %v2226 = vadd.f32 %v2178, %v2206
        %v2227 = vadd.f32 %v2179, %v2210
        %v2228 = vadd.f32 %v2180, %v2210
        %v2229 = vadd.f32 %v2181, %v2214
        %v2230 = vadd.f32 %v2182, %v2214
        %v2231 = vmax.f32 %v2215, 0.0
        %v2232 = vmax.f32 %v2216, 0.0
        %v2233 = vmax.f32 %v2217, 0.0
        %v2234 = vmax.f32 %v2218, 0.0
        %v2235 = vmax.f32 %v2219, 0.0
        %v2236 = vmax.f32 %v2220, 0.0
        %v2237 = vmax.f32 %v2221, 0.0
        %v2238 = vmax.f32 %v2222, 0.0
        %v2239 = vmax.f32 %v2223, 0.0
        %v2240 = vmax.f32 %v2224, 0.0
        %v2241 = vmax.f32 %v2225, 0.0
        %v2242 = vmax.f32 %v2226, 0.0
        %v2243 = vmax.f32 %v2227, 0.0
        %v2244 = vmax.f32 %v2228, 0.0
        %v2245 = vmax.f32 %v2229, 0.0
        %v2246 = vmax.f32 %v2230, 0.0
        %s2247 = scalar_lea.vmem %s2, 1152
        %v2248 = vld [vmem:[%s2247] sm:$0xff]
        %v2249 = vld [vmem:[%s2247 + $0x8] sm:$0xff]
        %v2250 = vld [vmem:[%s2247 + $0x10] sm:$0xff]
        %v2251 = vld [vmem:[%s2247 + $0x18] sm:$0xff]
        %v2252 = vld [vmem:[%s2247 + $0x20] sm:$0xff]
        %v2253 = vld [vmem:[%s2247 + $0x28] sm:$0xff]
        %v2254 = vld [vmem:[%s2247 + $0x30] sm:$0xff]
        %v2255 = vld [vmem:[%s2247 + $0x38] sm:$0xff]
        %v2256 = vld [vmem:[%s2247 + $0x40] sm:$0xff]
        %v2257 = vld [vmem:[%s2247 + $0x48] sm:$0xff]
        %v2258 = vld [vmem:[%s2247 + $0x50] sm:$0xff]
        %v2259 = vld [vmem:[%s2247 + $0x58] sm:$0xff]
        %v2260 = vld [vmem:[%s2247 + $0x60] sm:$0xff]
        %v2261 = vld [vmem:[%s2247 + $0x68] sm:$0xff]
        %v2262 = vld [vmem:[%s2247 + $0x70] sm:$0xff]
        %v2263 = vld [vmem:[%s2247 + $0x78] sm:$0xff]
        %v2264 = vld [vmem:[%s2247 + $0x80] sm:$0xff]
        %v2265 = vld [vmem:[%s2247 + $0x88] sm:$0xff]
        %v2266 = vld [vmem:[%s2247 + $0x90] sm:$0xff]
        %v2267 = vld [vmem:[%s2247 + $0x98] sm:$0xff]
        %v2268 = vld [vmem:[%s2247 + $0xa0] sm:$0xff]
        %v2269 = vld [vmem:[%s2247 + $0xa8] sm:$0xff]
        %v2270 = vld [vmem:[%s2247 + $0xb0] sm:$0xff]
        %v2271 = vld [vmem:[%s2247 + $0xb8] sm:$0xff]
        %v2272 = vld [vmem:[%s2247 + $0xc0] sm:$0xff]
        %v2273 = vld [vmem:[%s2247 + $0xc8] sm:$0xff]
        %v2274 = vld [vmem:[%s2247 + $0xd0] sm:$0xff]
        %v2275 = vld [vmem:[%s2247 + $0xd8] sm:$0xff]
        %v2276 = vld [vmem:[%s2247 + $0xe0] sm:$0xff]
        %v2277 = vld [vmem:[%s2247 + $0xe8] sm:$0xff]
        %v2278 = vld [vmem:[%s2247 + $0xf0] sm:$0xff]
        %v2279 = vld [vmem:[%s2247 + $0xf8] sm:$0xff]
        %v2280 = vld [vmem:[%s2247 + $0x100] sm:$0xff]
        %v2281 = vld [vmem:[%s2247 + $0x108] sm:$0xff]
        %v2282 = vld [vmem:[%s2247 + $0x110] sm:$0xff]
        %v2283 = vld [vmem:[%s2247 + $0x118] sm:$0xff]
        %v2284 = vld [vmem:[%s2247 + $0x120] sm:$0xff]
        %v2285 = vld [vmem:[%s2247 + $0x128] sm:$0xff]
        %v2286 = vld [vmem:[%s2247 + $0x130] sm:$0xff]
        %v2287 = vld [vmem:[%s2247 + $0x138] sm:$0xff]
        %v2288 = vld [vmem:[%s2247 + $0x140] sm:$0xff]
        %v2289 = vld [vmem:[%s2247 + $0x148] sm:$0xff]
        %v2290 = vld [vmem:[%s2247 + $0x150] sm:$0xff]
        %v2291 = vld [vmem:[%s2247 + $0x158] sm:$0xff]
        %v2292 = vld [vmem:[%s2247 + $0x160] sm:$0xff]
        %v2293 = vld [vmem:[%s2247 + $0x168] sm:$0xff]
        %v2294 = vld [vmem:[%s2247 + $0x170] sm:$0xff]
        %v2295 = vld [vmem:[%s2247 + $0x178] sm:$0xff]
        %v2296 = vrot.slane %v2231, 7
        %v2297 = vrot.slane %v2232, 7
        %v2298 = vrot.slane %v2233, 7
        %v2299 = vrot.slane %v2234, 7
        %v2300 = vrot.slane %v2235, 7
        %v2301 = vrot.slane %v2236, 7
        %v2302 = vrot.slane %v2237, 7
        %v2303 = vrot.slane %v2238, 7
        %v2304 = vrot.slane %v2239, 7
        %v2305 = vrot.slane %v2240, 7
        %v2306 = vrot.slane %v2241, 7
        %v2307 = vrot.slane %v2242, 7
        %v2308 = vrot.slane %v2243, 7
        %v2309 = vrot.slane %v2244, 7
        %v2310 = vrot.slane %v2245, 7
        %v2311 = vrot.slane %v2246, 7
        %v2312 = vsel %vm660, %v2310, %v2311
        %v2313 = vsel %vm660, %v2309, %v2310
        %v2314 = vsel %vm660, %v2308, %v2309
        %v2315 = vsel %vm660, %v2307, %v2308
        %v2316 = vsel %vm660, %v2306, %v2307
        %v2317 = vsel %vm660, %v2305, %v2306
        %v2318 = vsel %vm660, %v2304, %v2305
        %v2319 = vsel %vm660, %v2303, %v2304
        %v2320 = vsel %vm660, %v2302, %v2303
        %v2321 = vsel %vm660, %v2301, %v2302
        %v2322 = vsel %vm660, %v2300, %v2301
        %v2323 = vsel %vm660, %v2299, %v2300
        %v2324 = vsel %vm660, %v2298, %v2299
        %v2325 = vsel %vm660, %v2297, %v2298
        %v2326 = vsel %vm660, %v2296, %v2297
        %v2327 = vsel %vm660, %v2311, %v2296
        %v2328 = vsel %vm540, %v2327, 0.0
        %v2329 = vsel %vm541, %v2326, 0.0
        %v2330 = vsel %vm542, %v2325, 0.0
        %v2331 = vsel %vm543, %v2324, 0.0
        %v2332 = vsel %vm544, %v2323, 0.0
        %v2333 = vsel %vm545, %v2322, 0.0
        %v2334 = vsel %vm546, %v2321, 0.0
        %v2335 = vsel %vm547, %v2320, 0.0
        %v2336 = vsel %vm548, %v2319, 0.0
        %v2337 = vsel %vm549, %v2318, 0.0
        %v2338 = vsel %vm550, %v2317, 0.0
        %v2339 = vsel %vm551, %v2316, 0.0
        %v2340 = vsel %vm552, %v2315, 0.0
        %v2341 = vsel %vm553, %v2314, 0.0
        %v2342 = vsel %vm554, %v2313, 0.0
        %v2343 = vsel %vm555, %v2312, 0.0
        %v2344 = vrot.slane %v2231, 1
        %v2345 = vrot.slane %v2232, 1
        %v2346 = vrot.slane %v2233, 1
        %v2347 = vrot.slane %v2234, 1
        %v2348 = vrot.slane %v2235, 1
        %v2349 = vrot.slane %v2236, 1
        %v2350 = vrot.slane %v2237, 1
        %v2351 = vrot.slane %v2238, 1
        %v2352 = vrot.slane %v2239, 1
        %v2353 = vrot.slane %v2240, 1
        %v2354 = vrot.slane %v2241, 1
        %v2355 = vrot.slane %v2242, 1
        %v2356 = vrot.slane %v2243, 1
        %v2357 = vrot.slane %v2244, 1
        %v2358 = vrot.slane %v2245, 1
        %v2359 = vrot.slane %v2246, 1
        %v2360 = vsel %vm709, %v2358, %v2359
        %v2361 = vsel %vm709, %v2357, %v2358
        %v2362 = vsel %vm709, %v2356, %v2357
        %v2363 = vsel %vm709, %v2355, %v2356
        %v2364 = vsel %vm709, %v2354, %v2355
        %v2365 = vsel %vm709, %v2353, %v2354
        %v2366 = vsel %vm709, %v2352, %v2353
        %v2367 = vsel %vm709, %v2351, %v2352
        %v2368 = vsel %vm709, %v2350, %v2351
        %v2369 = vsel %vm709, %v2349, %v2350
        %v2370 = vsel %vm709, %v2348, %v2349
        %v2371 = vsel %vm709, %v2347, %v2348
        %v2372 = vsel %vm709, %v2346, %v2347
        %v2373 = vsel %vm709, %v2345, %v2346
        %v2374 = vsel %vm709, %v2344, %v2345
        %v2375 = vsel %vm709, %v2359, %v2344
        %v2376 = vsel %vm556, %v2374, 0.0
        %v2377 = vsel %vm557, %v2373, 0.0
        %v2378 = vsel %vm558, %v2372, 0.0
        %v2379 = vsel %vm559, %v2371, 0.0
        %v2380 = vsel %vm560, %v2370, 0.0
        %v2381 = vsel %vm561, %v2369, 0.0
        %v2382 = vsel %vm562, %v2368, 0.0
        %v2383 = vsel %vm563, %v2367, 0.0
        %v2384 = vsel %vm564, %v2366, 0.0
        %v2385 = vsel %vm565, %v2365, 0.0
        %v2386 = vsel %vm566, %v2364, 0.0
        %v2387 = vsel %vm567, %v2363, 0.0
        %v2388 = vsel %vm568, %v2362, 0.0
        %v2389 = vsel %vm569, %v2361, 0.0
        %v2390 = vsel %vm570, %v2360, 0.0
        %v2391 = vsel %vm571, %v2375, 0.0
        %2392 = vmatprep.subr.mxu0 0.0
        %2393 = vmatpush1.msra.mxu0 %v2263
        %2394 = vmatprep.subr.mxu0 0.0
        %2395 = vmatpush1.msra.mxu0 %v2262
        %2396 = vmatprep.subr.mxu0 0.0
        %2397 = vmatpush1.msra.mxu0 %v2261
        %2398 = vmatprep.subr.mxu0 0.0
        %2399 = vmatpush1.msra.mxu0 %v2260
        %2400 = vmatprep.subr.mxu0 0.0
        %2401 = vmatpush1.msra.mxu0 %v2259
        %2402 = vmatprep.subr.mxu0 0.0
        %2403 = vmatpush1.msra.mxu0 %v2258
        %2404 = vmatprep.subr.mxu0 0.0
        %2405 = vmatpush1.msra.mxu0 %v2257
        %2406 = vmatprep.subr.mxu0 0.0
        %2407 = vmatpush1.msra.mxu0 %v2256
        %2408 = vmatprep.subr.mxu0 0.0
        %2409 = vmatpush1.msra.mxu0 %v2255
        %2410 = vmatprep.subr.mxu0 0.0
        %2411 = vmatpush1.msra.mxu0 %v2254
        %2412 = vmatprep.subr.mxu0 0.0
        %2413 = vmatpush1.msra.mxu0 %v2253
        %2414 = vmatprep.subr.mxu0 0.0
        %2415 = vmatpush1.msra.mxu0 %v2252
        %2416 = vmatprep.subr.mxu0 0.0
        %2417 = vmatpush1.msra.mxu0 %v2251
        %2418 = vmatprep.subr.mxu0 0.0
        %2419 = vmatpush1.msra.mxu0 %v2250
        %2420 = vmatprep.subr.mxu0 0.0
        %2421 = vmatpush1.msra.mxu0 %v2249
        %2422 = vmatprep.subr.mxu0 0.0
        %2423 = vmatpush1.msra.mxu0 %v2248
        %2424 = vmatprep.subr.mxu0 0.0
        %2425 = vmatpush2.msra.mxu0 %v2279
        %2426 = vmatprep.subr.mxu0 0.0
        %2427 = vmatpush2.msra.mxu0 %v2278
        %2428 = vmatprep.subr.mxu0 0.0
        %2429 = vmatpush2.msra.mxu0 %v2277
        %2430 = vmatprep.subr.mxu0 0.0
        %2431 = vmatpush2.msra.mxu0 %v2276
        %2432 = vmatprep.subr.mxu0 0.0
        %2433 = vmatpush2.msra.mxu0 %v2275
        %2434 = vmatprep.subr.mxu0 0.0
        %2435 = vmatpush2.msra.mxu0 %v2274
        %2436 = vmatprep.subr.mxu0 0.0
        %2437 = vmatpush2.msra.mxu0 %v2273
        %2438 = vmatprep.subr.mxu0 0.0
        %2439 = vmatpush2.msra.mxu0 %v2272
        %2440 = vmatprep.subr.mxu0 0.0
        %2441 = vmatpush2.msra.mxu0 %v2271
        %2442 = vmatprep.subr.mxu0 0.0
        %2443 = vmatpush2.msra.mxu0 %v2270
        %2444 = vmatprep.subr.mxu0 0.0
        %2445 = vmatpush2.msra.mxu0 %v2269
        %2446 = vmatprep.subr.mxu0 0.0
        %2447 = vmatpush2.msra.mxu0 %v2268
        %2448 = vmatprep.subr.mxu0 0.0
        %2449 = vmatpush2.msra.mxu0 %v2267
        %2450 = vmatprep.subr.mxu0 0.0
        %2451 = vmatpush2.msra.mxu0 %v2266
        %2452 = vmatprep.subr.mxu0 0.0
        %2453 = vmatpush2.msra.mxu0 %v2265
        %2454 = vmatprep.subr.mxu0 0.0
        %2455 = vmatpush2.msra.mxu0 %v2264
        %2456 = vmatprep.mubr.f32.mxu0 %v2231
        %2457 = vmatmul.mubr.f32.gmra.mxu0 %v2328
        %v2458 = vpop.f32.mrf.mxu0
        %v2459 = vadd.f32 0.0, %v2458
        %v2460 = vpop.f32.mrf.mxu0
        %2461 = vmatprep.mubr.f32.mxu0 %v2232
        %2462 = vmatmul.mubr.f32.gmra.mxu0 %v2329
        %v2463 = vpop.f32.mrf.mxu0
        %v2464 = vadd.f32 0.0, %v2463
        %v2465 = vpop.f32.mrf.mxu0
        %2466 = vmatprep.mubr.f32.mxu0 %v2233
        %2467 = vmatmul.mubr.f32.gmra.mxu0 %v2330
        %v2468 = vpop.f32.mrf.mxu0
        %v2469 = vadd.f32 0.0, %v2468
        %v2470 = vpop.f32.mrf.mxu0
        %2471 = vmatprep.mubr.f32.mxu0 %v2234
        %2472 = vmatmul.mubr.f32.gmra.mxu0 %v2331
        %v2473 = vpop.f32.mrf.mxu0
        %v2474 = vadd.f32 0.0, %v2473
        %v2475 = vpop.f32.mrf.mxu0
        %2476 = vmatprep.mubr.f32.mxu0 %v2235
        %2477 = vmatmul.mubr.f32.gmra.mxu0 %v2332
        %v2478 = vpop.f32.mrf.mxu0
        %v2479 = vadd.f32 0.0, %v2478
        %v2480 = vpop.f32.mrf.mxu0
        %2481 = vmatprep.mubr.f32.mxu0 %v2236
        %2482 = vmatmul.mubr.f32.gmra.mxu0 %v2333
        %v2483 = vpop.f32.mrf.mxu0
        %v2484 = vadd.f32 0.0, %v2483
        %v2485 = vpop.f32.mrf.mxu0
        %2486 = vmatprep.mubr.f32.mxu0 %v2237
        %2487 = vmatmul.mubr.f32.gmra.mxu0 %v2334
        %v2488 = vpop.f32.mrf.mxu0
        %v2489 = vadd.f32 0.0, %v2488
        %v2490 = vpop.f32.mrf.mxu0
        %2491 = vmatprep.mubr.f32.mxu0 %v2238
        %2492 = vmatmul.mubr.f32.gmra.mxu0 %v2335
        %v2493 = vpop.f32.mrf.mxu0
        %v2494 = vadd.f32 0.0, %v2493
        %v2495 = vpop.f32.mrf.mxu0
        %2496 = vmatprep.mubr.f32.mxu0 %v2239
        %2497 = vmatmul.mubr.f32.gmra.mxu0 %v2336
        %v2498 = vpop.f32.mrf.mxu0
        %v2499 = vadd.f32 0.0, %v2498
        %v2500 = vpop.f32.mrf.mxu0
        %2501 = vmatprep.mubr.f32.mxu0 %v2240
        %2502 = vmatmul.mubr.f32.gmra.mxu0 %v2337
        %v2503 = vpop.f32.mrf.mxu0
        %v2504 = vadd.f32 0.0, %v2503
        %v2505 = vpop.f32.mrf.mxu0
        %2506 = vmatprep.mubr.f32.mxu0 %v2241
        %2507 = vmatmul.mubr.f32.gmra.mxu0 %v2338
        %v2508 = vpop.f32.mrf.mxu0
        %v2509 = vadd.f32 0.0, %v2508
        %v2510 = vpop.f32.mrf.mxu0
        %2511 = vmatprep.mubr.f32.mxu0 %v2242
        %2512 = vmatmul.mubr.f32.gmra.mxu0 %v2339
        %v2513 = vpop.f32.mrf.mxu0
        %v2514 = vadd.f32 0.0, %v2513
        %v2515 = vpop.f32.mrf.mxu0
        %2516 = vmatprep.mubr.f32.mxu0 %v2243
        %2517 = vmatmul.mubr.f32.gmra.mxu0 %v2340
        %v2518 = vpop.f32.mrf.mxu0
        %v2519 = vadd.f32 0.0, %v2518
        %v2520 = vpop.f32.mrf.mxu0
        %2521 = vmatprep.mubr.f32.mxu0 %v2244
        %2522 = vmatmul.mubr.f32.gmra.mxu0 %v2341
        %v2523 = vpop.f32.mrf.mxu0
        %v2524 = vadd.f32 0.0, %v2523
        %v2525 = vpop.f32.mrf.mxu0
        %2526 = vmatprep.mubr.f32.mxu0 %v2245
        %2527 = vmatmul.mubr.f32.gmra.mxu0 %v2342
        %v2528 = vpop.f32.mrf.mxu0
        %v2529 = vadd.f32 0.0, %v2528
        %v2530 = vpop.f32.mrf.mxu0
        %2531 = vmatprep.mubr.f32.mxu0 %v2246
        %2532 = vmatmul.mubr.f32.gmra.mxu0 %v2343
        %v2533 = vpop.f32.mrf.mxu0
        %v2534 = vadd.f32 0.0, %v2533
        %v2535 = vpop.f32.mrf.mxu0
        %2536 = vdwg.mxu0
        %2537 = vmatprep.subr.mxu0 0.0
        %2538 = vmatpush1.msra.mxu0 %v2295
        %2539 = vmatprep.subr.mxu0 0.0
        %2540 = vmatpush1.msra.mxu0 %v2294
        %2541 = vmatprep.subr.mxu0 0.0
        %2542 = vmatpush1.msra.mxu0 %v2293
        %2543 = vmatprep.subr.mxu0 0.0
        %2544 = vmatpush1.msra.mxu0 %v2292
        %2545 = vmatprep.subr.mxu0 0.0
        %2546 = vmatpush1.msra.mxu0 %v2291
        %2547 = vmatprep.subr.mxu0 0.0
        %2548 = vmatpush1.msra.mxu0 %v2290
        %2549 = vmatprep.subr.mxu0 0.0
        %2550 = vmatpush1.msra.mxu0 %v2289
        %2551 = vmatprep.subr.mxu0 0.0
        %2552 = vmatpush1.msra.mxu0 %v2288
        %2553 = vmatprep.subr.mxu0 0.0
        %2554 = vmatpush1.msra.mxu0 %v2287
        %2555 = vmatprep.subr.mxu0 0.0
        %2556 = vmatpush1.msra.mxu0 %v2286
        %2557 = vmatprep.subr.mxu0 0.0
        %2558 = vmatpush1.msra.mxu0 %v2285
        %2559 = vmatprep.subr.mxu0 0.0
        %2560 = vmatpush1.msra.mxu0 %v2284
        %2561 = vmatprep.subr.mxu0 0.0
        %2562 = vmatpush1.msra.mxu0 %v2283
        %2563 = vmatprep.subr.mxu0 0.0
        %2564 = vmatpush1.msra.mxu0 %v2282
        %2565 = vmatprep.subr.mxu0 0.0
        %2566 = vmatpush1.msra.mxu0 %v2281
        %2567 = vmatprep.subr.mxu0 0.0
        %2568 = vmatpush1.msra.mxu0 %v2280
        %2569 = vmatprep.subr.mxu0 0.0
        %2570 = vmatpush2.msra.mxu0 0.0
        %2571 = vmatprep.subr.mxu0 0.0
        %2572 = vmatpush2.msra.mxu0 0.0
        %2573 = vmatprep.subr.mxu0 0.0
        %2574 = vmatpush2.msra.mxu0 0.0
        %2575 = vmatprep.subr.mxu0 0.0
        %2576 = vmatpush2.msra.mxu0 0.0
        %2577 = vmatprep.subr.mxu0 0.0
        %2578 = vmatpush2.msra.mxu0 0.0
        %2579 = vmatprep.subr.mxu0 0.0
        %2580 = vmatpush2.msra.mxu0 0.0
        %2581 = vmatprep.subr.mxu0 0.0
        %2582 = vmatpush2.msra.mxu0 0.0
        %2583 = vmatprep.subr.mxu0 0.0
        %2584 = vmatpush2.msra.mxu0 0.0
        %2585 = vmatprep.subr.mxu0 0.0
        %2586 = vmatpush2.msra.mxu0 0.0
        %2587 = vmatprep.subr.mxu0 0.0
        %2588 = vmatpush2.msra.mxu0 0.0
        %2589 = vmatprep.subr.mxu0 0.0
        %2590 = vmatpush2.msra.mxu0 0.0
        %2591 = vmatprep.subr.mxu0 0.0
        %2592 = vmatpush2.msra.mxu0 0.0
        %2593 = vmatprep.subr.mxu0 0.0
        %2594 = vmatpush2.msra.mxu0 0.0
        %2595 = vmatprep.subr.mxu0 0.0
        %2596 = vmatpush2.msra.mxu0 0.0
        %2597 = vmatprep.subr.mxu0 0.0
        %2598 = vmatpush2.msra.mxu0 0.0
        %2599 = vmatprep.subr.mxu0 0.0
        %2600 = vmatpush2.msra.mxu0 0.0
        %2601 = vmatprep.mubr.f32.mxu0 0.0
        %2602 = vmatmul.mubr.f32.gmra.mxu0 %v2376
        %v2603 = vpop.f32.mrf.mxu0
        %v2604 = vadd.f32 %v2459, %v2603
        %v2605 = vpop.f32.mrf.mxu0
        %2606 = vmatprep.mubr.f32.mxu0 0.0
        %2607 = vmatmul.mubr.f32.gmra.mxu0 %v2377
        %v2608 = vpop.f32.mrf.mxu0
        %v2609 = vadd.f32 %v2464, %v2608
        %v2610 = vpop.f32.mrf.mxu0
        %2611 = vmatprep.mubr.f32.mxu0 0.0
        %2612 = vmatmul.mubr.f32.gmra.mxu0 %v2378
        %v2613 = vpop.f32.mrf.mxu0
        %v2614 = vadd.f32 %v2469, %v2613
        %v2615 = vpop.f32.mrf.mxu0
        %2616 = vmatprep.mubr.f32.mxu0 0.0
        %2617 = vmatmul.mubr.f32.gmra.mxu0 %v2379
        %v2618 = vpop.f32.mrf.mxu0
        %v2619 = vadd.f32 %v2474, %v2618
        %v2620 = vpop.f32.mrf.mxu0
        %2621 = vmatprep.mubr.f32.mxu0 0.0
        %2622 = vmatmul.mubr.f32.gmra.mxu0 %v2380
        %v2623 = vpop.f32.mrf.mxu0
        %v2624 = vadd.f32 %v2479, %v2623
        %v2625 = vpop.f32.mrf.mxu0
        %2626 = vmatprep.mubr.f32.mxu0 0.0
        %2627 = vmatmul.mubr.f32.gmra.mxu0 %v2381
        %v2628 = vpop.f32.mrf.mxu0
        %v2629 = vadd.f32 %v2484, %v2628
        %v2630 = vpop.f32.mrf.mxu0
        %2631 = vmatprep.mubr.f32.mxu0 0.0
        %2632 = vmatmul.mubr.f32.gmra.mxu0 %v2382
        %v2633 = vpop.f32.mrf.mxu0
        %v2634 = vadd.f32 %v2489, %v2633
        %v2635 = vpop.f32.mrf.mxu0
        %2636 = vmatprep.mubr.f32.mxu0 0.0
        %2637 = vmatmul.mubr.f32.gmra.mxu0 %v2383
        %v2638 = vpop.f32.mrf.mxu0
        %v2639 = vadd.f32 %v2494, %v2638
        %v2640 = vpop.f32.mrf.mxu0
        %2641 = vmatprep.mubr.f32.mxu0 0.0
        %2642 = vmatmul.mubr.f32.gmra.mxu0 %v2384
        %v2643 = vpop.f32.mrf.mxu0
        %v2644 = vadd.f32 %v2499, %v2643
        %v2645 = vpop.f32.mrf.mxu0
        %2646 = vmatprep.mubr.f32.mxu0 0.0
        %2647 = vmatmul.mubr.f32.gmra.mxu0 %v2385
        %v2648 = vpop.f32.mrf.mxu0
        %v2649 = vadd.f32 %v2504, %v2648
        %v2650 = vpop.f32.mrf.mxu0
        %2651 = vmatprep.mubr.f32.mxu0 0.0
        %2652 = vmatmul.mubr.f32.gmra.mxu0 %v2386
        %v2653 = vpop.f32.mrf.mxu0
        %v2654 = vadd.f32 %v2509, %v2653
        %v2655 = vpop.f32.mrf.mxu0
        %2656 = vmatprep.mubr.f32.mxu0 0.0
        %2657 = vmatmul.mubr.f32.gmra.mxu0 %v2387
        %v2658 = vpop.f32.mrf.mxu0
        %v2659 = vadd.f32 %v2514, %v2658
        %v2660 = vpop.f32.mrf.mxu0
        %2661 = vmatprep.mubr.f32.mxu0 0.0
        %2662 = vmatmul.mubr.f32.gmra.mxu0 %v2388
        %v2663 = vpop.f32.mrf.mxu0
        %v2664 = vadd.f32 %v2519, %v2663
        %v2665 = vpop.f32.mrf.mxu0
        %2666 = vmatprep.mubr.f32.mxu0 0.0
        %2667 = vmatmul.mubr.f32.gmra.mxu0 %v2389
        %v2668 = vpop.f32.mrf.mxu0
        %v2669 = vadd.f32 %v2524, %v2668
        %v2670 = vpop.f32.mrf.mxu0
        %2671 = vmatprep.mubr.f32.mxu0 0.0
        %2672 = vmatmul.mubr.f32.gmra.mxu0 %v2390
        %v2673 = vpop.f32.mrf.mxu0
        %v2674 = vadd.f32 %v2529, %v2673
        %v2675 = vpop.f32.mrf.mxu0
        %2676 = vmatprep.mubr.f32.mxu0 0.0
        %2677 = vmatmul.mubr.f32.gmra.mxu0 %v2391
        %v2678 = vpop.f32.mrf.mxu0
        %v2679 = vadd.f32 %v2534, %v2678
        %v2680 = vpop.f32.mrf.mxu0
        %2681 = vdwg.mxu0
        %v2682 = vlaneseq
        %v2683 = vshrl.u32 %v2682, 7
        %v2684 = vsub.s32 2, %v2683
        %v2685 = vrot.slane %v1692, %v2684
        %v2686 = vlaneseq
        %v2687 = vshrl.u32 %v2686, 7
        %v2688 = vsub.s32 2, %v2687
        %v2689 = vrot.slane %v1693, %v2688
        %v2690 = vlaneseq
        %v2691 = vshrl.u32 %v2690, 7
        %v2692 = vsub.s32 2, %v2691
        %v2693 = vrot.slane %v1694, %v2692
        %v2694 = vlaneseq
        %v2695 = vshrl.u32 %v2694, 7
        %v2696 = vsub.s32 2, %v2695
        %v2697 = vrot.slane %v1695, %v2696
        %v2698 = vlaneseq
        %v2699 = vshrl.u32 %v2698, 7
        %v2700 = vsub.s32 2, %v2699
        %v2701 = vrot.slane %v1696, %v2700
        %v2702 = vlaneseq
        %v2703 = vshrl.u32 %v2702, 7
        %v2704 = vsub.s32 2, %v2703
        %v2705 = vrot.slane %v1697, %v2704
        %v2706 = vlaneseq
        %v2707 = vshrl.u32 %v2706, 7
        %v2708 = vsub.s32 2, %v2707
        %v2709 = vrot.slane %v1698, %v2708
        %v2710 = vlaneseq
        %v2711 = vshrl.u32 %v2710, 7
        %v2712 = vsub.s32 2, %v2711
        %v2713 = vrot.slane %v1699, %v2712
        %v2714 = vmul.f32 %v2604, %v2685
        %v2715 = vmul.f32 %v2609, %v2685
        %v2716 = vmul.f32 %v2614, %v2689
        %v2717 = vmul.f32 %v2619, %v2689
        %v2718 = vmul.f32 %v2624, %v2693
        %v2719 = vmul.f32 %v2629, %v2693
        %v2720 = vmul.f32 %v2634, %v2697
        %v2721 = vmul.f32 %v2639, %v2697
        %v2722 = vmul.f32 %v2644, %v2701
        %v2723 = vmul.f32 %v2649, %v2701
        %v2724 = vmul.f32 %v2654, %v2705
        %v2725 = vmul.f32 %v2659, %v2705
        %v2726 = vmul.f32 %v2664, %v2709
        %v2727 = vmul.f32 %v2669, %v2709
        %v2728 = vmul.f32 %v2674, %v2713
        %v2729 = vmul.f32 %v2679, %v2713
        %v2730 = vlaneseq
        %v2731 = vshrl.u32 %v2730, 7
        %v2732 = vsub.s32 3, %v2731
        %v2733 = vrot.slane %v1692, %v2732
        %v2734 = vlaneseq
        %v2735 = vshrl.u32 %v2734, 7
        %v2736 = vsub.s32 3, %v2735
        %v2737 = vrot.slane %v1693, %v2736
        %v2738 = vlaneseq
        %v2739 = vshrl.u32 %v2738, 7
        %v2740 = vsub.s32 3, %v2739
        %v2741 = vrot.slane %v1694, %v2740
        %v2742 = vlaneseq
        %v2743 = vshrl.u32 %v2742, 7
        %v2744 = vsub.s32 3, %v2743
        %v2745 = vrot.slane %v1695, %v2744
        %v2746 = vlaneseq
        %v2747 = vshrl.u32 %v2746, 7
        %v2748 = vsub.s32 3, %v2747
        %v2749 = vrot.slane %v1696, %v2748
        %v2750 = vlaneseq
        %v2751 = vshrl.u32 %v2750, 7
        %v2752 = vsub.s32 3, %v2751
        %v2753 = vrot.slane %v1697, %v2752
        %v2754 = vlaneseq
        %v2755 = vshrl.u32 %v2754, 7
        %v2756 = vsub.s32 3, %v2755
        %v2757 = vrot.slane %v1698, %v2756
        %v2758 = vlaneseq
        %v2759 = vshrl.u32 %v2758, 7
        %v2760 = vsub.s32 3, %v2759
        %v2761 = vrot.slane %v1699, %v2760
        %v2762 = vadd.f32 %v2714, %v2733
        %v2763 = vadd.f32 %v2715, %v2733
        %v2764 = vadd.f32 %v2716, %v2737
        %v2765 = vadd.f32 %v2717, %v2737
        %v2766 = vadd.f32 %v2718, %v2741
        %v2767 = vadd.f32 %v2719, %v2741
        %v2768 = vadd.f32 %v2720, %v2745
        %v2769 = vadd.f32 %v2721, %v2745
        %v2770 = vadd.f32 %v2722, %v2749
        %v2771 = vadd.f32 %v2723, %v2749
        %v2772 = vadd.f32 %v2724, %v2753
        %v2773 = vadd.f32 %v2725, %v2753
        %v2774 = vadd.f32 %v2726, %v2757
        %v2775 = vadd.f32 %v2727, %v2757
        %v2776 = vadd.f32 %v2728, %v2761
        %v2777 = vadd.f32 %v2729, %v2761
        %v2778 = vadd.f32 %v1675, %v2762
        %v2779 = vadd.f32 %v1676, %v2763
        %v2780 = vadd.f32 %v1677, %v2764
        %v2781 = vadd.f32 %v1678, %v2765
        %v2782 = vadd.f32 %v1679, %v2766
        %v2783 = vadd.f32 %v1680, %v2767
        %v2784 = vadd.f32 %v1681, %v2768
        %v2785 = vadd.f32 %v1682, %v2769
        %v2786 = vadd.f32 %v1683, %v2770
        %v2787 = vadd.f32 %v1684, %v2771
        %v2788 = vadd.f32 %v1685, %v2772
        %v2789 = vadd.f32 %v1686, %v2773
        %v2790 = vadd.f32 %v1687, %v2774
        %v2791 = vadd.f32 %v1688, %v2775
        %v2792 = vadd.f32 %v1689, %v2776
        %v2793 = vadd.f32 %v1690, %v2777
        %s2794 = scalar_lea.vmem %s292, 64 [#allocation2]
        %v2795 = vld [vmem:[%s2794] sm:$0xf]
        %v2796 = vld [vmem:[%s2794 + $0x4] sm:$0xf]
        %v2797 = vld [vmem:[%s2794 + $0x8] sm:$0xf]
        %v2798 = vld [vmem:[%s2794 + $0xc] sm:$0xf]
        %v2799 = vld [vmem:[%s2794 + $0x10] sm:$0xf]
        %v2800 = vld [vmem:[%s2794 + $0x14] sm:$0xf]
        %v2801 = vld [vmem:[%s2794 + $0x18] sm:$0xf]
        %v2802 = vld [vmem:[%s2794 + $0x1c] sm:$0xf]
        %s2803 = scalar_lea.vmem %s2, 1536
        %v2804 = vld [vmem:[%s2803] sm:$0xff]
        %v2805 = vld [vmem:[%s2803 + $0x8] sm:$0xff]
        %v2806 = vld [vmem:[%s2803 + $0x10] sm:$0xff]
        %v2807 = vld [vmem:[%s2803 + $0x18] sm:$0xff]
        %v2808 = vld [vmem:[%s2803 + $0x20] sm:$0xff]
        %v2809 = vld [vmem:[%s2803 + $0x28] sm:$0xff]
        %v2810 = vld [vmem:[%s2803 + $0x30] sm:$0xff]
        %v2811 = vld [vmem:[%s2803 + $0x38] sm:$0xff]
        %v2812 = vld [vmem:[%s2803 + $0x40] sm:$0xff]
        %v2813 = vld [vmem:[%s2803 + $0x48] sm:$0xff]
        %v2814 = vld [vmem:[%s2803 + $0x50] sm:$0xff]
        %v2815 = vld [vmem:[%s2803 + $0x58] sm:$0xff]
        %v2816 = vld [vmem:[%s2803 + $0x60] sm:$0xff]
        %v2817 = vld [vmem:[%s2803 + $0x68] sm:$0xff]
        %v2818 = vld [vmem:[%s2803 + $0x70] sm:$0xff]
        %v2819 = vld [vmem:[%s2803 + $0x78] sm:$0xff]
        %v2820 = vld [vmem:[%s2803 + $0x80] sm:$0xff]
        %v2821 = vld [vmem:[%s2803 + $0x88] sm:$0xff]
        %v2822 = vld [vmem:[%s2803 + $0x90] sm:$0xff]
        %v2823 = vld [vmem:[%s2803 + $0x98] sm:$0xff]
        %v2824 = vld [vmem:[%s2803 + $0xa0] sm:$0xff]
        %v2825 = vld [vmem:[%s2803 + $0xa8] sm:$0xff]
        %v2826 = vld [vmem:[%s2803 + $0xb0] sm:$0xff]
        %v2827 = vld [vmem:[%s2803 + $0xb8] sm:$0xff]
        %v2828 = vld [vmem:[%s2803 + $0xc0] sm:$0xff]
        %v2829 = vld [vmem:[%s2803 + $0xc8] sm:$0xff]
        %v2830 = vld [vmem:[%s2803 + $0xd0] sm:$0xff]
        %v2831 = vld [vmem:[%s2803 + $0xd8] sm:$0xff]
        %v2832 = vld [vmem:[%s2803 + $0xe0] sm:$0xff]
        %v2833 = vld [vmem:[%s2803 + $0xe8] sm:$0xff]
        %v2834 = vld [vmem:[%s2803 + $0xf0] sm:$0xff]
        %v2835 = vld [vmem:[%s2803 + $0xf8] sm:$0xff]
        %v2836 = vld [vmem:[%s2803 + $0x100] sm:$0xff]
        %v2837 = vld [vmem:[%s2803 + $0x108] sm:$0xff]
        %v2838 = vld [vmem:[%s2803 + $0x110] sm:$0xff]
        %v2839 = vld [vmem:[%s2803 + $0x118] sm:$0xff]
        %v2840 = vld [vmem:[%s2803 + $0x120] sm:$0xff]
        %v2841 = vld [vmem:[%s2803 + $0x128] sm:$0xff]
        %v2842 = vld [vmem:[%s2803 + $0x130] sm:$0xff]
        %v2843 = vld [vmem:[%s2803 + $0x138] sm:$0xff]
        %v2844 = vld [vmem:[%s2803 + $0x140] sm:$0xff]
        %v2845 = vld [vmem:[%s2803 + $0x148] sm:$0xff]
        %v2846 = vld [vmem:[%s2803 + $0x150] sm:$0xff]
        %v2847 = vld [vmem:[%s2803 + $0x158] sm:$0xff]
        %v2848 = vld [vmem:[%s2803 + $0x160] sm:$0xff]
        %v2849 = vld [vmem:[%s2803 + $0x168] sm:$0xff]
        %v2850 = vld [vmem:[%s2803 + $0x170] sm:$0xff]
        %v2851 = vld [vmem:[%s2803 + $0x178] sm:$0xff]
        %v2852 = vrot.slane %v2778, 7
        %v2853 = vrot.slane %v2779, 7
        %v2854 = vrot.slane %v2780, 7
        %v2855 = vrot.slane %v2781, 7
        %v2856 = vrot.slane %v2782, 7
        %v2857 = vrot.slane %v2783, 7
        %v2858 = vrot.slane %v2784, 7
        %v2859 = vrot.slane %v2785, 7
        %v2860 = vrot.slane %v2786, 7
        %v2861 = vrot.slane %v2787, 7
        %v2862 = vrot.slane %v2788, 7
        %v2863 = vrot.slane %v2789, 7
        %v2864 = vrot.slane %v2790, 7
        %v2865 = vrot.slane %v2791, 7
        %v2866 = vrot.slane %v2792, 7
        %v2867 = vrot.slane %v2793, 7
        %v2868 = vsel %vm660, %v2866, %v2867
        %v2869 = vsel %vm660, %v2865, %v2866
        %v2870 = vsel %vm660, %v2864, %v2865
        %v2871 = vsel %vm660, %v2863, %v2864
        %v2872 = vsel %vm660, %v2862, %v2863
        %v2873 = vsel %vm660, %v2861, %v2862
        %v2874 = vsel %vm660, %v2860, %v2861
        %v2875 = vsel %vm660, %v2859, %v2860
        %v2876 = vsel %vm660, %v2858, %v2859
        %v2877 = vsel %vm660, %v2857, %v2858
        %v2878 = vsel %vm660, %v2856, %v2857
        %v2879 = vsel %vm660, %v2855, %v2856
        %v2880 = vsel %vm660, %v2854, %v2855
        %v2881 = vsel %vm660, %v2853, %v2854
        %v2882 = vsel %vm660, %v2852, %v2853
        %v2883 = vsel %vm660, %v2867, %v2852
        %v2884 = vsel %vm540, %v2883, 0.0
        %v2885 = vsel %vm541, %v2882, 0.0
        %v2886 = vsel %vm542, %v2881, 0.0
        %v2887 = vsel %vm543, %v2880, 0.0
        %v2888 = vsel %vm544, %v2879, 0.0
        %v2889 = vsel %vm545, %v2878, 0.0
        %v2890 = vsel %vm546, %v2877, 0.0
        %v2891 = vsel %vm547, %v2876, 0.0
        %v2892 = vsel %vm548, %v2875, 0.0
        %v2893 = vsel %vm549, %v2874, 0.0
        %v2894 = vsel %vm550, %v2873, 0.0
        %v2895 = vsel %vm551, %v2872, 0.0
        %v2896 = vsel %vm552, %v2871, 0.0
        %v2897 = vsel %vm553, %v2870, 0.0
        %v2898 = vsel %vm554, %v2869, 0.0
        %v2899 = vsel %vm555, %v2868, 0.0
        %v2900 = vrot.slane %v2778, 1
        %v2901 = vrot.slane %v2779, 1
        %v2902 = vrot.slane %v2780, 1
        %v2903 = vrot.slane %v2781, 1
        %v2904 = vrot.slane %v2782, 1
        %v2905 = vrot.slane %v2783, 1
        %v2906 = vrot.slane %v2784, 1
        %v2907 = vrot.slane %v2785, 1
        %v2908 = vrot.slane %v2786, 1
        %v2909 = vrot.slane %v2787, 1
        %v2910 = vrot.slane %v2788, 1
        %v2911 = vrot.slane %v2789, 1
        %v2912 = vrot.slane %v2790, 1
        %v2913 = vrot.slane %v2791, 1
        %v2914 = vrot.slane %v2792, 1
        %v2915 = vrot.slane %v2793, 1
        %v2916 = vsel %vm709, %v2914, %v2915
        %v2917 = vsel %vm709, %v2913, %v2914
        %v2918 = vsel %vm709, %v2912, %v2913
        %v2919 = vsel %vm709, %v2911, %v2912
        %v2920 = vsel %vm709, %v2910, %v2911
        %v2921 = vsel %vm709, %v2909, %v2910
        %v2922 = vsel %vm709, %v2908, %v2909
        %v2923 = vsel %vm709, %v2907, %v2908
        %v2924 = vsel %vm709, %v2906, %v2907
        %v2925 = vsel %vm709, %v2905, %v2906
        %v2926 = vsel %vm709, %v2904, %v2905
        %v2927 = vsel %vm709, %v2903, %v2904
        %v2928 = vsel %vm709, %v2902, %v2903
        %v2929 = vsel %vm709, %v2901, %v2902
        %v2930 = vsel %vm709, %v2900, %v2901
        %v2931 = vsel %vm709, %v2915, %v2900
        %v2932 = vsel %vm556, %v2930, 0.0
        %v2933 = vsel %vm557, %v2929, 0.0
        %v2934 = vsel %vm558, %v2928, 0.0
        %v2935 = vsel %vm559, %v2927, 0.0
        %v2936 = vsel %vm560, %v2926, 0.0
        %v2937 = vsel %vm561, %v2925, 0.0
        %v2938 = vsel %vm562, %v2924, 0.0
        %v2939 = vsel %vm563, %v2923, 0.0
        %v2940 = vsel %vm564, %v2922, 0.0
        %v2941 = vsel %vm565, %v2921, 0.0
        %v2942 = vsel %vm566, %v2920, 0.0
        %v2943 = vsel %vm567, %v2919, 0.0
        %v2944 = vsel %vm568, %v2918, 0.0
        %v2945 = vsel %vm569, %v2917, 0.0
        %v2946 = vsel %vm570, %v2916, 0.0
        %v2947 = vsel %vm571, %v2931, 0.0
        %2948 = vmatprep.subr.mxu0 0.0
        %2949 = vmatpush1.msra.mxu0 %v2819
        %2950 = vmatprep.subr.mxu0 0.0
        %2951 = vmatpush1.msra.mxu0 %v2818
        %2952 = vmatprep.subr.mxu0 0.0
        %2953 = vmatpush1.msra.mxu0 %v2817
        %2954 = vmatprep.subr.mxu0 0.0
        %2955 = vmatpush1.msra.mxu0 %v2816
        %2956 = vmatprep.subr.mxu0 0.0
        %2957 = vmatpush1.msra.mxu0 %v2815
        %2958 = vmatprep.subr.mxu0 0.0
        %2959 = vmatpush1.msra.mxu0 %v2814
        %2960 = vmatprep.subr.mxu0 0.0
        %2961 = vmatpush1.msra.mxu0 %v2813
        %2962 = vmatprep.subr.mxu0 0.0
        %2963 = vmatpush1.msra.mxu0 %v2812
        %2964 = vmatprep.subr.mxu0 0.0
        %2965 = vmatpush1.msra.mxu0 %v2811
        %2966 = vmatprep.subr.mxu0 0.0
        %2967 = vmatpush1.msra.mxu0 %v2810
        %2968 = vmatprep.subr.mxu0 0.0
        %2969 = vmatpush1.msra.mxu0 %v2809
        %2970 = vmatprep.subr.mxu0 0.0
        %2971 = vmatpush1.msra.mxu0 %v2808
        %2972 = vmatprep.subr.mxu0 0.0
        %2973 = vmatpush1.msra.mxu0 %v2807
        %2974 = vmatprep.subr.mxu0 0.0
        %2975 = vmatpush1.msra.mxu0 %v2806
        %2976 = vmatprep.subr.mxu0 0.0
        %2977 = vmatpush1.msra.mxu0 %v2805
        %2978 = vmatprep.subr.mxu0 0.0
        %2979 = vmatpush1.msra.mxu0 %v2804
        %2980 = vmatprep.subr.mxu0 0.0
        %2981 = vmatpush2.msra.mxu0 %v2835
        %2982 = vmatprep.subr.mxu0 0.0
        %2983 = vmatpush2.msra.mxu0 %v2834
        %2984 = vmatprep.subr.mxu0 0.0
        %2985 = vmatpush2.msra.mxu0 %v2833
        %2986 = vmatprep.subr.mxu0 0.0
        %2987 = vmatpush2.msra.mxu0 %v2832
        %2988 = vmatprep.subr.mxu0 0.0
        %2989 = vmatpush2.msra.mxu0 %v2831
        %2990 = vmatprep.subr.mxu0 0.0
        %2991 = vmatpush2.msra.mxu0 %v2830
        %2992 = vmatprep.subr.mxu0 0.0
        %2993 = vmatpush2.msra.mxu0 %v2829
        %2994 = vmatprep.subr.mxu0 0.0
        %2995 = vmatpush2.msra.mxu0 %v2828
        %2996 = vmatprep.subr.mxu0 0.0
        %2997 = vmatpush2.msra.mxu0 %v2827
        %2998 = vmatprep.subr.mxu0 0.0
        %2999 = vmatpush2.msra.mxu0 %v2826
        %3000 = vmatprep.subr.mxu0 0.0
        %3001 = vmatpush2.msra.mxu0 %v2825
        %3002 = vmatprep.subr.mxu0 0.0
        %3003 = vmatpush2.msra.mxu0 %v2824
        %3004 = vmatprep.subr.mxu0 0.0
        %3005 = vmatpush2.msra.mxu0 %v2823
        %3006 = vmatprep.subr.mxu0 0.0
        %3007 = vmatpush2.msra.mxu0 %v2822
        %3008 = vmatprep.subr.mxu0 0.0
        %3009 = vmatpush2.msra.mxu0 %v2821
        %3010 = vmatprep.subr.mxu0 0.0
        %3011 = vmatpush2.msra.mxu0 %v2820
        %3012 = vmatprep.mubr.f32.mxu0 %v2778
        %3013 = vmatmul.mubr.f32.gmra.mxu0 %v2884
        %v3014 = vpop.f32.mrf.mxu0
        %v3015 = vadd.f32 0.0, %v3014
        %v3016 = vpop.f32.mrf.mxu0
        %3017 = vmatprep.mubr.f32.mxu0 %v2779
        %3018 = vmatmul.mubr.f32.gmra.mxu0 %v2885
        %v3019 = vpop.f32.mrf.mxu0
        %v3020 = vadd.f32 0.0, %v3019
        %v3021 = vpop.f32.mrf.mxu0
        %3022 = vmatprep.mubr.f32.mxu0 %v2780
        %3023 = vmatmul.mubr.f32.gmra.mxu0 %v2886
        %v3024 = vpop.f32.mrf.mxu0
        %v3025 = vadd.f32 0.0, %v3024
        %v3026 = vpop.f32.mrf.mxu0
        %3027 = vmatprep.mubr.f32.mxu0 %v2781
        %3028 = vmatmul.mubr.f32.gmra.mxu0 %v2887
        %v3029 = vpop.f32.mrf.mxu0
        %v3030 = vadd.f32 0.0, %v3029
        %v3031 = vpop.f32.mrf.mxu0
        %3032 = vmatprep.mubr.f32.mxu0 %v2782
        %3033 = vmatmul.mubr.f32.gmra.mxu0 %v2888
        %v3034 = vpop.f32.mrf.mxu0
        %v3035 = vadd.f32 0.0, %v3034
        %v3036 = vpop.f32.mrf.mxu0
        %3037 = vmatprep.mubr.f32.mxu0 %v2783
        %3038 = vmatmul.mubr.f32.gmra.mxu0 %v2889
        %v3039 = vpop.f32.mrf.mxu0
        %v3040 = vadd.f32 0.0, %v3039
        %v3041 = vpop.f32.mrf.mxu0
        %3042 = vmatprep.mubr.f32.mxu0 %v2784
        %3043 = vmatmul.mubr.f32.gmra.mxu0 %v2890
        %v3044 = vpop.f32.mrf.mxu0
        %v3045 = vadd.f32 0.0, %v3044
        %v3046 = vpop.f32.mrf.mxu0
        %3047 = vmatprep.mubr.f32.mxu0 %v2785
        %3048 = vmatmul.mubr.f32.gmra.mxu0 %v2891
        %v3049 = vpop.f32.mrf.mxu0
        %v3050 = vadd.f32 0.0, %v3049
        %v3051 = vpop.f32.mrf.mxu0
        %3052 = vmatprep.mubr.f32.mxu0 %v2786
        %3053 = vmatmul.mubr.f32.gmra.mxu0 %v2892
        %v3054 = vpop.f32.mrf.mxu0
        %v3055 = vadd.f32 0.0, %v3054
        %v3056 = vpop.f32.mrf.mxu0
        %3057 = vmatprep.mubr.f32.mxu0 %v2787
        %3058 = vmatmul.mubr.f32.gmra.mxu0 %v2893
        %v3059 = vpop.f32.mrf.mxu0
        %v3060 = vadd.f32 0.0, %v3059
        %v3061 = vpop.f32.mrf.mxu0
        %3062 = vmatprep.mubr.f32.mxu0 %v2788
        %3063 = vmatmul.mubr.f32.gmra.mxu0 %v2894
        %v3064 = vpop.f32.mrf.mxu0
        %v3065 = vadd.f32 0.0, %v3064
        %v3066 = vpop.f32.mrf.mxu0
        %3067 = vmatprep.mubr.f32.mxu0 %v2789
        %3068 = vmatmul.mubr.f32.gmra.mxu0 %v2895
        %v3069 = vpop.f32.mrf.mxu0
        %v3070 = vadd.f32 0.0, %v3069
        %v3071 = vpop.f32.mrf.mxu0
        %3072 = vmatprep.mubr.f32.mxu0 %v2790
        %3073 = vmatmul.mubr.f32.gmra.mxu0 %v2896
        %v3074 = vpop.f32.mrf.mxu0
        %v3075 = vadd.f32 0.0, %v3074
        %v3076 = vpop.f32.mrf.mxu0
        %3077 = vmatprep.mubr.f32.mxu0 %v2791
        %3078 = vmatmul.mubr.f32.gmra.mxu0 %v2897
        %v3079 = vpop.f32.mrf.mxu0
        %v3080 = vadd.f32 0.0, %v3079
        %v3081 = vpop.f32.mrf.mxu0
        %3082 = vmatprep.mubr.f32.mxu0 %v2792
        %3083 = vmatmul.mubr.f32.gmra.mxu0 %v2898
        %v3084 = vpop.f32.mrf.mxu0
        %v3085 = vadd.f32 0.0, %v3084
        %v3086 = vpop.f32.mrf.mxu0
        %3087 = vmatprep.mubr.f32.mxu0 %v2793
        %3088 = vmatmul.mubr.f32.gmra.mxu0 %v2899
        %v3089 = vpop.f32.mrf.mxu0
        %v3090 = vadd.f32 0.0, %v3089
        %v3091 = vpop.f32.mrf.mxu0
        %3092 = vdwg.mxu0
        %3093 = vmatprep.subr.mxu0 0.0
        %3094 = vmatpush1.msra.mxu0 %v2851
        %3095 = vmatprep.subr.mxu0 0.0
        %3096 = vmatpush1.msra.mxu0 %v2850
        %3097 = vmatprep.subr.mxu0 0.0
        %3098 = vmatpush1.msra.mxu0 %v2849
        %3099 = vmatprep.subr.mxu0 0.0
        %3100 = vmatpush1.msra.mxu0 %v2848
        %3101 = vmatprep.subr.mxu0 0.0
        %3102 = vmatpush1.msra.mxu0 %v2847
        %3103 = vmatprep.subr.mxu0 0.0
        %3104 = vmatpush1.msra.mxu0 %v2846
        %3105 = vmatprep.subr.mxu0 0.0
        %3106 = vmatpush1.msra.mxu0 %v2845
        %3107 = vmatprep.subr.mxu0 0.0
        %3108 = vmatpush1.msra.mxu0 %v2844
        %3109 = vmatprep.subr.mxu0 0.0
        %3110 = vmatpush1.msra.mxu0 %v2843
        %3111 = vmatprep.subr.mxu0 0.0
        %3112 = vmatpush1.msra.mxu0 %v2842
        %3113 = vmatprep.subr.mxu0 0.0
        %3114 = vmatpush1.msra.mxu0 %v2841
        %3115 = vmatprep.subr.mxu0 0.0
        %3116 = vmatpush1.msra.mxu0 %v2840
        %3117 = vmatprep.subr.mxu0 0.0
        %3118 = vmatpush1.msra.mxu0 %v2839
        %3119 = vmatprep.subr.mxu0 0.0
        %3120 = vmatpush1.msra.mxu0 %v2838
        %3121 = vmatprep.subr.mxu0 0.0
        %3122 = vmatpush1.msra.mxu0 %v2837
        %3123 = vmatprep.subr.mxu0 0.0
        %3124 = vmatpush1.msra.mxu0 %v2836
        %3125 = vmatprep.subr.mxu0 0.0
        %3126 = vmatpush2.msra.mxu0 0.0
        %3127 = vmatprep.subr.mxu0 0.0
        %3128 = vmatpush2.msra.mxu0 0.0
        %3129 = vmatprep.subr.mxu0 0.0
        %3130 = vmatpush2.msra.mxu0 0.0
        %3131 = vmatprep.subr.mxu0 0.0
        %3132 = vmatpush2.msra.mxu0 0.0
        %3133 = vmatprep.subr.mxu0 0.0
        %3134 = vmatpush2.msra.mxu0 0.0
        %3135 = vmatprep.subr.mxu0 0.0
        %3136 = vmatpush2.msra.mxu0 0.0
        %3137 = vmatprep.subr.mxu0 0.0
        %3138 = vmatpush2.msra.mxu0 0.0
        %3139 = vmatprep.subr.mxu0 0.0
        %3140 = vmatpush2.msra.mxu0 0.0
        %3141 = vmatprep.subr.mxu0 0.0
        %3142 = vmatpush2.msra.mxu0 0.0
        %3143 = vmatprep.subr.mxu0 0.0
        %3144 = vmatpush2.msra.mxu0 0.0
        %3145 = vmatprep.subr.mxu0 0.0
        %3146 = vmatpush2.msra.mxu0 0.0
        %3147 = vmatprep.subr.mxu0 0.0
        %3148 = vmatpush2.msra.mxu0 0.0
        %3149 = vmatprep.subr.mxu0 0.0
        %3150 = vmatpush2.msra.mxu0 0.0
        %3151 = vmatprep.subr.mxu0 0.0
        %3152 = vmatpush2.msra.mxu0 0.0
        %3153 = vmatprep.subr.mxu0 0.0
        %3154 = vmatpush2.msra.mxu0 0.0
        %3155 = vmatprep.subr.mxu0 0.0
        %3156 = vmatpush2.msra.mxu0 0.0
        %3157 = vmatprep.mubr.f32.mxu0 0.0
        %3158 = vmatmul.mubr.f32.gmra.mxu0 %v2932
        %v3159 = vpop.f32.mrf.mxu0
        %v3160 = vadd.f32 %v3015, %v3159
        %v3161 = vpop.f32.mrf.mxu0
        %3162 = vmatprep.mubr.f32.mxu0 0.0
        %3163 = vmatmul.mubr.f32.gmra.mxu0 %v2933
        %v3164 = vpop.f32.mrf.mxu0
        %v3165 = vadd.f32 %v3020, %v3164
        %v3166 = vpop.f32.mrf.mxu0
        %3167 = vmatprep.mubr.f32.mxu0 0.0
        %3168 = vmatmul.mubr.f32.gmra.mxu0 %v2934
        %v3169 = vpop.f32.mrf.mxu0
        %v3170 = vadd.f32 %v3025, %v3169
        %v3171 = vpop.f32.mrf.mxu0
        %3172 = vmatprep.mubr.f32.mxu0 0.0
        %3173 = vmatmul.mubr.f32.gmra.mxu0 %v2935
        %v3174 = vpop.f32.mrf.mxu0
        %v3175 = vadd.f32 %v3030, %v3174
        %v3176 = vpop.f32.mrf.mxu0
        %3177 = vmatprep.mubr.f32.mxu0 0.0
        %3178 = vmatmul.mubr.f32.gmra.mxu0 %v2936
        %v3179 = vpop.f32.mrf.mxu0
        %v3180 = vadd.f32 %v3035, %v3179
        %v3181 = vpop.f32.mrf.mxu0
        %3182 = vmatprep.mubr.f32.mxu0 0.0
        %3183 = vmatmul.mubr.f32.gmra.mxu0 %v2937
        %v3184 = vpop.f32.mrf.mxu0
        %v3185 = vadd.f32 %v3040, %v3184
        %v3186 = vpop.f32.mrf.mxu0
        %3187 = vmatprep.mubr.f32.mxu0 0.0
        %3188 = vmatmul.mubr.f32.gmra.mxu0 %v2938
        %v3189 = vpop.f32.mrf.mxu0
        %v3190 = vadd.f32 %v3045, %v3189
        %v3191 = vpop.f32.mrf.mxu0
        %3192 = vmatprep.mubr.f32.mxu0 0.0
        %3193 = vmatmul.mubr.f32.gmra.mxu0 %v2939
        %v3194 = vpop.f32.mrf.mxu0
        %v3195 = vadd.f32 %v3050, %v3194
        %v3196 = vpop.f32.mrf.mxu0
        %3197 = vmatprep.mubr.f32.mxu0 0.0
        %3198 = vmatmul.mubr.f32.gmra.mxu0 %v2940
        %v3199 = vpop.f32.mrf.mxu0
        %v3200 = vadd.f32 %v3055, %v3199
        %v3201 = vpop.f32.mrf.mxu0
        %3202 = vmatprep.mubr.f32.mxu0 0.0
        %3203 = vmatmul.mubr.f32.gmra.mxu0 %v2941
        %v3204 = vpop.f32.mrf.mxu0
        %v3205 = vadd.f32 %v3060, %v3204
        %v3206 = vpop.f32.mrf.mxu0
        %3207 = vmatprep.mubr.f32.mxu0 0.0
        %3208 = vmatmul.mubr.f32.gmra.mxu0 %v2942
        %v3209 = vpop.f32.mrf.mxu0
        %v3210 = vadd.f32 %v3065, %v3209
        %v3211 = vpop.f32.mrf.mxu0
        %3212 = vmatprep.mubr.f32.mxu0 0.0
        %3213 = vmatmul.mubr.f32.gmra.mxu0 %v2943
        %v3214 = vpop.f32.mrf.mxu0
        %v3215 = vadd.f32 %v3070, %v3214
        %v3216 = vpop.f32.mrf.mxu0
        %3217 = vmatprep.mubr.f32.mxu0 0.0
        %3218 = vmatmul.mubr.f32.gmra.mxu0 %v2944
        %v3219 = vpop.f32.mrf.mxu0
        %v3220 = vadd.f32 %v3075, %v3219
        %v3221 = vpop.f32.mrf.mxu0
        %3222 = vmatprep.mubr.f32.mxu0 0.0
        %3223 = vmatmul.mubr.f32.gmra.mxu0 %v2945
        %v3224 = vpop.f32.mrf.mxu0
        %v3225 = vadd.f32 %v3080, %v3224
        %v3226 = vpop.f32.mrf.mxu0
        %3227 = vmatprep.mubr.f32.mxu0 0.0
        %3228 = vmatmul.mubr.f32.gmra.mxu0 %v2946
        %v3229 = vpop.f32.mrf.mxu0
        %v3230 = vadd.f32 %v3085, %v3229
        %v3231 = vpop.f32.mrf.mxu0
        %3232 = vmatprep.mubr.f32.mxu0 0.0
        %3233 = vmatmul.mubr.f32.gmra.mxu0 %v2947
        %v3234 = vpop.f32.mrf.mxu0
        %v3235 = vadd.f32 %v3090, %v3234
        %v3236 = vpop.f32.mrf.mxu0
        %3237 = vdwg.mxu0
        %v3238 = vlaneseq
        %v3239 = vshrl.u32 %v3238, 7
        %v3240 = vsub.s32 0, %v3239
        %v3241 = vrot.slane %v2795, %v3240
        %v3242 = vlaneseq
        %v3243 = vshrl.u32 %v3242, 7
        %v3244 = vsub.s32 0, %v3243
        %v3245 = vrot.slane %v2796, %v3244
        %v3246 = vlaneseq
        %v3247 = vshrl.u32 %v3246, 7
        %v3248 = vsub.s32 0, %v3247
        %v3249 = vrot.slane %v2797, %v3248
        %v3250 = vlaneseq
        %v3251 = vshrl.u32 %v3250, 7
        %v3252 = vsub.s32 0, %v3251
        %v3253 = vrot.slane %v2798, %v3252
        %v3254 = vlaneseq
        %v3255 = vshrl.u32 %v3254, 7
        %v3256 = vsub.s32 0, %v3255
        %v3257 = vrot.slane %v2799, %v3256
        %v3258 = vlaneseq
        %v3259 = vshrl.u32 %v3258, 7
        %v3260 = vsub.s32 0, %v3259
        %v3261 = vrot.slane %v2800, %v3260
        %v3262 = vlaneseq
        %v3263 = vshrl.u32 %v3262, 7
        %v3264 = vsub.s32 0, %v3263
        %v3265 = vrot.slane %v2801, %v3264
        %v3266 = vlaneseq
        %v3267 = vshrl.u32 %v3266, 7
        %v3268 = vsub.s32 0, %v3267
        %v3269 = vrot.slane %v2802, %v3268
        %v3270 = vmul.f32 %v3160, %v3241
        %v3271 = vmul.f32 %v3165, %v3241
        %v3272 = vmul.f32 %v3170, %v3245
        %v3273 = vmul.f32 %v3175, %v3245
        %v3274 = vmul.f32 %v3180, %v3249
        %v3275 = vmul.f32 %v3185, %v3249
        %v3276 = vmul.f32 %v3190, %v3253
        %v3277 = vmul.f32 %v3195, %v3253
        %v3278 = vmul.f32 %v3200, %v3257
        %v3279 = vmul.f32 %v3205, %v3257
        %v3280 = vmul.f32 %v3210, %v3261
        %v3281 = vmul.f32 %v3215, %v3261
        %v3282 = vmul.f32 %v3220, %v3265
        %v3283 = vmul.f32 %v3225, %v3265
        %v3284 = vmul.f32 %v3230, %v3269
        %v3285 = vmul.f32 %v3235, %v3269
        %v3286 = vlaneseq
        %v3287 = vshrl.u32 %v3286, 7
        %v3288 = vsub.s32 1, %v3287
        %v3289 = vrot.slane %v2795, %v3288
        %v3290 = vlaneseq
        %v3291 = vshrl.u32 %v3290, 7
        %v3292 = vsub.s32 1, %v3291
        %v3293 = vrot.slane %v2796, %v3292
        %v3294 = vlaneseq
        %v3295 = vshrl.u32 %v3294, 7
        %v3296 = vsub.s32 1, %v3295
        %v3297 = vrot.slane %v2797, %v3296
        %v3298 = vlaneseq
        %v3299 = vshrl.u32 %v3298, 7
        %v3300 = vsub.s32 1, %v3299
        %v3301 = vrot.slane %v2798, %v3300
        %v3302 = vlaneseq
        %v3303 = vshrl.u32 %v3302, 7
        %v3304 = vsub.s32 1, %v3303
        %v3305 = vrot.slane %v2799, %v3304
        %v3306 = vlaneseq
        %v3307 = vshrl.u32 %v3306, 7
        %v3308 = vsub.s32 1, %v3307
        %v3309 = vrot.slane %v2800, %v3308
        %v3310 = vlaneseq
        %v3311 = vshrl.u32 %v3310, 7
        %v3312 = vsub.s32 1, %v3311
        %v3313 = vrot.slane %v2801, %v3312
        %v3314 = vlaneseq
        %v3315 = vshrl.u32 %v3314, 7
        %v3316 = vsub.s32 1, %v3315
        %v3317 = vrot.slane %v2802, %v3316
        %v3318 = vadd.f32 %v3270, %v3289
        %v3319 = vadd.f32 %v3271, %v3289
        %v3320 = vadd.f32 %v3272, %v3293
        %v3321 = vadd.f32 %v3273, %v3293
        %v3322 = vadd.f32 %v3274, %v3297
        %v3323 = vadd.f32 %v3275, %v3297
        %v3324 = vadd.f32 %v3276, %v3301
        %v3325 = vadd.f32 %v3277, %v3301
        %v3326 = vadd.f32 %v3278, %v3305
        %v3327 = vadd.f32 %v3279, %v3305
        %v3328 = vadd.f32 %v3280, %v3309
        %v3329 = vadd.f32 %v3281, %v3309
        %v3330 = vadd.f32 %v3282, %v3313
        %v3331 = vadd.f32 %v3283, %v3313
        %v3332 = vadd.f32 %v3284, %v3317
        %v3333 = vadd.f32 %v3285, %v3317
        %v3334 = vmax.f32 %v3318, 0.0
        %v3335 = vmax.f32 %v3319, 0.0
        %v3336 = vmax.f32 %v3320, 0.0
        %v3337 = vmax.f32 %v3321, 0.0
        %v3338 = vmax.f32 %v3322, 0.0
        %v3339 = vmax.f32 %v3323, 0.0
        %v3340 = vmax.f32 %v3324, 0.0
        %v3341 = vmax.f32 %v3325, 0.0
        %v3342 = vmax.f32 %v3326, 0.0
        %v3343 = vmax.f32 %v3327, 0.0
        %v3344 = vmax.f32 %v3328, 0.0
        %v3345 = vmax.f32 %v3329, 0.0
        %v3346 = vmax.f32 %v3330, 0.0
        %v3347 = vmax.f32 %v3331, 0.0
        %v3348 = vmax.f32 %v3332, 0.0
        %v3349 = vmax.f32 %v3333, 0.0
        %s3350 = scalar_lea.vmem %s2, 1920
        %v3351 = vld [vmem:[%s3350] sm:$0xff]
        %v3352 = vld [vmem:[%s3350 + $0x8] sm:$0xff]
        %v3353 = vld [vmem:[%s3350 + $0x10] sm:$0xff]
        %v3354 = vld [vmem:[%s3350 + $0x18] sm:$0xff]
        %v3355 = vld [vmem:[%s3350 + $0x20] sm:$0xff]
        %v3356 = vld [vmem:[%s3350 + $0x28] sm:$0xff]
        %v3357 = vld [vmem:[%s3350 + $0x30] sm:$0xff]
        %v3358 = vld [vmem:[%s3350 + $0x38] sm:$0xff]
        %v3359 = vld [vmem:[%s3350 + $0x40] sm:$0xff]
        %v3360 = vld [vmem:[%s3350 + $0x48] sm:$0xff]
        %v3361 = vld [vmem:[%s3350 + $0x50] sm:$0xff]
        %v3362 = vld [vmem:[%s3350 + $0x58] sm:$0xff]
        %v3363 = vld [vmem:[%s3350 + $0x60] sm:$0xff]
        %v3364 = vld [vmem:[%s3350 + $0x68] sm:$0xff]
        %v3365 = vld [vmem:[%s3350 + $0x70] sm:$0xff]
        %v3366 = vld [vmem:[%s3350 + $0x78] sm:$0xff]
        %v3367 = vld [vmem:[%s3350 + $0x80] sm:$0xff]
        %v3368 = vld [vmem:[%s3350 + $0x88] sm:$0xff]
        %v3369 = vld [vmem:[%s3350 + $0x90] sm:$0xff]
        %v3370 = vld [vmem:[%s3350 + $0x98] sm:$0xff]
        %v3371 = vld [vmem:[%s3350 + $0xa0] sm:$0xff]
        %v3372 = vld [vmem:[%s3350 + $0xa8] sm:$0xff]
        %v3373 = vld [vmem:[%s3350 + $0xb0] sm:$0xff]
        %v3374 = vld [vmem:[%s3350 + $0xb8] sm:$0xff]
        %v3375 = vld [vmem:[%s3350 + $0xc0] sm:$0xff]
        %v3376 = vld [vmem:[%s3350 + $0xc8] sm:$0xff]
        %v3377 = vld [vmem:[%s3350 + $0xd0] sm:$0xff]
        %v3378 = vld [vmem:[%s3350 + $0xd8] sm:$0xff]
        %v3379 = vld [vmem:[%s3350 + $0xe0] sm:$0xff]
        %v3380 = vld [vmem:[%s3350 + $0xe8] sm:$0xff]
        %v3381 = vld [vmem:[%s3350 + $0xf0] sm:$0xff]
        %v3382 = vld [vmem:[%s3350 + $0xf8] sm:$0xff]
        %v3383 = vld [vmem:[%s3350 + $0x100] sm:$0xff]
        %v3384 = vld [vmem:[%s3350 + $0x108] sm:$0xff]
        %v3385 = vld [vmem:[%s3350 + $0x110] sm:$0xff]
        %v3386 = vld [vmem:[%s3350 + $0x118] sm:$0xff]
        %v3387 = vld [vmem:[%s3350 + $0x120] sm:$0xff]
        %v3388 = vld [vmem:[%s3350 + $0x128] sm:$0xff]
        %v3389 = vld [vmem:[%s3350 + $0x130] sm:$0xff]
        %v3390 = vld [vmem:[%s3350 + $0x138] sm:$0xff]
        %v3391 = vld [vmem:[%s3350 + $0x140] sm:$0xff]
        %v3392 = vld [vmem:[%s3350 + $0x148] sm:$0xff]
        %v3393 = vld [vmem:[%s3350 + $0x150] sm:$0xff]
        %v3394 = vld [vmem:[%s3350 + $0x158] sm:$0xff]
        %v3395 = vld [vmem:[%s3350 + $0x160] sm:$0xff]
        %v3396 = vld [vmem:[%s3350 + $0x168] sm:$0xff]
        %v3397 = vld [vmem:[%s3350 + $0x170] sm:$0xff]
        %v3398 = vld [vmem:[%s3350 + $0x178] sm:$0xff]
        %v3399 = vrot.slane %v3334, 7
        %v3400 = vrot.slane %v3335, 7
        %v3401 = vrot.slane %v3336, 7
        %v3402 = vrot.slane %v3337, 7
        %v3403 = vrot.slane %v3338, 7
        %v3404 = vrot.slane %v3339, 7
        %v3405 = vrot.slane %v3340, 7
        %v3406 = vrot.slane %v3341, 7
        %v3407 = vrot.slane %v3342, 7
        %v3408 = vrot.slane %v3343, 7
        %v3409 = vrot.slane %v3344, 7
        %v3410 = vrot.slane %v3345, 7
        %v3411 = vrot.slane %v3346, 7
        %v3412 = vrot.slane %v3347, 7
        %v3413 = vrot.slane %v3348, 7
        %v3414 = vrot.slane %v3349, 7
        %v3415 = vsel %vm660, %v3413, %v3414
        %v3416 = vsel %vm660, %v3412, %v3413
        %v3417 = vsel %vm660, %v3411, %v3412
        %v3418 = vsel %vm660, %v3410, %v3411
        %v3419 = vsel %vm660, %v3409, %v3410
        %v3420 = vsel %vm660, %v3408, %v3409
        %v3421 = vsel %vm660, %v3407, %v3408
        %v3422 = vsel %vm660, %v3406, %v3407
        %v3423 = vsel %vm660, %v3405, %v3406
        %v3424 = vsel %vm660, %v3404, %v3405
        %v3425 = vsel %vm660, %v3403, %v3404
        %v3426 = vsel %vm660, %v3402, %v3403
        %v3427 = vsel %vm660, %v3401, %v3402
        %v3428 = vsel %vm660, %v3400, %v3401
        %v3429 = vsel %vm660, %v3399, %v3400
        %v3430 = vsel %vm660, %v3414, %v3399
        %v3431 = vsel %vm540, %v3430, 0.0
        %v3432 = vsel %vm541, %v3429, 0.0
        %v3433 = vsel %vm542, %v3428, 0.0
        %v3434 = vsel %vm543, %v3427, 0.0
        %v3435 = vsel %vm544, %v3426, 0.0
        %v3436 = vsel %vm545, %v3425, 0.0
        %v3437 = vsel %vm546, %v3424, 0.0
        %v3438 = vsel %vm547, %v3423, 0.0
        %v3439 = vsel %vm548, %v3422, 0.0
        %v3440 = vsel %vm549, %v3421, 0.0
        %v3441 = vsel %vm550, %v3420, 0.0
        %v3442 = vsel %vm551, %v3419, 0.0
        %v3443 = vsel %vm552, %v3418, 0.0
        %v3444 = vsel %vm553, %v3417, 0.0
        %v3445 = vsel %vm554, %v3416, 0.0
        %v3446 = vsel %vm555, %v3415, 0.0
        %v3447 = vrot.slane %v3334, 1
        %v3448 = vrot.slane %v3335, 1
        %v3449 = vrot.slane %v3336, 1
        %v3450 = vrot.slane %v3337, 1
        %v3451 = vrot.slane %v3338, 1
        %v3452 = vrot.slane %v3339, 1
        %v3453 = vrot.slane %v3340, 1
        %v3454 = vrot.slane %v3341, 1
        %v3455 = vrot.slane %v3342, 1
        %v3456 = vrot.slane %v3343, 1
        %v3457 = vrot.slane %v3344, 1
        %v3458 = vrot.slane %v3345, 1
        %v3459 = vrot.slane %v3346, 1
        %v3460 = vrot.slane %v3347, 1
        %v3461 = vrot.slane %v3348, 1
        %v3462 = vrot.slane %v3349, 1
        %v3463 = vsel %vm709, %v3461, %v3462
        %v3464 = vsel %vm709, %v3460, %v3461
        %v3465 = vsel %vm709, %v3459, %v3460
        %v3466 = vsel %vm709, %v3458, %v3459
        %v3467 = vsel %vm709, %v3457, %v3458
        %v3468 = vsel %vm709, %v3456, %v3457
        %v3469 = vsel %vm709, %v3455, %v3456
        %v3470 = vsel %vm709, %v3454, %v3455
        %v3471 = vsel %vm709, %v3453, %v3454
        %v3472 = vsel %vm709, %v3452, %v3453
        %v3473 = vsel %vm709, %v3451, %v3452
        %v3474 = vsel %vm709, %v3450, %v3451
        %v3475 = vsel %vm709, %v3449, %v3450
        %v3476 = vsel %vm709, %v3448, %v3449
        %v3477 = vsel %vm709, %v3447, %v3448
        %v3478 = vsel %vm709, %v3462, %v3447
        %v3479 = vsel %vm556, %v3477, 0.0
        %v3480 = vsel %vm557, %v3476, 0.0
        %v3481 = vsel %vm558, %v3475, 0.0
        %v3482 = vsel %vm559, %v3474, 0.0
        %v3483 = vsel %vm560, %v3473, 0.0
        %v3484 = vsel %vm561, %v3472, 0.0
        %v3485 = vsel %vm562, %v3471, 0.0
        %v3486 = vsel %vm563, %v3470, 0.0
        %v3487 = vsel %vm564, %v3469, 0.0
        %v3488 = vsel %vm565, %v3468, 0.0
        %v3489 = vsel %vm566, %v3467, 0.0
        %v3490 = vsel %vm567, %v3466, 0.0
        %v3491 = vsel %vm568, %v3465, 0.0
        %v3492 = vsel %vm569, %v3464, 0.0
        %v3493 = vsel %vm570, %v3463, 0.0
        %v3494 = vsel %vm571, %v3478, 0.0
        %3495 = vmatprep.subr.mxu0 0.0
        %3496 = vmatpush1.msra.mxu0 %v3366
        %3497 = vmatprep.subr.mxu0 0.0
        %3498 = vmatpush1.msra.mxu0 %v3365
        %3499 = vmatprep.subr.mxu0 0.0
        %3500 = vmatpush1.msra.mxu0 %v3364
        %3501 = vmatprep.subr.mxu0 0.0
        %3502 = vmatpush1.msra.mxu0 %v3363
        %3503 = vmatprep.subr.mxu0 0.0
        %3504 = vmatpush1.msra.mxu0 %v3362
        %3505 = vmatprep.subr.mxu0 0.0
        %3506 = vmatpush1.msra.mxu0 %v3361
        %3507 = vmatprep.subr.mxu0 0.0
        %3508 = vmatpush1.msra.mxu0 %v3360
        %3509 = vmatprep.subr.mxu0 0.0
        %3510 = vmatpush1.msra.mxu0 %v3359
        %3511 = vmatprep.subr.mxu0 0.0
        %3512 = vmatpush1.msra.mxu0 %v3358
        %3513 = vmatprep.subr.mxu0 0.0
        %3514 = vmatpush1.msra.mxu0 %v3357
        %3515 = vmatprep.subr.mxu0 0.0
        %3516 = vmatpush1.msra.mxu0 %v3356
        %3517 = vmatprep.subr.mxu0 0.0
        %3518 = vmatpush1.msra.mxu0 %v3355
        %3519 = vmatprep.subr.mxu0 0.0
        %3520 = vmatpush1.msra.mxu0 %v3354
        %3521 = vmatprep.subr.mxu0 0.0
        %3522 = vmatpush1.msra.mxu0 %v3353
        %3523 = vmatprep.subr.mxu0 0.0
        %3524 = vmatpush1.msra.mxu0 %v3352
        %3525 = vmatprep.subr.mxu0 0.0
        %3526 = vmatpush1.msra.mxu0 %v3351
        %3527 = vmatprep.subr.mxu0 0.0
        %3528 = vmatpush2.msra.mxu0 %v3382
        %3529 = vmatprep.subr.mxu0 0.0
        %3530 = vmatpush2.msra.mxu0 %v3381
        %3531 = vmatprep.subr.mxu0 0.0
        %3532 = vmatpush2.msra.mxu0 %v3380
        %3533 = vmatprep.subr.mxu0 0.0
        %3534 = vmatpush2.msra.mxu0 %v3379
        %3535 = vmatprep.subr.mxu0 0.0
        %3536 = vmatpush2.msra.mxu0 %v3378
        %3537 = vmatprep.subr.mxu0 0.0
        %3538 = vmatpush2.msra.mxu0 %v3377
        %3539 = vmatprep.subr.mxu0 0.0
        %3540 = vmatpush2.msra.mxu0 %v3376
        %3541 = vmatprep.subr.mxu0 0.0
        %3542 = vmatpush2.msra.mxu0 %v3375
        %3543 = vmatprep.subr.mxu0 0.0
        %3544 = vmatpush2.msra.mxu0 %v3374
        %3545 = vmatprep.subr.mxu0 0.0
        %3546 = vmatpush2.msra.mxu0 %v3373
        %3547 = vmatprep.subr.mxu0 0.0
        %3548 = vmatpush2.msra.mxu0 %v3372
        %3549 = vmatprep.subr.mxu0 0.0
        %3550 = vmatpush2.msra.mxu0 %v3371
        %3551 = vmatprep.subr.mxu0 0.0
        %3552 = vmatpush2.msra.mxu0 %v3370
        %3553 = vmatprep.subr.mxu0 0.0
        %3554 = vmatpush2.msra.mxu0 %v3369
        %3555 = vmatprep.subr.mxu0 0.0
        %3556 = vmatpush2.msra.mxu0 %v3368
        %3557 = vmatprep.subr.mxu0 0.0
        %3558 = vmatpush2.msra.mxu0 %v3367
        %3559 = vmatprep.mubr.f32.mxu0 %v3334
        %3560 = vmatmul.mubr.f32.gmra.mxu0 %v3431
        %v3561 = vpop.f32.mrf.mxu0
        %v3562 = vadd.f32 0.0, %v3561
        %v3563 = vpop.f32.mrf.mxu0
        %3564 = vmatprep.mubr.f32.mxu0 %v3335
        %3565 = vmatmul.mubr.f32.gmra.mxu0 %v3432
        %v3566 = vpop.f32.mrf.mxu0
        %v3567 = vadd.f32 0.0, %v3566
        %v3568 = vpop.f32.mrf.mxu0
        %3569 = vmatprep.mubr.f32.mxu0 %v3336
        %3570 = vmatmul.mubr.f32.gmra.mxu0 %v3433
        %v3571 = vpop.f32.mrf.mxu0
        %v3572 = vadd.f32 0.0, %v3571
        %v3573 = vpop.f32.mrf.mxu0
        %3574 = vmatprep.mubr.f32.mxu0 %v3337
        %3575 = vmatmul.mubr.f32.gmra.mxu0 %v3434
        %v3576 = vpop.f32.mrf.mxu0
        %v3577 = vadd.f32 0.0, %v3576
        %v3578 = vpop.f32.mrf.mxu0
        %3579 = vmatprep.mubr.f32.mxu0 %v3338
        %3580 = vmatmul.mubr.f32.gmra.mxu0 %v3435
        %v3581 = vpop.f32.mrf.mxu0
        %v3582 = vadd.f32 0.0, %v3581
        %v3583 = vpop.f32.mrf.mxu0
        %3584 = vmatprep.mubr.f32.mxu0 %v3339
        %3585 = vmatmul.mubr.f32.gmra.mxu0 %v3436
        %v3586 = vpop.f32.mrf.mxu0
        %v3587 = vadd.f32 0.0, %v3586
        %v3588 = vpop.f32.mrf.mxu0
        %3589 = vmatprep.mubr.f32.mxu0 %v3340
        %3590 = vmatmul.mubr.f32.gmra.mxu0 %v3437
        %v3591 = vpop.f32.mrf.mxu0
        %v3592 = vadd.f32 0.0, %v3591
        %v3593 = vpop.f32.mrf.mxu0
        %3594 = vmatprep.mubr.f32.mxu0 %v3341
        %3595 = vmatmul.mubr.f32.gmra.mxu0 %v3438
        %v3596 = vpop.f32.mrf.mxu0
        %v3597 = vadd.f32 0.0, %v3596
        %v3598 = vpop.f32.mrf.mxu0
        %3599 = vmatprep.mubr.f32.mxu0 %v3342
        %3600 = vmatmul.mubr.f32.gmra.mxu0 %v3439
        %v3601 = vpop.f32.mrf.mxu0
        %v3602 = vadd.f32 0.0, %v3601
        %v3603 = vpop.f32.mrf.mxu0
        %3604 = vmatprep.mubr.f32.mxu0 %v3343
        %3605 = vmatmul.mubr.f32.gmra.mxu0 %v3440
        %v3606 = vpop.f32.mrf.mxu0
        %v3607 = vadd.f32 0.0, %v3606
        %v3608 = vpop.f32.mrf.mxu0
        %3609 = vmatprep.mubr.f32.mxu0 %v3344
        %3610 = vmatmul.mubr.f32.gmra.mxu0 %v3441
        %v3611 = vpop.f32.mrf.mxu0
        %v3612 = vadd.f32 0.0, %v3611
        %v3613 = vpop.f32.mrf.mxu0
        %3614 = vmatprep.mubr.f32.mxu0 %v3345
        %3615 = vmatmul.mubr.f32.gmra.mxu0 %v3442
        %v3616 = vpop.f32.mrf.mxu0
        %v3617 = vadd.f32 0.0, %v3616
        %v3618 = vpop.f32.mrf.mxu0
        %3619 = vmatprep.mubr.f32.mxu0 %v3346
        %3620 = vmatmul.mubr.f32.gmra.mxu0 %v3443
        %v3621 = vpop.f32.mrf.mxu0
        %v3622 = vadd.f32 0.0, %v3621
        %v3623 = vpop.f32.mrf.mxu0
        %3624 = vmatprep.mubr.f32.mxu0 %v3347
        %3625 = vmatmul.mubr.f32.gmra.mxu0 %v3444
        %v3626 = vpop.f32.mrf.mxu0
        %v3627 = vadd.f32 0.0, %v3626
        %v3628 = vpop.f32.mrf.mxu0
        %3629 = vmatprep.mubr.f32.mxu0 %v3348
        %3630 = vmatmul.mubr.f32.gmra.mxu0 %v3445
        %v3631 = vpop.f32.mrf.mxu0
        %v3632 = vadd.f32 0.0, %v3631
        %v3633 = vpop.f32.mrf.mxu0
        %3634 = vmatprep.mubr.f32.mxu0 %v3349
        %3635 = vmatmul.mubr.f32.gmra.mxu0 %v3446
        %v3636 = vpop.f32.mrf.mxu0
        %v3637 = vadd.f32 0.0, %v3636
        %v3638 = vpop.f32.mrf.mxu0
        %3639 = vdwg.mxu0
        %3640 = vmatprep.subr.mxu0 0.0
        %3641 = vmatpush1.msra.mxu0 %v3398
        %3642 = vmatprep.subr.mxu0 0.0
        %3643 = vmatpush1.msra.mxu0 %v3397
        %3644 = vmatprep.subr.mxu0 0.0
        %3645 = vmatpush1.msra.mxu0 %v3396
        %3646 = vmatprep.subr.mxu0 0.0
        %3647 = vmatpush1.msra.mxu0 %v3395
        %3648 = vmatprep.subr.mxu0 0.0
        %3649 = vmatpush1.msra.mxu0 %v3394
        %3650 = vmatprep.subr.mxu0 0.0
        %3651 = vmatpush1.msra.mxu0 %v3393
        %3652 = vmatprep.subr.mxu0 0.0
        %3653 = vmatpush1.msra.mxu0 %v3392
        %3654 = vmatprep.subr.mxu0 0.0
        %3655 = vmatpush1.msra.mxu0 %v3391
        %3656 = vmatprep.subr.mxu0 0.0
        %3657 = vmatpush1.msra.mxu0 %v3390
        %3658 = vmatprep.subr.mxu0 0.0
        %3659 = vmatpush1.msra.mxu0 %v3389
        %3660 = vmatprep.subr.mxu0 0.0
        %3661 = vmatpush1.msra.mxu0 %v3388
        %3662 = vmatprep.subr.mxu0 0.0
        %3663 = vmatpush1.msra.mxu0 %v3387
        %3664 = vmatprep.subr.mxu0 0.0
        %3665 = vmatpush1.msra.mxu0 %v3386
        %3666 = vmatprep.subr.mxu0 0.0
        %3667 = vmatpush1.msra.mxu0 %v3385
        %3668 = vmatprep.subr.mxu0 0.0
        %3669 = vmatpush1.msra.mxu0 %v3384
        %3670 = vmatprep.subr.mxu0 0.0
        %3671 = vmatpush1.msra.mxu0 %v3383
        %3672 = vmatprep.subr.mxu0 0.0
        %3673 = vmatpush2.msra.mxu0 0.0
        %3674 = vmatprep.subr.mxu0 0.0
        %3675 = vmatpush2.msra.mxu0 0.0
        %3676 = vmatprep.subr.mxu0 0.0
        %3677 = vmatpush2.msra.mxu0 0.0
        %3678 = vmatprep.subr.mxu0 0.0
        %3679 = vmatpush2.msra.mxu0 0.0
        %3680 = vmatprep.subr.mxu0 0.0
        %3681 = vmatpush2.msra.mxu0 0.0
        %3682 = vmatprep.subr.mxu0 0.0
        %3683 = vmatpush2.msra.mxu0 0.0
        %3684 = vmatprep.subr.mxu0 0.0
        %3685 = vmatpush2.msra.mxu0 0.0
        %3686 = vmatprep.subr.mxu0 0.0
        %3687 = vmatpush2.msra.mxu0 0.0
        %3688 = vmatprep.subr.mxu0 0.0
        %3689 = vmatpush2.msra.mxu0 0.0
        %3690 = vmatprep.subr.mxu0 0.0
        %3691 = vmatpush2.msra.mxu0 0.0
        %3692 = vmatprep.subr.mxu0 0.0
        %3693 = vmatpush2.msra.mxu0 0.0
        %3694 = vmatprep.subr.mxu0 0.0
        %3695 = vmatpush2.msra.mxu0 0.0
        %3696 = vmatprep.subr.mxu0 0.0
        %3697 = vmatpush2.msra.mxu0 0.0
        %3698 = vmatprep.subr.mxu0 0.0
        %3699 = vmatpush2.msra.mxu0 0.0
        %3700 = vmatprep.subr.mxu0 0.0
        %3701 = vmatpush2.msra.mxu0 0.0
        %3702 = vmatprep.subr.mxu0 0.0
        %3703 = vmatpush2.msra.mxu0 0.0
        %3704 = vmatprep.mubr.f32.mxu0 0.0
        %3705 = vmatmul.mubr.f32.gmra.mxu0 %v3479
        %v3706 = vpop.f32.mrf.mxu0
        %v3707 = vadd.f32 %v3562, %v3706
        %v3708 = vpop.f32.mrf.mxu0
        %3709 = vmatprep.mubr.f32.mxu0 0.0
        %3710 = vmatmul.mubr.f32.gmra.mxu0 %v3480
        %v3711 = vpop.f32.mrf.mxu0
        %v3712 = vadd.f32 %v3567, %v3711
        %v3713 = vpop.f32.mrf.mxu0
        %3714 = vmatprep.mubr.f32.mxu0 0.0
        %3715 = vmatmul.mubr.f32.gmra.mxu0 %v3481
        %v3716 = vpop.f32.mrf.mxu0
        %v3717 = vadd.f32 %v3572, %v3716
        %v3718 = vpop.f32.mrf.mxu0
        %3719 = vmatprep.mubr.f32.mxu0 0.0
        %3720 = vmatmul.mubr.f32.gmra.mxu0 %v3482
        %v3721 = vpop.f32.mrf.mxu0
        %v3722 = vadd.f32 %v3577, %v3721
        %v3723 = vpop.f32.mrf.mxu0
        %3724 = vmatprep.mubr.f32.mxu0 0.0
        %3725 = vmatmul.mubr.f32.gmra.mxu0 %v3483
        %v3726 = vpop.f32.mrf.mxu0
        %v3727 = vadd.f32 %v3582, %v3726
        %v3728 = vpop.f32.mrf.mxu0
        %3729 = vmatprep.mubr.f32.mxu0 0.0
        %3730 = vmatmul.mubr.f32.gmra.mxu0 %v3484
        %v3731 = vpop.f32.mrf.mxu0
        %v3732 = vadd.f32 %v3587, %v3731
        %v3733 = vpop.f32.mrf.mxu0
        %3734 = vmatprep.mubr.f32.mxu0 0.0
        %3735 = vmatmul.mubr.f32.gmra.mxu0 %v3485
        %v3736 = vpop.f32.mrf.mxu0
        %v3737 = vadd.f32 %v3592, %v3736
        %v3738 = vpop.f32.mrf.mxu0
        %3739 = vmatprep.mubr.f32.mxu0 0.0
        %3740 = vmatmul.mubr.f32.gmra.mxu0 %v3486
        %v3741 = vpop.f32.mrf.mxu0
        %v3742 = vadd.f32 %v3597, %v3741
        %v3743 = vpop.f32.mrf.mxu0
        %3744 = vmatprep.mubr.f32.mxu0 0.0
        %3745 = vmatmul.mubr.f32.gmra.mxu0 %v3487
        %v3746 = vpop.f32.mrf.mxu0
        %v3747 = vadd.f32 %v3602, %v3746
        %v3748 = vpop.f32.mrf.mxu0
        %3749 = vmatprep.mubr.f32.mxu0 0.0
        %3750 = vmatmul.mubr.f32.gmra.mxu0 %v3488
        %v3751 = vpop.f32.mrf.mxu0
        %v3752 = vadd.f32 %v3607, %v3751
        %v3753 = vpop.f32.mrf.mxu0
        %3754 = vmatprep.mubr.f32.mxu0 0.0
        %3755 = vmatmul.mubr.f32.gmra.mxu0 %v3489
        %v3756 = vpop.f32.mrf.mxu0
        %v3757 = vadd.f32 %v3612, %v3756
        %v3758 = vpop.f32.mrf.mxu0
        %3759 = vmatprep.mubr.f32.mxu0 0.0
        %3760 = vmatmul.mubr.f32.gmra.mxu0 %v3490
        %v3761 = vpop.f32.mrf.mxu0
        %v3762 = vadd.f32 %v3617, %v3761
        %v3763 = vpop.f32.mrf.mxu0
        %3764 = vmatprep.mubr.f32.mxu0 0.0
        %3765 = vmatmul.mubr.f32.gmra.mxu0 %v3491
        %v3766 = vpop.f32.mrf.mxu0
        %v3767 = vadd.f32 %v3622, %v3766
        %v3768 = vpop.f32.mrf.mxu0
        %3769 = vmatprep.mubr.f32.mxu0 0.0
        %3770 = vmatmul.mubr.f32.gmra.mxu0 %v3492
        %v3771 = vpop.f32.mrf.mxu0
        %v3772 = vadd.f32 %v3627, %v3771
        %v3773 = vpop.f32.mrf.mxu0
        %3774 = vmatprep.mubr.f32.mxu0 0.0
        %3775 = vmatmul.mubr.f32.gmra.mxu0 %v3493
        %v3776 = vpop.f32.mrf.mxu0
        %v3777 = vadd.f32 %v3632, %v3776
        %v3778 = vpop.f32.mrf.mxu0
        %3779 = vmatprep.mubr.f32.mxu0 0.0
        %3780 = vmatmul.mubr.f32.gmra.mxu0 %v3494
        %v3781 = vpop.f32.mrf.mxu0
        %v3782 = vadd.f32 %v3637, %v3781
        %v3783 = vpop.f32.mrf.mxu0
        %3784 = vdwg.mxu0
        %v3785 = vlaneseq
        %v3786 = vshrl.u32 %v3785, 7
        %v3787 = vsub.s32 2, %v3786
        %v3788 = vrot.slane %v2795, %v3787
        %v3789 = vlaneseq
        %v3790 = vshrl.u32 %v3789, 7
        %v3791 = vsub.s32 2, %v3790
        %v3792 = vrot.slane %v2796, %v3791
        %v3793 = vlaneseq
        %v3794 = vshrl.u32 %v3793, 7
        %v3795 = vsub.s32 2, %v3794
        %v3796 = vrot.slane %v2797, %v3795
        %v3797 = vlaneseq
        %v3798 = vshrl.u32 %v3797, 7
        %v3799 = vsub.s32 2, %v3798
        %v3800 = vrot.slane %v2798, %v3799
        %v3801 = vlaneseq
        %v3802 = vshrl.u32 %v3801, 7
        %v3803 = vsub.s32 2, %v3802
        %v3804 = vrot.slane %v2799, %v3803
        %v3805 = vlaneseq
        %v3806 = vshrl.u32 %v3805, 7
        %v3807 = vsub.s32 2, %v3806
        %v3808 = vrot.slane %v2800, %v3807
        %v3809 = vlaneseq
        %v3810 = vshrl.u32 %v3809, 7
        %v3811 = vsub.s32 2, %v3810
        %v3812 = vrot.slane %v2801, %v3811
        %v3813 = vlaneseq
        %v3814 = vshrl.u32 %v3813, 7
        %v3815 = vsub.s32 2, %v3814
        %v3816 = vrot.slane %v2802, %v3815
        %v3817 = vmul.f32 %v3707, %v3788
        %v3818 = vmul.f32 %v3712, %v3788
        %v3819 = vmul.f32 %v3717, %v3792
        %v3820 = vmul.f32 %v3722, %v3792
        %v3821 = vmul.f32 %v3727, %v3796
        %v3822 = vmul.f32 %v3732, %v3796
        %v3823 = vmul.f32 %v3737, %v3800
        %v3824 = vmul.f32 %v3742, %v3800
        %v3825 = vmul.f32 %v3747, %v3804
        %v3826 = vmul.f32 %v3752, %v3804
        %v3827 = vmul.f32 %v3757, %v3808
        %v3828 = vmul.f32 %v3762, %v3808
        %v3829 = vmul.f32 %v3767, %v3812
        %v3830 = vmul.f32 %v3772, %v3812
        %v3831 = vmul.f32 %v3777, %v3816
        %v3832 = vmul.f32 %v3782, %v3816
        %v3833 = vlaneseq
        %v3834 = vshrl.u32 %v3833, 7
        %v3835 = vsub.s32 3, %v3834
        %v3836 = vrot.slane %v2795, %v3835
        %v3837 = vlaneseq
        %v3838 = vshrl.u32 %v3837, 7
        %v3839 = vsub.s32 3, %v3838
        %v3840 = vrot.slane %v2796, %v3839
        %v3841 = vlaneseq
        %v3842 = vshrl.u32 %v3841, 7
        %v3843 = vsub.s32 3, %v3842
        %v3844 = vrot.slane %v2797, %v3843
        %v3845 = vlaneseq
        %v3846 = vshrl.u32 %v3845, 7
        %v3847 = vsub.s32 3, %v3846
        %v3848 = vrot.slane %v2798, %v3847
        %v3849 = vlaneseq
        %v3850 = vshrl.u32 %v3849, 7
        %v3851 = vsub.s32 3, %v3850
        %v3852 = vrot.slane %v2799, %v3851
        %v3853 = vlaneseq
        %v3854 = vshrl.u32 %v3853, 7
        %v3855 = vsub.s32 3, %v3854
        %v3856 = vrot.slane %v2800, %v3855
        %v3857 = vlaneseq
        %v3858 = vshrl.u32 %v3857, 7
        %v3859 = vsub.s32 3, %v3858
        %v3860 = vrot.slane %v2801, %v3859
        %v3861 = vlaneseq
        %v3862 = vshrl.u32 %v3861, 7
        %v3863 = vsub.s32 3, %v3862
        %v3864 = vrot.slane %v2802, %v3863
        %v3865 = vadd.f32 %v3817, %v3836
        %v3866 = vadd.f32 %v3818, %v3836
        %v3867 = vadd.f32 %v3819, %v3840
        %v3868 = vadd.f32 %v3820, %v3840
        %v3869 = vadd.f32 %v3821, %v3844
        %v3870 = vadd.f32 %v3822, %v3844
        %v3871 = vadd.f32 %v3823, %v3848
        %v3872 = vadd.f32 %v3824, %v3848
        %v3873 = vadd.f32 %v3825, %v3852
        %v3874 = vadd.f32 %v3826, %v3852
        %v3875 = vadd.f32 %v3827, %v3856
        %v3876 = vadd.f32 %v3828, %v3856
        %v3877 = vadd.f32 %v3829, %v3860
        %v3878 = vadd.f32 %v3830, %v3860
        %v3879 = vadd.f32 %v3831, %v3864
        %v3880 = vadd.f32 %v3832, %v3864
        %v3881 = vadd.f32 %v2778, %v3865
        %v3882 = vadd.f32 %v2779, %v3866
        %v3883 = vadd.f32 %v2780, %v3867
        %v3884 = vadd.f32 %v2781, %v3868
        %v3885 = vadd.f32 %v2782, %v3869
        %v3886 = vadd.f32 %v2783, %v3870
        %v3887 = vadd.f32 %v2784, %v3871
        %v3888 = vadd.f32 %v2785, %v3872
        %v3889 = vadd.f32 %v2786, %v3873
        %v3890 = vadd.f32 %v2787, %v3874
        %v3891 = vadd.f32 %v2788, %v3875
        %v3892 = vadd.f32 %v2789, %v3876
        %v3893 = vadd.f32 %v2790, %v3877
        %v3894 = vadd.f32 %v2791, %v3878
        %v3895 = vadd.f32 %v2792, %v3879
        %v3896 = vadd.f32 %v2793, %v3880
        %3897 = vst [vmem:[%s329] sm:$0xff] %v3881
        %3898 = vst [vmem:[%s329 + $0x8] sm:$0xff] %v3882
        %3899 = vst [vmem:[%s329 + $0x10] sm:$0xff] %v3883
        %3900 = vst [vmem:[%s329 + $0x18] sm:$0xff] %v3884
        %3901 = vst [vmem:[%s329 + $0x20] sm:$0xff] %v3885
        %3902 = vst [vmem:[%s329 + $0x28] sm:$0xff] %v3886
        %3903 = vst [vmem:[%s329 + $0x30] sm:$0xff] %v3887
        %3904 = vst [vmem:[%s329 + $0x38] sm:$0xff] %v3888
        %3905 = vst [vmem:[%s329 + $0x40] sm:$0xff] %v3889
        %3906 = vst [vmem:[%s329 + $0x48] sm:$0xff] %v3890
        %3907 = vst [vmem:[%s329 + $0x50] sm:$0xff] %v3891
        %3908 = vst [vmem:[%s329 + $0x58] sm:$0xff] %v3892
        %3909 = vst [vmem:[%s329 + $0x60] sm:$0xff] %v3893
        %3910 = vst [vmem:[%s329 + $0x68] sm:$0xff] %v3894
        %3911 = vst [vmem:[%s329 + $0x70] sm:$0xff] %v3895
        %3912 = vst [vmem:[%s329 + $0x78] sm:$0xff] %v3896
        %s3913 = smul.u32 16, %s14
        %p3914 = scmp.lt.s32.totalorder %s3913, 31
        %s3915 = scalar_select %p3914, %s3913, 31
        %s3916 = smul.addr %s3915, 8
        %s3917 = scalar_lea.vmem %s3, %s3916
        // Predicated region
        $region74: #{unet_style.1} parent=68 // pred_check
          %p3918 = pneg %p105
        $region75: #{unet_style.1} parent=68 // pred_check_branch
          %3920 = sbr.rel (%p3918) target = $region77
        $region76: #{unet_style.1} parent=68 // pred_region
          %s3921 = smul.u32 16, %s14
        $region77: #{unet_style.1} parent=68 // pred_fallthru
          _
      $region69: #{unet_style.1} parent=5 // pred_fallthru
        _
      %p3922 = scmp.le.s32.totalorder 2, %s9
      // Predicated region
      $region78: #{unet_style.1} parent=5 // pred_check
        %p3923 = pneg %p3922
      $region79: #{unet_style.1} parent=5 // pred_check_branch
        %3925 = sbr.rel (%p3923) target = $region81
      $region80: #{unet_style.1} parent=5 // pred_region
        %s3926 = ssub.s32 %s9, 2
        // Predicated region
        $region82: #{unet_style.1} parent=80 // pred_check
          %p3927 = pneg %p111
        $region83: #{unet_style.1} parent=80 // pred_check_branch
          %3929 = sbr.rel (%p3927) target = $region85
        $region84: #{unet_style.1} parent=80 // pred_region
          %s3930 = smul.u32 16, %s15
          %p3931 = scmp.lt.s32.totalorder %s3930, 31
          %s3932 = scalar_select %p3931, %s3930, 31
          %s3933 = smul.addr %s3932, 8
          %s3934 = scalar_lea.vmem %s3, %s3933
        $region85: #{unet_style.1} parent=80 // pred_fallthru
          _
      $region81: #{unet_style.1} parent=5 // pred_fallthru
        _
    $region6: #{unet_style.1} parent=1 // loop_footer
      %s13 = sadd.s32 1, %s9
    $region7: #{unet_style.1} parent=1 // loop_footer_branch
      %8 = sbr.rel target = $region3
    $region8: #{unet_style.1} parent=1 // loop_exit
      _

</llo_original>
